<compile_context>
chip_gen: v6e
topology: v6e:2x2x1
jax: 0.10.0
libtpu: 0.0.40
codegen_flags: <defaults>
</compile_context>

<pallas_src>
import functools
import math

import jax
import jax.numpy as jnp
from jax.experimental import pallas as pl
from jax.experimental.pallas import tpu as pltpu


# ----------------------------------------------------------------------------
# Small helpers
# ----------------------------------------------------------------------------
def _round_up(x, m):
    return (x + m - 1) // m * m


def _pick_map_row_tile(n_rows, w2, bytes_per_map_row, budget=4 << 20):
    """Feature-map rows per tile for the slab conv kernels.

    A tile covers TR map rows == TR*w2 slab rows.  Prefer exact divisors of
    n_rows (no padding, no trailing slice), sublane-aligned blocks
    (TR*w2 % 8 == 0), >= 2 grid steps (v7x has 2 TensorCores), and at most
    `budget` bytes of operands per block (safe for v7x's 64 MiB VMEM).
    """
    divs = [d for d in range(1, n_rows + 1) if n_rows % d == 0]
    ok = [d for d in divs
          if (d * w2) % 8 == 0 and d * bytes_per_map_row <= budget]
    if ok:
        multi = [d for d in ok if n_rows // d >= 2]
        tr = max(multi) if multi else max(ok)
        return tr, n_rows
    # Fallback: pad the map-row count; TR a multiple of 8 keeps TR*w2 % 8 == 0.
    tr = 8
    while tr * 2 * bytes_per_map_row <= budget and tr * 2 < n_rows:
        tr *= 2
    return tr, _round_up(n_rows, tr)


def _pick_m_tile(m, max_tile=2048):
    """M tile for the out_proj matmul: multiple of 8, prefer >= 2 grid steps."""
    m8 = _round_up(m, 8)
    tm = min(m8, max_tile)
    if m8 >= 16:
        tm = min(tm, _round_up(m8 // 2, 8))
    return tm, _round_up(m8, tm)


# ----------------------------------------------------------------------------
# Pallas kernels
# ----------------------------------------------------------------------------
def _shift_up(x, dj):
    """Rows shifted up by dj (tail filled with zeros).

    Row p of the result is row p+dj of x.  The zero tail only ever lands on
    the spatial-padding rows of the slab layout, which are discarded later.
    """
    if dj == 0:
        return x
    zeros = jnp.zeros((dj, x.shape[1]), x.dtype)
    return jnp.concatenate([x[dj:, :], zeros], axis=0)


def conv3x3_slab_kernel(s0_ref, s1_ref, s2_ref, w_ref, b_ref, *out_refs,
                        c_pad, fuse_pool):
    """3x3 conv (+ optional fused MaxPool2d(3,1,1)) on H-shifted row slabs.

    Each s*_ref block is (TR*w2, c_pad): TR feature-map rows, already shifted
    by one kh tap, laid out as w2 = w_in+2 zero-padded columns x c_pad
    channels.  The kw taps are 1/2-row shifts applied to the per-tap matmul
    results (the shift commutes with the row-wise matmul).
    """
    s_vals = [s0_ref[...], s1_ref[...], s2_ref[...]]     # bf16, (TR*w2, c_pad)

    acc = None
    for dj in range(3):
        a_dj = None
        for di in range(3):
            tap = di * 3 + dj
            w_tap = w_ref[tap * c_pad:(tap + 1) * c_pad, :]        # (c_pad, N)
            part = jnp.dot(s_vals[di], w_tap,
                           preferred_element_type=jnp.float32)
            a_dj = part if a_dj is None else a_dj + part
        a_dj = _shift_up(a_dj, dj)
        acc = a_dj if acc is None else acc + a_dj

    acc = jnp.maximum(acc + b_ref[...], 0.0)             # folded-BN bias + ReLU
    out_refs[0][...] = acc.astype(out_refs[0].dtype)

    if fuse_pool:
        # Max over the 3 kh taps first (shift-invariant), then over kw shifts.
        # Zero padding is equivalent to -inf padding because inputs are >= 0
        # (in_proj ends in ReLU).
        m = jnp.maximum(jnp.maximum(s_vals[0], s_vals[1]), s_vals[2])
        m = m.astype(jnp.float32)
        pmax = None
        for dj in range(3):
            sm = _shift_up(m, dj)
            pmax = sm if pmax is None else jnp.maximum(pmax, sm)
        out_refs[1][...] = pmax.astype(out_refs[1].dtype)


def dual_matmul_bias_relu_kernel(x1_ref, x2_ref, w1_ref, w2_ref, b_ref, o_ref):
    """out_proj: two accumulated matmuls (conv branch + pool branch), no concat."""
    acc = jnp.dot(x1_ref[...], w1_ref[...], preferred_element_type=jnp.float32)
    acc = acc + jnp.dot(x2_ref[...], w2_ref[...],
                        preferred_element_type=jnp.float32)
    o_ref[...] = jnp.maximum(acc + b_ref[...], 0.0).astype(o_ref.dtype)


# ----------------------------------------------------------------------------
# Conv wrappers
# ----------------------------------------------------------------------------
def conv3x3_slab(x_nhwc, layer, *, stride=1, fuse_pool=False):
    """3x3 conv + folded BN + ReLU, optionally fused with MaxPool2d(3,1,1).

    x_nhwc: (n, h, w, c) bf16 with real channel count.
    Returns (n, ho, wo, n_out) bf16, plus the (n, h, w, c) bf16 pool output
    when fuse_pool=True (fuse_pool requires stride == 1).
    """
    assert not (fuse_pool and stride != 1)
    n, h, w, c = x_nhwc.shape
    c_pad = layer["c_pad"]
    n_out = layer["n_out"]
    if c_pad != c:
        x_nhwc = jnp.pad(x_nhwc, ((0, 0), (0, 0), (0, 0), (0, c_pad - c)))
    xp = jnp.pad(x_nhwc, ((0, 0), (1, 1), (1, 1), (0, 0)))       # zero pad H/W
    w2 = w + 2
    ho = (h + 2 - 3) // stride + 1
    wo = (w + 2 - 3) // stride + 1

    # 3 H-shifted row slabs (one per kh tap): ~3x input traffic, not 9x im2col.
    slabs = [xp[:, di:di + (ho - 1) * stride + 1:stride, :, :]
             .reshape(n * ho * w2, c_pad) for di in range(3)]

    n_rows = n * ho
    bytes_per_map_row = w2 * (3 * c_pad + n_out
                              + (c_pad if fuse_pool else 0)) * 2
    tr, n_rows_pad = _pick_map_row_tile(n_rows, w2, bytes_per_map_row)
    if n_rows_pad != n_rows:
        pad = (n_rows_pad - n_rows) * w2
        slabs = [jnp.pad(s, ((0, pad), (0, 0))) for s in slabs]
    m_slab = n_rows_pad * w2
    trp = tr * w2
    grid = (n_rows_pad // tr,)

    conv_shape = jax.ShapeDtypeStruct((m_slab, n_out), jnp.bfloat16)
    conv_spec = pl.BlockSpec((trp, n_out), lambda i: (i, 0))
    if fuse_pool:
        out_shape = (conv_shape,
                     jax.ShapeDtypeStruct((m_slab, c_pad), jnp.bfloat16))
        out_specs = (conv_spec, pl.BlockSpec((trp, c_pad), lambda i: (i, 0)))
    else:
        out_shape = conv_shape
        out_specs = conv_spec

    cost = pl.CostEstimate(
        flops=2 * m_slab * 9 * c_pad * n_out,
        transcendentals=0,
        bytes_accessed=(3 * m_slab * c_pad + 9 * c_pad * n_out
                        + m_slab * n_out
                        + (m_slab * c_pad if fuse_pool else 0)) * 2,
    )
    kernel = functools.partial(conv3x3_slab_kernel, c_pad=c_pad,
                               fuse_pool=fuse_pool)
    result = pl.pallas_call(
        kernel,
        out_shape=out_shape,
        grid=grid,
        in_specs=[pl.BlockSpec((trp, c_pad), lambda i: (i, 0)),
                  pl.BlockSpec((trp, c_pad), lambda i: (i, 0)),
                  pl.BlockSpec((trp, c_pad), lambda i: (i, 0)),
                  pl.BlockSpec(layer["w"].shape, lambda i: (0, 0)),
                  pl.BlockSpec(layer["b"].shape, lambda i: (0, 0))],
        out_specs=out_specs,
        compiler_params=pltpu.CompilerParams(
            dimension_semantics=("parallel",)),
        cost_estimate=cost,
    )(*slabs, layer["w"], layer["b"])

    conv_flat = result[0] if fuse_pool else result
    # Valid conv outputs live at padded-column positions q = j*stride.
    conv = conv_flat[:n_rows * w2].reshape(n, ho, w2, n_out)
    conv = conv[:, :, 0:(wo - 1) * stride + 1:stride, :]
    if not fuse_pool:
        return conv
    pool = result[1][:n_rows * w2].reshape(n, ho, w2, c_pad)
    pool = pool[:, :, :w, :c]                 # stride-1 pool, real channels
    return conv, pool


def _window_patches(x_nhwc, k):
    """Non-overlapping k x k windows -> (n*ho*wo, k*k*c). Pure reshape/transpose."""
    n, h, w, c = x_nhwc.shape
    ho, wo = h // k, w // k
    x = x_nhwc[:, :ho * k, :wo * k, :]
    x = x.reshape(n, ho, k, wo, k, c).transpose(0, 1, 3, 2, 4, 5)
    return x.reshape(n * ho * wo, k * k * c), (n, ho, wo)


def out_proj_conv(x1, x2, layer):
    """out_proj: Conv(k=s=stride[1], pad=0) + folded BN + ReLU, K split by branch."""
    k = layer["k"]
    n_out = layer["n_out"]
    p1, (n, ho, wo) = _window_patches(x1, k)
    p2, _ = _window_patches(x2, k)
    m = n * ho * wo
    tm, m_pad = _pick_m_tile(m)
    if m_pad != m:
        p1 = jnp.pad(p1, ((0, m_pad - m), (0, 0)))
        p2 = jnp.pad(p2, ((0, m_pad - m), (0, 0)))
    kdim = p1.shape[1]

    cost = pl.CostEstimate(
        flops=2 * m_pad * 2 * kdim * n_out,
        transcendentals=0,
        bytes_accessed=2 * m_pad * kdim * 2 + 2 * kdim * n_out * 2
                       + m_pad * n_out * 4,
    )
    out = pl.pallas_call(
        dual_matmul_bias_relu_kernel,
        out_shape=jax.ShapeDtypeStruct((m_pad, n_out), jnp.float32),
        grid=(m_pad // tm,),
        in_specs=[pl.BlockSpec((tm, kdim), lambda i: (i, 0)),
                  pl.BlockSpec((tm, kdim), lambda i: (i, 0)),
                  pl.BlockSpec(layer["w1"].shape, lambda i: (0, 0)),
                  pl.BlockSpec(layer["w2"].shape, lambda i: (0, 0)),
                  pl.BlockSpec(layer["b"].shape, lambda i: (0, 0))],
        out_specs=pl.BlockSpec((tm, n_out), lambda i: (i, 0)),
        compiler_params=pltpu.CompilerParams(
            dimension_semantics=("parallel",)),
        cost_estimate=cost,
    )(p1, p2, layer["w1"], layer["w2"], layer["b"])
    return out[:m].reshape(n, ho, wo, n_out)


# ----------------------------------------------------------------------------
# Parameter preparation (fold eval-mode BN, reorder / cast weights)
# ----------------------------------------------------------------------------
def _fold_bn(bn, eps=1e-5):
    gamma, beta, mean, var = bn
    scale = gamma / jnp.sqrt(var + eps)
    bias = beta - mean * scale
    return scale, bias


def _conv3x3_layer(w_oikk, bn):
    o, i, kh, kw = w_oikk.shape
    assert (kh, kw) == (3, 3)
    c_pad = _round_up(i, 8)
    scale, bias = _fold_bn(bn)
    w = jnp.transpose(w_oikk, (2, 3, 1, 0)) * scale[None, None, None, :]
    if c_pad != i:
        w = jnp.pad(w, ((0, 0), (0, 0), (0, c_pad - i), (0, 0)))
    return {
        "w": w.reshape(kh * kw * c_pad, o).astype(jnp.bfloat16),
        "b": bias.reshape(1, o).astype(jnp.float32),
        "c_pad": c_pad,
        "n_out": o,
    }


def _out_proj_layer(w_oikk, bn, hidden, k):
    o = w_oikk.shape[0]
    scale, bias = _fold_bn(bn)
    w = jnp.transpose(w_oikk, (2, 3, 1, 0)) * scale[None, None, None, :]
    return {
        "w1": w[:, :, :hidden, :].reshape(k * k * hidden, o).astype(jnp.bfloat16),
        "w2": w[:, :, hidden:, :].reshape(k * k * hidden, o).astype(jnp.bfloat16),
        "b": bias.reshape(1, o).astype(jnp.float32),
        "k": k,
        "n_out": o,
    }


def prepare_params(raw):
    hidden = raw["in_proj_w"].shape[0]
    return {
        "stride0": raw["stride0"],
        "stride1": raw["stride1"],
        "in_proj": _conv3x3_layer(raw["in_proj_w"], raw["in_proj_bn"]),
        "conv0": _conv3x3_layer(raw["conv0_w"], raw["conv0_bn"]),
        "conv1": _conv3x3_layer(raw["conv1_w"], raw["conv1_bn"]),
        "out_proj": _out_proj_layer(raw["out_proj_w"], raw["out_proj_bn"],
                                    hidden, raw["stride1"]),
    }


# ----------------------------------------------------------------------------
# Stem forward
# ----------------------------------------------------------------------------
def stem_forward(x_nchw, params):
    x = jnp.transpose(x_nchw, (0, 2, 3, 1)).astype(jnp.bfloat16)  # NCHW -> NHWC

    # in_proj: Conv3x3(stride=stride[0], pad=1) + BN + ReLU
    x = conv3x3_slab(x, params["in_proj"], stride=params["stride0"])

    # conv0 + pool fused (share the same 3 input slabs of the in_proj output):
    #   conv0: Conv3x3(s1,p1)+BN+ReLU ; pool: MaxPool2d(3, stride=1, padding=1)
    x1, x2 = conv3x3_slab(x, params["conv0"], stride=1, fuse_pool=True)

    # conv1: Conv3x3(s1,p1)+BN+ReLU
    x1 = conv3x3_slab(x1, params["conv1"], stride=1)

    # out_proj on [conv branch, pool branch] without materializing the concat
    y = out_proj_conv(x1, x2, params["out_proj"])

    return jnp.transpose(y, (0, 3, 1, 2))                         # NHWC -> NCHW


# ----------------------------------------------------------------------------
# Deterministic parameter init (shapes per Stem.__init__)
# ----------------------------------------------------------------------------
def init_params(key, in_ch, hidden_ch, out_ch, stride):
    keys = jax.random.split(key, 8)

    def conv_w(k, o, i, kh, kw):
        fan_in = i * kh * kw
        return jax.random.normal(k, (o, i, kh, kw), jnp.float32) / math.sqrt(fan_in)

    def bn(k, c):
        k1, k2, k3, k4 = jax.random.split(k, 4)
        gamma = jax.random.uniform(k1, (c,), jnp.float32, 0.5, 1.5)
        beta = 0.1 * jax.random.normal(k2, (c,), jnp.float32)
        mean = 0.1 * jax.random.normal(k3, (c,), jnp.float32)
        var = jax.random.uniform(k4, (c,), jnp.float32, 0.5, 1.5)
        return (gamma, beta, mean, var)

    half = hidden_ch // 2
    k1 = stride[1]
    return {
        "stride0": stride[0],
        "stride1": stride[1],
        "in_proj_w": conv_w(keys[0], hidden_ch, in_ch, 3, 3),
        "in_proj_bn": bn(keys[1], hidden_ch),
        "conv0_w": conv_w(keys[2], half, hidden_ch, 3, 3),
        "conv0_bn": bn(keys[3], half),
        "conv1_w": conv_w(keys[4], hidden_ch, half, 3, 3),
        "conv1_bn": bn(keys[5], hidden_ch),
        "out_proj_w": conv_w(keys[6], out_ch, hidden_ch * 2, k1, k1),
        "out_proj_bn": bn(keys[7], out_ch),
    }


if __name__ == "__main__":
    IN_CH, HIDDEN_CH, OUT_CH = 4, 16, 32
    STRIDE = (2, 2)

    key = jax.random.PRNGKey(0)
    kx, kp = jax.random.split(key)
    x = jax.random.normal(kx, (2, IN_CH, 16, 16), jnp.float32)  # NCHW like PyTorch
    raw = init_params(kp, IN_CH, HIDDEN_CH, OUT_CH, STRIDE)
    params = prepare_params(raw)

    fwd = jax.jit(lambda a: stem_forward(a, params))
    y = fwd(x)
    jax.block_until_ready(y)
    assert y.shape == (2, OUT_CH, 4, 4), y.shape
    assert y.dtype == jnp.float32
    print("KERNEL_OK")
</pallas_src>

<mosaic_0001>
module attributes {stable_mosaic.version = 11 : i64} {
  func.func @conv3x3_slab_kernel(%arg0: i32, %arg1: memref<144x8xbf16, #tpu.memory_space<vmem>>, %arg2: memref<144x8xbf16, #tpu.memory_space<vmem>>, %arg3: memref<144x8xbf16, #tpu.memory_space<vmem>>, %arg4: memref<72x16xbf16, #tpu.memory_space<vmem>>, %arg5: memref<1x16xf32, #tpu.memory_space<vmem>>, %arg6: memref<144x16xbf16, #tpu.memory_space<vmem>>) attributes {dimension_semantics = [#tpu.dimension_semantics<parallel>], iteration_bounds = array<i64: 2>, scalar_prefetch = 0 : i64, scratch_operands = 0 : i64, tpu.core_type = #tpu.core_type<tc>, window_params = [{transform_indices = @transform_0, window_bounds = array<i64: 144, 8>}, {transform_indices = @transform_1, window_bounds = array<i64: 144, 8>}, {transform_indices = @transform_2, window_bounds = array<i64: 144, 8>}, {pipeline_mode = #tpu.pipeline_mode<synchronous>, transform_indices = @transform_3, window_bounds = array<i64: 72, 16>}, {pipeline_mode = #tpu.pipeline_mode<synchronous>, transform_indices = @transform_4, window_bounds = array<i64: 1, 16>}, {transform_indices = @transform_5, window_bounds = array<i64: 144, 16>}]} {
    %c0 = arith.constant 0 : index
    %c0_0 = arith.constant 0 : index
    %0 = vector.load %arg1[%c0, %c0_0] : memref<144x8xbf16, #tpu.memory_space<vmem>>, vector<144x8xbf16>
    %c0_1 = arith.constant 0 : index
    %c0_2 = arith.constant 0 : index
    %1 = vector.load %arg2[%c0_1, %c0_2] : memref<144x8xbf16, #tpu.memory_space<vmem>>, vector<144x8xbf16>
    %c0_3 = arith.constant 0 : index
    %c0_4 = arith.constant 0 : index
    %2 = vector.load %arg3[%c0_3, %c0_4] : memref<144x8xbf16, #tpu.memory_space<vmem>>, vector<144x8xbf16>
    %c0_5 = arith.constant 0 : index
    %c0_6 = arith.constant 0 : index
    %3 = vector.load %arg4[%c0_5, %c0_6] : memref<72x16xbf16, #tpu.memory_space<vmem>>, vector<8x16xbf16>
    %cst = arith.constant dense<0.000000e+00> : vector<144x16xf32>
    %4 = tpu.matmul %0, %3, %cst {dimension_numbers = #tpu.dot_dimension_numbers<[1], [0], [0], [1], [0, 0, 1, 1], [], []>} : vector<144x8xbf16>, vector<8x16xbf16>, vector<144x16xf32> -> vector<144x16xf32>
    %c24 = arith.constant 24 : index
    %c0_7 = arith.constant 0 : index
    %5 = vector.load %arg4[%c24, %c0_7] : memref<72x16xbf16, #tpu.memory_space<vmem>>, vector<8x16xbf16>
    %cst_8 = arith.constant dense<0.000000e+00> : vector<144x16xf32>
    %6 = tpu.matmul %1, %5, %cst_8 {dimension_numbers = #tpu.dot_dimension_numbers<[1], [0], [0], [1], [0, 0, 1, 1], [], []>} : vector<144x8xbf16>, vector<8x16xbf16>, vector<144x16xf32> -> vector<144x16xf32>
    %7 = arith.addf %4, %6 : vector<144x16xf32>
    %c48 = arith.constant 48 : index
    %c0_9 = arith.constant 0 : index
    %8 = vector.load %arg4[%c48, %c0_9] : memref<72x16xbf16, #tpu.memory_space<vmem>>, vector<8x16xbf16>
    %cst_10 = arith.constant dense<0.000000e+00> : vector<144x16xf32>
    %9 = tpu.matmul %2, %8, %cst_10 {dimension_numbers = #tpu.dot_dimension_numbers<[1], [0], [0], [1], [0, 0, 1, 1], [], []>} : vector<144x8xbf16>, vector<8x16xbf16>, vector<144x16xf32> -> vector<144x16xf32>
    %10 = arith.addf %7, %9 : vector<144x16xf32>
    %c8 = arith.constant 8 : index
    %c0_11 = arith.constant 0 : index
    %11 = vector.load %arg4[%c8, %c0_11] : memref<72x16xbf16, #tpu.memory_space<vmem>>, vector<8x16xbf16>
    %cst_12 = arith.constant dense<0.000000e+00> : vector<144x16xf32>
    %12 = tpu.matmul %0, %11, %cst_12 {dimension_numbers = #tpu.dot_dimension_numbers<[1], [0], [0], [1], [0, 0, 1, 1], [], []>} : vector<144x8xbf16>, vector<8x16xbf16>, vector<144x16xf32> -> vector<144x16xf32>
    %c32 = arith.constant 32 : index
    %c0_13 = arith.constant 0 : index
    %13 = vector.load %arg4[%c32, %c0_13] : memref<72x16xbf16, #tpu.memory_space<vmem>>, vector<8x16xbf16>
    %cst_14 = arith.constant dense<0.000000e+00> : vector<144x16xf32>
    %14 = tpu.matmul %1, %13, %cst_14 {dimension_numbers = #tpu.dot_dimension_numbers<[1], [0], [0], [1], [0, 0, 1, 1], [], []>} : vector<144x8xbf16>, vector<8x16xbf16>, vector<144x16xf32> -> vector<144x16xf32>
    %15 = arith.addf %12, %14 : vector<144x16xf32>
    %c56 = arith.constant 56 : index
    %c0_15 = arith.constant 0 : index
    %16 = vector.load %arg4[%c56, %c0_15] : memref<72x16xbf16, #tpu.memory_space<vmem>>, vector<8x16xbf16>
    %cst_16 = arith.constant dense<0.000000e+00> : vector<144x16xf32>
    %17 = tpu.matmul %2, %16, %cst_16 {dimension_numbers = #tpu.dot_dimension_numbers<[1], [0], [0], [1], [0, 0, 1, 1], [], []>} : vector<144x8xbf16>, vector<8x16xbf16>, vector<144x16xf32> -> vector<144x16xf32>
    %18 = arith.addf %15, %17 : vector<144x16xf32>
    %cst_17 = arith.constant 0.000000e+00 : f32
    %19 = vector.broadcast %cst_17 : f32 to vector<1x16xf32>
    %20 = vector.extract_strided_slice %18 {offsets = [1, 0], sizes = [143, 16], strides = [1, 1]} : vector<144x16xf32> to vector<143x16xf32>
    %21 = tpu.concatenate %20, %19 in 0 : vector<143x16xf32>, vector<1x16xf32> -> vector<144x16xf32>
    %22 = arith.addf %10, %21 : vector<144x16xf32>
    %c16 = arith.constant 16 : index
    %c0_18 = arith.constant 0 : index
    %23 = vector.load %arg4[%c16, %c0_18] : memref<72x16xbf16, #tpu.memory_space<vmem>>, vector<8x16xbf16>
    %cst_19 = arith.constant dense<0.000000e+00> : vector<144x16xf32>
    %24 = tpu.matmul %0, %23, %cst_19 {dimension_numbers = #tpu.dot_dimension_numbers<[1], [0], [0], [1], [0, 0, 1, 1], [], []>} : vector<144x8xbf16>, vector<8x16xbf16>, vector<144x16xf32> -> vector<144x16xf32>
    %c40 = arith.constant 40 : index
    %c0_20 = arith.constant 0 : index
    %25 = vector.load %arg4[%c40, %c0_20] : memref<72x16xbf16, #tpu.memory_space<vmem>>, vector<8x16xbf16>
    %cst_21 = arith.constant dense<0.000000e+00> : vector<144x16xf32>
    %26 = tpu.matmul %1, %25, %cst_21 {dimension_numbers = #tpu.dot_dimension_numbers<[1], [0], [0], [1], [0, 0, 1, 1], [], []>} : vector<144x8xbf16>, vector<8x16xbf16>, vector<144x16xf32> -> vector<144x16xf32>
    %27 = arith.addf %24, %26 : vector<144x16xf32>
    %c64 = arith.constant 64 : index
    %c0_22 = arith.constant 0 : index
    %28 = vector.load %arg4[%c64, %c0_22] : memref<72x16xbf16, #tpu.memory_space<vmem>>, vector<8x16xbf16>
    %cst_23 = arith.constant dense<0.000000e+00> : vector<144x16xf32>
    %29 = tpu.matmul %2, %28, %cst_23 {dimension_numbers = #tpu.dot_dimension_numbers<[1], [0], [0], [1], [0, 0, 1, 1], [], []>} : vector<144x8xbf16>, vector<8x16xbf16>, vector<144x16xf32> -> vector<144x16xf32>
    %30 = arith.addf %27, %29 : vector<144x16xf32>
    %cst_24 = arith.constant 0.000000e+00 : f32
    %31 = vector.broadcast %cst_24 : f32 to vector<2x16xf32>
    %32 = vector.extract_strided_slice %30 {offsets = [2, 0], sizes = [142, 16], strides = [1, 1]} : vector<144x16xf32> to vector<142x16xf32>
    %33 = tpu.concatenate %32, %31 in 0 : vector<142x16xf32>, vector<2x16xf32> -> vector<144x16xf32>
    %34 = arith.addf %22, %33 : vector<144x16xf32>
    %c0_25 = arith.constant 0 : index
    %c0_26 = arith.constant 0 : index
    %35 = vector.load %arg5[%c0_25, %c0_26] : memref<1x16xf32, #tpu.memory_space<vmem>>, vector<1x16xf32>
    %36 = vector.broadcast %35 : vector<1x16xf32> to vector<144x16xf32>
    %37 = arith.addf %34, %36 : vector<144x16xf32>
    %cst_27 = arith.constant 0.000000e+00 : f32
    %38 = vector.broadcast %cst_27 : f32 to vector<144x16xf32>
    %39 = arith.maximumf %37, %38 : vector<144x16xf32>
    %40 = arith.truncf %39 : vector<144x16xf32> to vector<144x16xbf16>
    %c0_28 = arith.constant 0 : index
    %c0_29 = arith.constant 0 : index
    %41 = vector.load %arg6[%c0_28, %c0_29] : memref<144x16xbf16, #tpu.memory_space<vmem>>, vector<144x16xbf16>
    tpu.vector_store %arg6[%c0_28, %c0_29], %40 {strides = array<i32>} : memref<144x16xbf16, #tpu.memory_space<vmem>>, vector<144x16xbf16>,
    return
  }
  func.func @transform_0(%arg0: i32) -> (i32, i32) {
    %c0_i32 = arith.constant 0 : i32
    %c0_i32_0 = arith.constant 0 : i32
    return %arg0, %c0_i32 : i32, i32
  }
  func.func @transform_1(%arg0: i32) -> (i32, i32) {
    %c0_i32 = arith.constant 0 : i32
    %c0_i32_0 = arith.constant 0 : i32
    return %arg0, %c0_i32 : i32, i32
  }
  func.func @transform_2(%arg0: i32) -> (i32, i32) {
    %c0_i32 = arith.constant 0 : i32
    %c0_i32_0 = arith.constant 0 : i32
    return %arg0, %c0_i32 : i32, i32
  }
  func.func @transform_3(%arg0: i32) -> (i32, i32) {
    %c0_i32 = arith.constant 0 : i32
    %c0_i32_0 = arith.constant 0 : i32
    %c0_i32_1 = arith.constant 0 : i32
    return %c0_i32, %c0_i32_0 : i32, i32
  }
  func.func @transform_4(%arg0: i32) -> (i32, i32) {
    %c0_i32 = arith.constant 0 : i32
    %c0_i32_0 = arith.constant 0 : i32
    %c0_i32_1 = arith.constant 0 : i32
    return %c0_i32, %c0_i32_0 : i32, i32
  }
  func.func @transform_5(%arg0: i32) -> (i32, i32) {
    %c0_i32 = arith.constant 0 : i32
    %c0_i32_0 = arith.constant 0 : i32
    return %arg0, %c0_i32 : i32, i32
  }
}

module attributes {stable_mosaic.version = 11 : i64} {
  func.func @conv3x3_slab_kernel(%arg0: i32, %arg1: memref<80x16xbf16, #tpu.memory_space<vmem>>, %arg2: memref<80x16xbf16, #tpu.memory_space<vmem>>, %arg3: memref<80x16xbf16, #tpu.memory_space<vmem>>, %arg4: memref<144x8xbf16, #tpu.memory_space<vmem>>, %arg5: memref<1x8xf32, #tpu.memory_space<vmem>>, %arg6: memref<80x8xbf16, #tpu.memory_space<vmem>>, %arg7: memref<80x16xbf16, #tpu.memory_space<vmem>>) attributes {dimension_semantics = [#tpu.dimension_semantics<parallel>], iteration_bounds = array<i64: 2>, scalar_prefetch = 0 : i64, scratch_operands = 0 : i64, tpu.core_type = #tpu.core_type<tc>, window_params = [{transform_indices = @transform_0, window_bounds = array<i64: 80, 16>}, {transform_indices = @transform_1, window_bounds = array<i64: 80, 16>}, {transform_indices = @transform_2, window_bounds = array<i64: 80, 16>}, {pipeline_mode = #tpu.pipeline_mode<synchronous>, transform_indices = @transform_3, window_bounds = array<i64: 144, 8>}, {pipeline_mode = #tpu.pipeline_mode<synchronous>, transform_indices = @transform_4, window_bounds = array<i64: 1, 8>}, {transform_indices = @transform_5, window_bounds = array<i64: 80, 8>}, {transform_indices = @transform_6, window_bounds = array<i64: 80, 16>}]} {
    %c0 = arith.constant 0 : index
    %c0_0 = arith.constant 0 : index
    %0 = vector.load %arg1[%c0, %c0_0] : memref<80x16xbf16, #tpu.memory_space<vmem>>, vector<80x16xbf16>
    %c0_1 = arith.constant 0 : index
    %c0_2 = arith.constant 0 : index
    %1 = vector.load %arg2[%c0_1, %c0_2] : memref<80x16xbf16, #tpu.memory_space<vmem>>, vector<80x16xbf16>
    %c0_3 = arith.constant 0 : index
    %c0_4 = arith.constant 0 : index
    %2 = vector.load %arg3[%c0_3, %c0_4] : memref<80x16xbf16, #tpu.memory_space<vmem>>, vector<80x16xbf16>
    %c0_5 = arith.constant 0 : index
    %c0_6 = arith.constant 0 : index
    %3 = vector.load %arg4[%c0_5, %c0_6] : memref<144x8xbf16, #tpu.memory_space<vmem>>, vector<16x8xbf16>
    %cst = arith.constant dense<0.000000e+00> : vector<80x8xf32>
    %4 = tpu.matmul %0, %3, %cst {dimension_numbers = #tpu.dot_dimension_numbers<[1], [0], [0], [1], [0, 0, 1, 1], [], []>} : vector<80x16xbf16>, vector<16x8xbf16>, vector<80x8xf32> -> vector<80x8xf32>
    %c48 = arith.constant 48 : index
    %c0_7 = arith.constant 0 : index
    %5 = vector.load %arg4[%c48, %c0_7] : memref<144x8xbf16, #tpu.memory_space<vmem>>, vector<16x8xbf16>
    %cst_8 = arith.constant dense<0.000000e+00> : vector<80x8xf32>
    %6 = tpu.matmul %1, %5, %cst_8 {dimension_numbers = #tpu.dot_dimension_numbers<[1], [0], [0], [1], [0, 0, 1, 1], [], []>} : vector<80x16xbf16>, vector<16x8xbf16>, vector<80x8xf32> -> vector<80x8xf32>
    %7 = arith.addf %4, %6 : vector<80x8xf32>
    %c96 = arith.constant 96 : index
    %c0_9 = arith.constant 0 : index
    %8 = vector.load %arg4[%c96, %c0_9] : memref<144x8xbf16, #tpu.memory_space<vmem>>, vector<16x8xbf16>
    %cst_10 = arith.constant dense<0.000000e+00> : vector<80x8xf32>
    %9 = tpu.matmul %2, %8, %cst_10 {dimension_numbers = #tpu.dot_dimension_numbers<[1], [0], [0], [1], [0, 0, 1, 1], [], []>} : vector<80x16xbf16>, vector<16x8xbf16>, vector<80x8xf32> -> vector<80x8xf32>
    %10 = arith.addf %7, %9 : vector<80x8xf32>
    %c16 = arith.constant 16 : index
    %c0_11 = arith.constant 0 : index
    %11 = vector.load %arg4[%c16, %c0_11] : memref<144x8xbf16, #tpu.memory_space<vmem>>, vector<16x8xbf16>
    %cst_12 = arith.constant dense<0.000000e+00> : vector<80x8xf32>
    %12 = tpu.matmul %0, %11, %cst_12 {dimension_numbers = #tpu.dot_dimension_numbers<[1], [0], [0], [1], [0, 0, 1, 1], [], []>} : vector<80x16xbf16>, vector<16x8xbf16>, vector<80x8xf32> -> vector<80x8xf32>
    %c64 = arith.constant 64 : index
    %c0_13 = arith.constant 0 : index
    %13 = vector.load %arg4[%c64, %c0_13] : memref<144x8xbf16, #tpu.memory_space<vmem>>, vector<16x8xbf16>
    %cst_14 = arith.constant dense<0.000000e+00> : vector<80x8xf32>
    %14 = tpu.matmul %1, %13, %cst_14 {dimension_numbers = #tpu.dot_dimension_numbers<[1], [0], [0], [1], [0, 0, 1, 1], [], []>} : vector<80x16xbf16>, vector<16x8xbf16>, vector<80x8xf32> -> vector<80x8xf32>
    %15 = arith.addf %12, %14 : vector<80x8xf32>
    %c112 = arith.constant 112 : index
    %c0_15 = arith.constant 0 : index
    %16 = vector.load %arg4[%c112, %c0_15] : memref<144x8xbf16, #tpu.memory_space<vmem>>, vector<16x8xbf16>
    %cst_16 = arith.constant dense<0.000000e+00> : vector<80x8xf32>
    %17 = tpu.matmul %2, %16, %cst_16 {dimension_numbers = #tpu.dot_dimension_numbers<[1], [0], [0], [1], [0, 0, 1, 1], [], []>} : vector<80x16xbf16>, vector<16x8xbf16>, vector<80x8xf32> -> vector<80x8xf32>
    %18 = arith.addf %15, %17 : vector<80x8xf32>
    %cst_17 = arith.constant 0.000000e+00 : f32
    %19 = vector.broadcast %cst_17 : f32 to vector<1x8xf32>
    %20 = vector.extract_strided_slice %18 {offsets = [1, 0], sizes = [79, 8], strides = [1, 1]} : vector<80x8xf32> to vector<79x8xf32>
    %21 = tpu.concatenate %20, %19 in 0 : vector<79x8xf32>, vector<1x8xf32> -> vector<80x8xf32>
    %22 = arith.addf %10, %21 : vector<80x8xf32>
    %c32 = arith.constant 32 : index
    %c0_18 = arith.constant 0 : index
    %23 = vector.load %arg4[%c32, %c0_18] : memref<144x8xbf16, #tpu.memory_space<vmem>>, vector<16x8xbf16>
    %cst_19 = arith.constant dense<0.000000e+00> : vector<80x8xf32>
    %24 = tpu.matmul %0, %23, %cst_19 {dimension_numbers = #tpu.dot_dimension_numbers<[1], [0], [0], [1], [0, 0, 1, 1], [], []>} : vector<80x16xbf16>, vector<16x8xbf16>, vector<80x8xf32> -> vector<80x8xf32>
    %c80 = arith.constant 80 : index
    %c0_20 = arith.constant 0 : index
    %25 = vector.load %arg4[%c80, %c0_20] : memref<144x8xbf16, #tpu.memory_space<vmem>>, vector<16x8xbf16>
    %cst_21 = arith.constant dense<0.000000e+00> : vector<80x8xf32>
    %26 = tpu.matmul %1, %25, %cst_21 {dimension_numbers = #tpu.dot_dimension_numbers<[1], [0], [0], [1], [0, 0, 1, 1], [], []>} : vector<80x16xbf16>, vector<16x8xbf16>, vector<80x8xf32> -> vector<80x8xf32>
    %27 = arith.addf %24, %26 : vector<80x8xf32>
    %c128 = arith.constant 128 : index
    %c0_22 = arith.constant 0 : index
    %28 = vector.load %arg4[%c128, %c0_22] : memref<144x8xbf16, #tpu.memory_space<vmem>>, vector<16x8xbf16>
    %cst_23 = arith.constant dense<0.000000e+00> : vector<80x8xf32>
    %29 = tpu.matmul %2, %28, %cst_23 {dimension_numbers = #tpu.dot_dimension_numbers<[1], [0], [0], [1], [0, 0, 1, 1], [], []>} : vector<80x16xbf16>, vector<16x8xbf16>, vector<80x8xf32> -> vector<80x8xf32>
    %30 = arith.addf %27, %29 : vector<80x8xf32>
    %cst_24 = arith.constant 0.000000e+00 : f32
    %31 = vector.broadcast %cst_24 : f32 to vector<2x8xf32>
    %32 = vector.extract_strided_slice %30 {offsets = [2, 0], sizes = [78, 8], strides = [1, 1]} : vector<80x8xf32> to vector<78x8xf32>
    %33 = tpu.concatenate %32, %31 in 0 : vector<78x8xf32>, vector<2x8xf32> -> vector<80x8xf32>
    %34 = arith.addf %22, %33 : vector<80x8xf32>
    %c0_25 = arith.constant 0 : index
    %c0_26 = arith.constant 0 : index
    %35 = vector.load %arg5[%c0_25, %c0_26] : memref<1x8xf32, #tpu.memory_space<vmem>>, vector<1x8xf32>
    %36 = vector.broadcast %35 : vector<1x8xf32> to vector<80x8xf32>
    %37 = arith.addf %34, %36 : vector<80x8xf32>
    %cst_27 = arith.constant 0.000000e+00 : f32
    %38 = vector.broadcast %cst_27 : f32 to vector<80x8xf32>
    %39 = arith.maximumf %37, %38 : vector<80x8xf32>
    %40 = arith.truncf %39 : vector<80x8xf32> to vector<80x8xbf16>
    %c0_28 = arith.constant 0 : index
    %c0_29 = arith.constant 0 : index
    %41 = vector.load %arg6[%c0_28, %c0_29] : memref<80x8xbf16, #tpu.memory_space<vmem>>, vector<80x8xbf16>
    tpu.vector_store %arg6[%c0_28, %c0_29], %40 {strides = array<i32>} : memref<80x8xbf16, #tpu.memory_space<vmem>>, vector<80x8xbf16>,
    %42 = arith.maximumf %0, %1 : vector<80x16xbf16>
    %43 = arith.maximumf %42, %2 : vector<80x16xbf16>
    %44 = arith.extf %43 : vector<80x16xbf16> to vector<80x16xf32>
    %cst_30 = arith.constant 0.000000e+00 : f32
    %45 = vector.broadcast %cst_30 : f32 to vector<1x16xf32>
    %46 = vector.extract_strided_slice %44 {offsets = [1, 0], sizes = [79, 16], strides = [1, 1]} : vector<80x16xf32> to vector<79x16xf32>
    %47 = tpu.concatenate %46, %45 in 0 : vector<79x16xf32>, vector<1x16xf32> -> vector<80x16xf32>
    %48 = arith.maximumf %44, %47 : vector<80x16xf32>
    %cst_31 = arith.constant 0.000000e+00 : f32
    %49 = vector.broadcast %cst_31 : f32 to vector<2x16xf32>
    %50 = vector.extract_strided_slice %44 {offsets = [2, 0], sizes = [78, 16], strides = [1, 1]} : vector<80x16xf32> to vector<78x16xf32>
    %51 = tpu.concatenate %50, %49 in 0 : vector<78x16xf32>, vector<2x16xf32> -> vector<80x16xf32>
    %52 = arith.maximumf %48, %51 : vector<80x16xf32>
    %53 = arith.truncf %52 : vector<80x16xf32> to vector<80x16xbf16>
    %c0_32 = arith.constant 0 : index
    %c0_33 = arith.constant 0 : index
    %54 = vector.load %arg7[%c0_32, %c0_33] : memref<80x16xbf16, #tpu.memory_space<vmem>>, vector<80x16xbf16>
    tpu.vector_store %arg7[%c0_32, %c0_33], %53 {strides = array<i32>} : memref<80x16xbf16, #tpu.memory_space<vmem>>, vector<80x16xbf16>,
    return
  }
  func.func @transform_0(%arg0: i32) -> (i32, i32) {
    %c0_i32 = arith.constant 0 : i32
    %c0_i32_0 = arith.constant 0 : i32
    return %arg0, %c0_i32 : i32, i32
  }
  func.func @transform_1(%arg0: i32) -> (i32, i32) {
    %c0_i32 = arith.constant 0 : i32
    %c0_i32_0 = arith.constant 0 : i32
    return %arg0, %c0_i32 : i32, i32
  }
  func.func @transform_2(%arg0: i32) -> (i32, i32) {
    %c0_i32 = arith.constant 0 : i32
    %c0_i32_0 = arith.constant 0 : i32
    return %arg0, %c0_i32 : i32, i32
  }
  func.func @transform_3(%arg0: i32) -> (i32, i32) {
    %c0_i32 = arith.constant 0 : i32
    %c0_i32_0 = arith.constant 0 : i32
    %c0_i32_1 = arith.constant 0 : i32
    return %c0_i32, %c0_i32_0 : i32, i32
  }
  func.func @transform_4(%arg0: i32) -> (i32, i32) {
    %c0_i32 = arith.constant 0 : i32
    %c0_i32_0 = arith.constant 0 : i32
    %c0_i32_1 = arith.constant 0 : i32
    return %c0_i32, %c0_i32_0 : i32, i32
  }
  func.func @transform_5(%arg0: i32) -> (i32, i32) {
    %c0_i32 = arith.constant 0 : i32
    %c0_i32_0 = arith.constant 0 : i32
    return %arg0, %c0_i32 : i32, i32
  }
  func.func @transform_6(%arg0: i32) -> (i32, i32) {
    %c0_i32 = arith.constant 0 : i32
    %c0_i32_0 = arith.constant 0 : i32
    return %arg0, %c0_i32 : i32, i32
  }
}

module attributes {stable_mosaic.version = 11 : i64} {
  func.func @conv3x3_slab_kernel(%arg0: i32, %arg1: memref<80x8xbf16, #tpu.memory_space<vmem>>, %arg2: memref<80x8xbf16, #tpu.memory_space<vmem>>, %arg3: memref<80x8xbf16, #tpu.memory_space<vmem>>, %arg4: memref<72x16xbf16, #tpu.memory_space<vmem>>, %arg5: memref<1x16xf32, #tpu.memory_space<vmem>>, %arg6: memref<80x16xbf16, #tpu.memory_space<vmem>>) attributes {dimension_semantics = [#tpu.dimension_semantics<parallel>], iteration_bounds = array<i64: 2>, scalar_prefetch = 0 : i64, scratch_operands = 0 : i64, tpu.core_type = #tpu.core_type<tc>, window_params = [{transform_indices = @transform_0, window_bounds = array<i64: 80, 8>}, {transform_indices = @transform_1, window_bounds = array<i64: 80, 8>}, {transform_indices = @transform_2, window_bounds = array<i64: 80, 8>}, {pipeline_mode = #tpu.pipeline_mode<synchronous>, transform_indices = @transform_3, window_bounds = array<i64: 72, 16>}, {pipeline_mode = #tpu.pipeline_mode<synchronous>, transform_indices = @transform_4, window_bounds = array<i64: 1, 16>}, {transform_indices = @transform_5, window_bounds = array<i64: 80, 16>}]} {
    %c0 = arith.constant 0 : index
    %c0_0 = arith.constant 0 : index
    %0 = vector.load %arg1[%c0, %c0_0] : memref<80x8xbf16, #tpu.memory_space<vmem>>, vector<80x8xbf16>
    %c0_1 = arith.constant 0 : index
    %c0_2 = arith.constant 0 : index
    %1 = vector.load %arg2[%c0_1, %c0_2] : memref<80x8xbf16, #tpu.memory_space<vmem>>, vector<80x8xbf16>
    %c0_3 = arith.constant 0 : index
    %c0_4 = arith.constant 0 : index
    %2 = vector.load %arg3[%c0_3, %c0_4] : memref<80x8xbf16, #tpu.memory_space<vmem>>, vector<80x8xbf16>
    %c0_5 = arith.constant 0 : index
    %c0_6 = arith.constant 0 : index
    %3 = vector.load %arg4[%c0_5, %c0_6] : memref<72x16xbf16, #tpu.memory_space<vmem>>, vector<8x16xbf16>
    %cst = arith.constant dense<0.000000e+00> : vector<80x16xf32>
    %4 = tpu.matmul %0, %3, %cst {dimension_numbers = #tpu.dot_dimension_numbers<[1], [0], [0], [1], [0, 0, 1, 1], [], []>} : vector<80x8xbf16>, vector<8x16xbf16>, vector<80x16xf32> -> vector<80x16xf32>
    %c24 = arith.constant 24 : index
    %c0_7 = arith.constant 0 : index
    %5 = vector.load %arg4[%c24, %c0_7] : memref<72x16xbf16, #tpu.memory_space<vmem>>, vector<8x16xbf16>
    %cst_8 = arith.constant dense<0.000000e+00> : vector<80x16xf32>
    %6 = tpu.matmul %1, %5, %cst_8 {dimension_numbers = #tpu.dot_dimension_numbers<[1], [0], [0], [1], [0, 0, 1, 1], [], []>} : vector<80x8xbf16>, vector<8x16xbf16>, vector<80x16xf32> -> vector<80x16xf32>
    %7 = arith.addf %4, %6 : vector<80x16xf32>
    %c48 = arith.constant 48 : index
    %c0_9 = arith.constant 0 : index
    %8 = vector.load %arg4[%c48, %c0_9] : memref<72x16xbf16, #tpu.memory_space<vmem>>, vector<8x16xbf16>
    %cst_10 = arith.constant dense<0.000000e+00> : vector<80x16xf32>
    %9 = tpu.matmul %2, %8, %cst_10 {dimension_numbers = #tpu.dot_dimension_numbers<[1], [0], [0], [1], [0, 0, 1, 1], [], []>} : vector<80x8xbf16>, vector<8x16xbf16>, vector<80x16xf32> -> vector<80x16xf32>
    %10 = arith.addf %7, %9 : vector<80x16xf32>
    %c8 = arith.constant 8 : index
    %c0_11 = arith.constant 0 : index
    %11 = vector.load %arg4[%c8, %c0_11] : memref<72x16xbf16, #tpu.memory_space<vmem>>, vector<8x16xbf16>
    %cst_12 = arith.constant dense<0.000000e+00> : vector<80x16xf32>
    %12 = tpu.matmul %0, %11, %cst_12 {dimension_numbers = #tpu.dot_dimension_numbers<[1], [0], [0], [1], [0, 0, 1, 1], [], []>} : vector<80x8xbf16>, vector<8x16xbf16>, vector<80x16xf32> -> vector<80x16xf32>
    %c32 = arith.constant 32 : index
    %c0_13 = arith.constant 0 : index
    %13 = vector.load %arg4[%c32, %c0_13] : memref<72x16xbf16, #tpu.memory_space<vmem>>, vector<8x16xbf16>
    %cst_14 = arith.constant dense<0.000000e+00> : vector<80x16xf32>
    %14 = tpu.matmul %1, %13, %cst_14 {dimension_numbers = #tpu.dot_dimension_numbers<[1], [0], [0], [1], [0, 0, 1, 1], [], []>} : vector<80x8xbf16>, vector<8x16xbf16>, vector<80x16xf32> -> vector<80x16xf32>
    %15 = arith.addf %12, %14 : vector<80x16xf32>
    %c56 = arith.constant 56 : index
    %c0_15 = arith.constant 0 : index
    %16 = vector.load %arg4[%c56, %c0_15] : memref<72x16xbf16, #tpu.memory_space<vmem>>, vector<8x16xbf16>
    %cst_16 = arith.constant dense<0.000000e+00> : vector<80x16xf32>
    %17 = tpu.matmul %2, %16, %cst_16 {dimension_numbers = #tpu.dot_dimension_numbers<[1], [0], [0], [1], [0, 0, 1, 1], [], []>} : vector<80x8xbf16>, vector<8x16xbf16>, vector<80x16xf32> -> vector<80x16xf32>
    %18 = arith.addf %15, %17 : vector<80x16xf32>
    %cst_17 = arith.constant 0.000000e+00 : f32
    %19 = vector.broadcast %cst_17 : f32 to vector<1x16xf32>
    %20 = vector.extract_strided_slice %18 {offsets = [1, 0], sizes = [79, 16], strides = [1, 1]} : vector<80x16xf32> to vector<79x16xf32>
    %21 = tpu.concatenate %20, %19 in 0 : vector<79x16xf32>, vector<1x16xf32> -> vector<80x16xf32>
    %22 = arith.addf %10, %21 : vector<80x16xf32>
    %c16 = arith.constant 16 : index
    %c0_18 = arith.constant 0 : index
    %23 = vector.load %arg4[%c16, %c0_18] : memref<72x16xbf16, #tpu.memory_space<vmem>>, vector<8x16xbf16>
    %cst_19 = arith.constant dense<0.000000e+00> : vector<80x16xf32>
    %24 = tpu.matmul %0, %23, %cst_19 {dimension_numbers = #tpu.dot_dimension_numbers<[1], [0], [0], [1], [0, 0, 1, 1], [], []>} : vector<80x8xbf16>, vector<8x16xbf16>, vector<80x16xf32> -> vector<80x16xf32>
    %c40 = arith.constant 40 : index
    %c0_20 = arith.constant 0 : index
    %25 = vector.load %arg4[%c40, %c0_20] : memref<72x16xbf16, #tpu.memory_space<vmem>>, vector<8x16xbf16>
    %cst_21 = arith.constant dense<0.000000e+00> : vector<80x16xf32>
    %26 = tpu.matmul %1, %25, %cst_21 {dimension_numbers = #tpu.dot_dimension_numbers<[1], [0], [0], [1], [0, 0, 1, 1], [], []>} : vector<80x8xbf16>, vector<8x16xbf16>, vector<80x16xf32> -> vector<80x16xf32>
    %27 = arith.addf %24, %26 : vector<80x16xf32>
    %c64 = arith.constant 64 : index
    %c0_22 = arith.constant 0 : index
    %28 = vector.load %arg4[%c64, %c0_22] : memref<72x16xbf16, #tpu.memory_space<vmem>>, vector<8x16xbf16>
    %cst_23 = arith.constant dense<0.000000e+00> : vector<80x16xf32>
    %29 = tpu.matmul %2, %28, %cst_23 {dimension_numbers = #tpu.dot_dimension_numbers<[1], [0], [0], [1], [0, 0, 1, 1], [], []>} : vector<80x8xbf16>, vector<8x16xbf16>, vector<80x16xf32> -> vector<80x16xf32>
    %30 = arith.addf %27, %29 : vector<80x16xf32>
    %cst_24 = arith.constant 0.000000e+00 : f32
    %31 = vector.broadcast %cst_24 : f32 to vector<2x16xf32>
    %32 = vector.extract_strided_slice %30 {offsets = [2, 0], sizes = [78, 16], strides = [1, 1]} : vector<80x16xf32> to vector<78x16xf32>
    %33 = tpu.concatenate %32, %31 in 0 : vector<78x16xf32>, vector<2x16xf32> -> vector<80x16xf32>
    %34 = arith.addf %22, %33 : vector<80x16xf32>
    %c0_25 = arith.constant 0 : index
    %c0_26 = arith.constant 0 : index
    %35 = vector.load %arg5[%c0_25, %c0_26] : memref<1x16xf32, #tpu.memory_space<vmem>>, vector<1x16xf32>
    %36 = vector.broadcast %35 : vector<1x16xf32> to vector<80x16xf32>
    %37 = arith.addf %34, %36 : vector<80x16xf32>
    %cst_27 = arith.constant 0.000000e+00 : f32
    %38 = vector.broadcast %cst_27 : f32 to vector<80x16xf32>
    %39 = arith.maximumf %37, %38 : vector<80x16xf32>
    %40 = arith.truncf %39 : vector<80x16xf32> to vector<80x16xbf16>
    %c0_28 = arith.constant 0 : index
    %c0_29 = arith.constant 0 : index
    %41 = vector.load %arg6[%c0_28, %c0_29] : memref<80x16xbf16, #tpu.memory_space<vmem>>, vector<80x16xbf16>
    tpu.vector_store %arg6[%c0_28, %c0_29], %40 {strides = array<i32>} : memref<80x16xbf16, #tpu.memory_space<vmem>>, vector<80x16xbf16>,
    return
  }
  func.func @transform_0(%arg0: i32) -> (i32, i32) {
    %c0_i32 = arith.constant 0 : i32
    %c0_i32_0 = arith.constant 0 : i32
    return %arg0, %c0_i32 : i32, i32
  }
  func.func @transform_1(%arg0: i32) -> (i32, i32) {
    %c0_i32 = arith.constant 0 : i32
    %c0_i32_0 = arith.constant 0 : i32
    return %arg0, %c0_i32 : i32, i32
  }
  func.func @transform_2(%arg0: i32) -> (i32, i32) {
    %c0_i32 = arith.constant 0 : i32
    %c0_i32_0 = arith.constant 0 : i32
    return %arg0, %c0_i32 : i32, i32
  }
  func.func @transform_3(%arg0: i32) -> (i32, i32) {
    %c0_i32 = arith.constant 0 : i32
    %c0_i32_0 = arith.constant 0 : i32
    %c0_i32_1 = arith.constant 0 : i32
    return %c0_i32, %c0_i32_0 : i32, i32
  }
  func.func @transform_4(%arg0: i32) -> (i32, i32) {
    %c0_i32 = arith.constant 0 : i32
    %c0_i32_0 = arith.constant 0 : i32
    %c0_i32_1 = arith.constant 0 : i32
    return %c0_i32, %c0_i32_0 : i32, i32
  }
  func.func @transform_5(%arg0: i32) -> (i32, i32) {
    %c0_i32 = arith.constant 0 : i32
    %c0_i32_0 = arith.constant 0 : i32
    return %arg0, %c0_i32 : i32, i32
  }
}

module attributes {stable_mosaic.version = 11 : i64} {
  func.func @dual_matmul_bias_relu_kernel(%arg0: i32, %arg1: memref<16x64xbf16, #tpu.memory_space<vmem>>, %arg2: memref<16x64xbf16, #tpu.memory_space<vmem>>, %arg3: memref<64x32xbf16, #tpu.memory_space<vmem>>, %arg4: memref<64x32xbf16, #tpu.memory_space<vmem>>, %arg5: memref<1x32xf32, #tpu.memory_space<vmem>>, %arg6: memref<16x32xf32, #tpu.memory_space<vmem>>) attributes {dimension_semantics = [#tpu.dimension_semantics<parallel>], iteration_bounds = array<i64: 2>, scalar_prefetch = 0 : i64, scratch_operands = 0 : i64, tpu.core_type = #tpu.core_type<tc>, window_params = [{transform_indices = @transform_0, window_bounds = array<i64: 16, 64>}, {transform_indices = @transform_1, window_bounds = array<i64: 16, 64>}, {pipeline_mode = #tpu.pipeline_mode<synchronous>, transform_indices = @transform_2, window_bounds = array<i64: 64, 32>}, {pipeline_mode = #tpu.pipeline_mode<synchronous>, transform_indices = @transform_3, window_bounds = array<i64: 64, 32>}, {pipeline_mode = #tpu.pipeline_mode<synchronous>, transform_indices = @transform_4, window_bounds = array<i64: 1, 32>}, {transform_indices = @transform_5, window_bounds = array<i64: 16, 32>}]} {
    %c0 = arith.constant 0 : index
    %c0_0 = arith.constant 0 : index
    %0 = vector.load %arg1[%c0, %c0_0] : memref<16x64xbf16, #tpu.memory_space<vmem>>, vector<16x64xbf16>
    %c0_1 = arith.constant 0 : index
    %c0_2 = arith.constant 0 : index
    %1 = vector.load %arg3[%c0_1, %c0_2] : memref<64x32xbf16, #tpu.memory_space<vmem>>, vector<64x32xbf16>
    %cst = arith.constant dense<0.000000e+00> : vector<16x32xf32>
    %2 = tpu.matmul %0, %1, %cst {dimension_numbers = #tpu.dot_dimension_numbers<[1], [0], [0], [1], [0, 0, 1, 1], [], []>} : vector<16x64xbf16>, vector<64x32xbf16>, vector<16x32xf32> -> vector<16x32xf32>
    %c0_3 = arith.constant 0 : index
    %c0_4 = arith.constant 0 : index
    %3 = vector.load %arg2[%c0_3, %c0_4] : memref<16x64xbf16, #tpu.memory_space<vmem>>, vector<16x64xbf16>
    %c0_5 = arith.constant 0 : index
    %c0_6 = arith.constant 0 : index
    %4 = vector.load %arg4[%c0_5, %c0_6] : memref<64x32xbf16, #tpu.memory_space<vmem>>, vector<64x32xbf16>
    %cst_7 = arith.constant dense<0.000000e+00> : vector<16x32xf32>
    %5 = tpu.matmul %3, %4, %cst_7 {dimension_numbers = #tpu.dot_dimension_numbers<[1], [0], [0], [1], [0, 0, 1, 1], [], []>} : vector<16x64xbf16>, vector<64x32xbf16>, vector<16x32xf32> -> vector<16x32xf32>
    %6 = arith.addf %2, %5 : vector<16x32xf32>
    %c0_8 = arith.constant 0 : index
    %c0_9 = arith.constant 0 : index
    %7 = vector.load %arg5[%c0_8, %c0_9] : memref<1x32xf32, #tpu.memory_space<vmem>>, vector<1x32xf32>
    %8 = vector.broadcast %7 : vector<1x32xf32> to vector<16x32xf32>
    %9 = arith.addf %6, %8 : vector<16x32xf32>
    %cst_10 = arith.constant 0.000000e+00 : f32
    %10 = vector.broadcast %cst_10 : f32 to vector<16x32xf32>
    %11 = arith.maximumf %9, %10 : vector<16x32xf32>
    %c0_11 = arith.constant 0 : index
    %c0_12 = arith.constant 0 : index
    %12 = vector.load %arg6[%c0_11, %c0_12] : memref<16x32xf32, #tpu.memory_space<vmem>>, vector<16x32xf32>
    tpu.vector_store %arg6[%c0_11, %c0_12], %11 {strides = array<i32>} : memref<16x32xf32, #tpu.memory_space<vmem>>, vector<16x32xf32>,
    return
  }
  func.func @transform_0(%arg0: i32) -> (i32, i32) {
    %c0_i32 = arith.constant 0 : i32
    %c0_i32_0 = arith.constant 0 : i32
    return %arg0, %c0_i32 : i32, i32
  }
  func.func @transform_1(%arg0: i32) -> (i32, i32) {
    %c0_i32 = arith.constant 0 : i32
    %c0_i32_0 = arith.constant 0 : i32
    return %arg0, %c0_i32 : i32, i32
  }
  func.func @transform_2(%arg0: i32) -> (i32, i32) {
    %c0_i32 = arith.constant 0 : i32
    %c0_i32_0 = arith.constant 0 : i32
    %c0_i32_1 = arith.constant 0 : i32
    return %c0_i32, %c0_i32_0 : i32, i32
  }
  func.func @transform_3(%arg0: i32) -> (i32, i32) {
    %c0_i32 = arith.constant 0 : i32
    %c0_i32_0 = arith.constant 0 : i32
    %c0_i32_1 = arith.constant 0 : i32
    return %c0_i32, %c0_i32_0 : i32, i32
  }
  func.func @transform_4(%arg0: i32) -> (i32, i32) {
    %c0_i32 = arith.constant 0 : i32
    %c0_i32_0 = arith.constant 0 : i32
    %c0_i32_1 = arith.constant 0 : i32
    return %c0_i32, %c0_i32_0 : i32, i32
  }
  func.func @transform_5(%arg0: i32) -> (i32, i32) {
    %c0_i32 = arith.constant 0 : i32
    %c0_i32_0 = arith.constant 0 : i32
    return %arg0, %c0_i32 : i32, i32
  }
}

</mosaic_0001>

<llo_original>
// kernel: _lambda_.4
$region0: #{_lambda_.4}
  #allocation0 [shape = 'u32[]', space=smem, size = 0x4, offset = 0x4, fixed_abs, tag = 'smem constant byte address 0x4 - core index']
  #allocation1 [shape = 'u32[144,128]{1,0:T(1,128)}', space=vmem, size = 0x12000, scoped, tag = 'internal scratch']
  %s0 = inlined_call_operand.vmem [shape: bf16[288,8], index: 0, kind: input, shape index: {}]
  %s1 = inlined_call_operand.vmem [shape: bf16[288,8], index: 1, kind: input, shape index: {}]
  %s2 = inlined_call_operand.vmem [shape: bf16[288,8], index: 2, kind: input, shape index: {}]
  %s3 = inlined_call_operand.vmem [shape: bf16[72,16], index: 3, kind: input, shape index: {}]
  %s4 = inlined_call_operand.vmem [shape: f32[1,16], index: 4, kind: input, shape index: {}]
  %s5 = inlined_call_operand.vmem [shape: bf16[288,16], index: 5, kind: output, shape index: {}]
  %s6 = sld [smem:[#allocation0]]
  $region53: #{_lambda_.4} parent=0
    _
  %s8 = ssub.s32 1, %s6
  %s9 = scalar_select 0, %s8, %s6
  loop: start=0, step=1, limit=4
  $region2: #{_lambda_.4} parent=0 // loop_pre_header
    _
  $region3: #{_lambda_.4} parent=0 // loop_header
    %s11 = sphi 0, %s15
    %p12 = scmp.ge.s32.totalorder %s11, 4
    %s21 = sphi 0, %s23
    %s24 = sphi 0, %s21
    %s25 = sphi 0, %s24
    %s41 = sphi 0, %s25
    %s47 = sphi 0, %s49
    %s50 = sphi 0, %s47
    %s51 = sphi 0, %s50
    %s67 = sphi 0, %s51
    %s73 = sphi 0, %s75
    %s76 = sphi 0, %s73
    %s77 = sphi 0, %s76
    %s93 = sphi 0, %s77
    %s97 = sphi 0, %s97
    %s99 = sphi 0, %s97
    %s100 = sphi 0, %s99
    %s114 = sphi 0, %s100
    %s118 = sphi 0, %s118
    %s120 = sphi 0, %s118
    %s121 = sphi 0, %s120
    %s135 = sphi 0, %s121
    %s141 = sphi 0, %s143
    %s144 = sphi 0, %s141
    %s145 = sphi 0, %s144
    %s161 = sphi 0, %s145
  $region4: #{_lambda_.4} parent=0 // loop_header_branch
    %14 = sbr.rel (%p12) target = $region8
  $region5: #{_lambda_.4} parent=0 // loop_body
    %s16 = ssub.s32 %s11, 1
    %s17 = ssub.s32 %s11, 2
    %s18 = sadd.s32 %s11, 1
    %s19 = ssub.s32 %s11, %s18
    %p20 = scmp.eq.s32.totalorder %s19, 0
    %s22 = sadd.s32 %s21, 1
    %s23 = scalar_select %p20, %s21, %s22
    %p26 = pneg %p20
    %p27 = scmp.eq.s32.totalorder %s11, 1
    %p28 = por %p26, %p27
    %p29 = scmp.ne.s32.totalorder %s21, %s24
    %p30 = scmp.eq.s32.totalorder %s11, 0
    %p31 = por %p29, %p30
    %p32 = scmp.ne.s32.totalorder %s21, %s24
    %p33 = scmp.eq.s32.totalorder %s16, 1
    %p34 = por %p32, %p33
    %p35 = scmp.ne.s32.totalorder %s24, %s25
    %p36 = scmp.eq.s32.totalorder %s16, 0
    %p37 = por %p35, %p36
    %p38 = scmp.ne.s32.totalorder %s24, %s25
    %p39 = scmp.eq.s32.totalorder %s17, 1
    %p40 = por %p38, %p39
    %p42 = scmp.ne.s32.totalorder %s25, %s41
    %p43 = scmp.eq.s32.totalorder %s17, 0
    %p44 = por %p42, %p43
    %s45 = ssub.s32 %s11, %s18
    %p46 = scmp.eq.s32.totalorder %s45, 0
    %s48 = sadd.s32 %s47, 1
    %s49 = scalar_select %p46, %s47, %s48
    %p52 = pneg %p46
    %p53 = scmp.eq.s32.totalorder %s11, 1
    %p54 = por %p52, %p53
    %p55 = scmp.ne.s32.totalorder %s47, %s50
    %p56 = scmp.eq.s32.totalorder %s11, 0
    %p57 = por %p55, %p56
    %p58 = scmp.ne.s32.totalorder %s47, %s50
    %p59 = scmp.eq.s32.totalorder %s16, 1
    %p60 = por %p58, %p59
    %p61 = scmp.ne.s32.totalorder %s50, %s51
    %p62 = scmp.eq.s32.totalorder %s16, 0
    %p63 = por %p61, %p62
    %p64 = scmp.ne.s32.totalorder %s50, %s51
    %p65 = scmp.eq.s32.totalorder %s17, 1
    %p66 = por %p64, %p65
    %p68 = scmp.ne.s32.totalorder %s51, %s67
    %p69 = scmp.eq.s32.totalorder %s17, 0
    %p70 = por %p68, %p69
    %s71 = ssub.s32 %s11, %s18
    %p72 = scmp.eq.s32.totalorder %s71, 0
    %s74 = sadd.s32 %s73, 1
    %s75 = scalar_select %p72, %s73, %s74
    %p78 = pneg %p72
    %p79 = scmp.eq.s32.totalorder %s11, 1
    %p80 = por %p78, %p79
    %p81 = scmp.ne.s32.totalorder %s73, %s76
    %p82 = scmp.eq.s32.totalorder %s11, 0
    %p83 = por %p81, %p82
    %p84 = scmp.ne.s32.totalorder %s73, %s76
    %p85 = scmp.eq.s32.totalorder %s16, 1
    %p86 = por %p84, %p85
    %p87 = scmp.ne.s32.totalorder %s76, %s77
    %p88 = scmp.eq.s32.totalorder %s16, 0
    %p89 = por %p87, %p88
    %p90 = scmp.ne.s32.totalorder %s76, %s77
    %p91 = scmp.eq.s32.totalorder %s17, 1
    %p92 = por %p90, %p91
    %p94 = scmp.ne.s32.totalorder %s77, %s93
    %p95 = scmp.eq.s32.totalorder %s17, 0
    %p96 = por %p94, %p95
    %s98 = sadd.s32 %s97, 1
    %p101 = scmp.eq.s32.totalorder %s11, 1
    %p102 = scmp.ne.s32.totalorder %s97, %s99
    %p103 = scmp.eq.s32.totalorder %s11, 0
    %p104 = por %p102, %p103
    %p105 = scmp.ne.s32.totalorder %s97, %s99
    %p106 = scmp.eq.s32.totalorder %s16, 1
    %p107 = por %p105, %p106
    %p108 = scmp.ne.s32.totalorder %s99, %s100
    %p109 = scmp.eq.s32.totalorder %s16, 0
    %p110 = por %p108, %p109
    %p111 = scmp.ne.s32.totalorder %s99, %s100
    %p112 = scmp.eq.s32.totalorder %s17, 1
    %p113 = por %p111, %p112
    %p115 = scmp.ne.s32.totalorder %s100, %s114
    %p116 = scmp.eq.s32.totalorder %s17, 0
    %p117 = por %p115, %p116
    %s119 = sadd.s32 %s118, 1
    %p122 = scmp.eq.s32.totalorder %s11, 1
    %p123 = scmp.ne.s32.totalorder %s118, %s120
    %p124 = scmp.eq.s32.totalorder %s11, 0
    %p125 = por %p123, %p124
    %p126 = scmp.ne.s32.totalorder %s118, %s120
    %p127 = scmp.eq.s32.totalorder %s16, 1
    %p128 = por %p126, %p127
    %p129 = scmp.ne.s32.totalorder %s120, %s121
    %p130 = scmp.eq.s32.totalorder %s16, 0
    %p131 = por %p129, %p130
    %p132 = scmp.ne.s32.totalorder %s120, %s121
    %p133 = scmp.eq.s32.totalorder %s17, 1
    %p134 = por %p132, %p133
    %p136 = scmp.ne.s32.totalorder %s121, %s135
    %p137 = scmp.eq.s32.totalorder %s17, 0
    %p138 = por %p136, %p137
    %s139 = ssub.s32 %s11, %s18
    %p140 = scmp.eq.s32.totalorder %s139, 0
    %s142 = sadd.s32 %s141, 1
    %s143 = scalar_select %p140, %s141, %s142
    %p146 = pneg %p140
    %p147 = scmp.eq.s32.totalorder %s11, 1
    %p148 = por %p146, %p147
    %p149 = scmp.ne.s32.totalorder %s141, %s144
    %p150 = scmp.eq.s32.totalorder %s11, 0
    %p151 = por %p149, %p150
    %p152 = scmp.ne.s32.totalorder %s141, %s144
    %p153 = scmp.eq.s32.totalorder %s16, 1
    %p154 = por %p152, %p153
    %p155 = scmp.ne.s32.totalorder %s144, %s145
    %p156 = scmp.eq.s32.totalorder %s16, 0
    %p157 = por %p155, %p156
    %p158 = scmp.ne.s32.totalorder %s144, %s145
    %p159 = scmp.eq.s32.totalorder %s17, 1
    %p160 = por %p158, %p159
    %p162 = scmp.ne.s32.totalorder %s145, %s161
    %p163 = scmp.eq.s32.totalorder %s17, 0
    %p164 = por %p162, %p163
    %p165 = scmp.le.s32.totalorder 1, %s11
    %p166 = scmp.lt.s32.totalorder %s11, 3
    %p167 = pnand %p165, %p166
    %p168 = pneg %p167
    // Predicated region
    $region9: #{_lambda_.4} parent=5 // pred_check
      _
    $region10: #{_lambda_.4} parent=5 // pred_check_branch
      %170 = sbr.rel (%p167) target = $region12
    $region11: #{_lambda_.4} parent=5 // pred_region
      %s171 = ssub.s32 %s11, 1
      // Predicated region
      $region13: #{_lambda_.4} parent=11 // pred_check
        %p172 = pneg %p110
      $region14: #{_lambda_.4} parent=11 // pred_check_branch
        %174 = sbr.rel (%p172) target = $region16
      $region15: #{_lambda_.4} parent=11 // pred_region
        _
      $region16: #{_lambda_.4} parent=11 // pred_fallthru
        _
      // Predicated region
      $region17: #{_lambda_.4} parent=11 // pred_check
        %p175 = pneg %p131
      $region18: #{_lambda_.4} parent=11 // pred_check_branch
        %177 = sbr.rel (%p175) target = $region20
      $region19: #{_lambda_.4} parent=11 // pred_region
        _
      $region20: #{_lambda_.4} parent=11 // pred_fallthru
        _
    $region12: #{_lambda_.4} parent=5 // pred_fallthru
      _
    %p178 = scmp.lt.s32.totalorder %s11, 2
    // Predicated region
    $region21: #{_lambda_.4} parent=5 // pred_check
      %p179 = pneg %p178
    $region22: #{_lambda_.4} parent=5 // pred_check_branch
      %181 = sbr.rel (%p179) target = $region24
    $region23: #{_lambda_.4} parent=5 // pred_region
      // Predicated region
      $region25: #{_lambda_.4} parent=23 // pred_check
        %p182 = pneg %p31
      $region26: #{_lambda_.4} parent=23 // pred_check_branch
        %184 = sbr.rel (%p182) target = $region28
      $region27: #{_lambda_.4} parent=23 // pred_region
        %s185 = smul.u32 18, %s11
        %p186 = scmp.lt.s32.totalorder %s185, 35
        %s187 = scalar_select %p186, %s185, 35
        %s188 = smul.addr %s187, 4
        %s189 = scalar_lea.vmem %s0, %s188
        %s190 = smul.u32 18, %s11
      $region28: #{_lambda_.4} parent=23 // pred_fallthru
        _
      // Predicated region
      $region29: #{_lambda_.4} parent=23 // pred_check
        %p191 = pneg %p57
      $region30: #{_lambda_.4} parent=23 // pred_check_branch
        %193 = sbr.rel (%p191) target = $region32
      $region31: #{_lambda_.4} parent=23 // pred_region
        %s194 = smul.u32 18, %s11
        %p195 = scmp.lt.s32.totalorder %s194, 35
        %s196 = scalar_select %p195, %s194, 35
        %s197 = smul.addr %s196, 4
        %s198 = scalar_lea.vmem %s1, %s197
        %s199 = smul.u32 18, %s11
      $region32: #{_lambda_.4} parent=23 // pred_fallthru
        _
      // Predicated region
      $region33: #{_lambda_.4} parent=23 // pred_check
        %p200 = pneg %p83
      $region34: #{_lambda_.4} parent=23 // pred_check_branch
        %202 = sbr.rel (%p200) target = $region36
      $region35: #{_lambda_.4} parent=23 // pred_region
        %s203 = smul.u32 18, %s11
        %p204 = scmp.lt.s32.totalorder %s203, 35
        %s205 = scalar_select %p204, %s203, 35
        %s206 = smul.addr %s205, 4
        %s207 = scalar_lea.vmem %s2, %s206
        %s208 = smul.u32 18, %s11
      $region36: #{_lambda_.4} parent=23 // pred_fallthru
        _
    $region24: #{_lambda_.4} parent=5 // pred_fallthru
      _
    %p209 = scmp.le.s32.totalorder 1, %s11
    %p210 = scmp.lt.s32.totalorder %s11, 3
    %p211 = pnand %p209, %p210
    %p212 = pneg %p211
    // Predicated region
    $region37: #{_lambda_.4} parent=5 // pred_check
      _
    $region38: #{_lambda_.4} parent=5 // pred_check_branch
      %214 = sbr.rel (%p211) target = $region40
    $region39: #{_lambda_.4} parent=5 // pred_region
      %s215 = ssub.s32 %s11, 1
      %s216 = smul.u32 18, %s16
      %p217 = scmp.lt.s32.totalorder %s216, 35
      %s218 = scalar_select %p217, %s216, 35
      %s219 = smul.addr %s218, 4
      %s220 = scalar_lea.vmem %s0, %s219
      %p221 = pneg %p37
      %p222 = pneg %p34
      %s223 = smul.u32 18, %s16
      %p224 = scmp.lt.s32.totalorder %s223, 35
      %s225 = scalar_select %p224, %s223, 35
      %s226 = smul.addr %s225, 4
      %s227 = scalar_lea.vmem %s1, %s226
      %p228 = pneg %p63
      %p229 = pneg %p60
      %s230 = smul.u32 18, %s16
      %p231 = scmp.lt.s32.totalorder %s230, 35
      %s232 = scalar_select %p231, %s230, 35
      %s233 = smul.addr %s232, 4
      %s234 = scalar_lea.vmem %s2, %s233
      %p235 = pneg %p89
      %p236 = pneg %p86
      %p237 = pneg %p110
      %p238 = pneg %p107
      %p239 = pneg %p131
      %p240 = pneg %p128
      %p241 = pneg %p157
      %p242 = pneg %p154
      %s243 = smul.u32 18, %s16
      %p244 = scmp.lt.s32.totalorder %s243, 35
      %s245 = scalar_select %p244, %s243, 35
      %s246 = smul.addr %s245, 4
      %s247 = scalar_lea.vmem %s5, %s246
      %s248 = smul.u32 18, %s16
      %p249 = scmp.lt.s32.totalorder %s248, 35
      %s250 = scalar_select %p249, %s248, 35
      %s251 = smul.addr %s250, 4
      %s252 = scalar_lea.vmem %s0, %s251
      %s253 = smul.u32 18, %s16
      %s254 = smul.u32 18, %s16
      %p255 = scmp.lt.s32.totalorder %s254, 35
      %s256 = scalar_select %p255, %s254, 35
      %s257 = smul.addr %s256, 4
      %s258 = scalar_lea.vmem %s1, %s257
      %s259 = smul.u32 18, %s16
      %s260 = smul.u32 18, %s16
      %p261 = scmp.lt.s32.totalorder %s260, 35
      %s262 = scalar_select %p261, %s260, 35
      %s263 = smul.addr %s262, 4
      %s264 = scalar_lea.vmem %s2, %s263
      %s265 = smul.u32 18, %s16
      %s266 = smul.u32 18, %s16
      %p267 = scmp.lt.s32.totalorder %s266, 35
      %s268 = scalar_select %p267, %s266, 35
      %s269 = smul.addr %s268, 4
      %s270 = scalar_lea.vmem %s5, %s269
      %s271 = smul.u32 18, %s16
      %v273 = vld [vmem:[%s252] sm:$0xf]
      %v274 = vld [vmem:[%s252 + $0x4] sm:$0xf]
      %v275 = vld [vmem:[%s252 + $0x8] sm:$0xf]
      %v276 = vld [vmem:[%s252 + $0xc] sm:$0xf]
      %v277 = vld [vmem:[%s252 + $0x10] sm:$0xf]
      %v278 = vld [vmem:[%s252 + $0x14] sm:$0xf]
      %v279 = vld [vmem:[%s252 + $0x18] sm:$0xf]
      %v280 = vld [vmem:[%s252 + $0x1c] sm:$0xf]
      %v281 = vld [vmem:[%s252 + $0x20] sm:$0xf]
      %v282 = vld [vmem:[%s252 + $0x24] sm:$0xf]
      %v283 = vld [vmem:[%s252 + $0x28] sm:$0xf]
      %v284 = vld [vmem:[%s252 + $0x2c] sm:$0xf]
      %v285 = vld [vmem:[%s252 + $0x30] sm:$0xf]
      %v286 = vld [vmem:[%s252 + $0x34] sm:$0xf]
      %v287 = vld [vmem:[%s252 + $0x38] sm:$0xf]
      %v288 = vld [vmem:[%s252 + $0x3c] sm:$0xf]
      %v289 = vld [vmem:[%s252 + $0x40] sm:$0xf]
      %v290 = vld [vmem:[%s252 + $0x44] sm:$0xf]
      %v291 = vld [vmem:[%s258] sm:$0xf]
      %v292 = vld [vmem:[%s258 + $0x4] sm:$0xf]
      %v293 = vld [vmem:[%s258 + $0x8] sm:$0xf]
      %v294 = vld [vmem:[%s258 + $0xc] sm:$0xf]
      %v295 = vld [vmem:[%s258 + $0x10] sm:$0xf]
      %v296 = vld [vmem:[%s258 + $0x14] sm:$0xf]
      %v297 = vld [vmem:[%s258 + $0x18] sm:$0xf]
      %v298 = vld [vmem:[%s258 + $0x1c] sm:$0xf]
      %v299 = vld [vmem:[%s258 + $0x20] sm:$0xf]
      %v300 = vld [vmem:[%s258 + $0x24] sm:$0xf]
      %v301 = vld [vmem:[%s258 + $0x28] sm:$0xf]
      %v302 = vld [vmem:[%s258 + $0x2c] sm:$0xf]
      %v303 = vld [vmem:[%s258 + $0x30] sm:$0xf]
      %v304 = vld [vmem:[%s258 + $0x34] sm:$0xf]
      %v305 = vld [vmem:[%s258 + $0x38] sm:$0xf]
      %v306 = vld [vmem:[%s258 + $0x3c] sm:$0xf]
      %v307 = vld [vmem:[%s258 + $0x40] sm:$0xf]
      %v308 = vld [vmem:[%s258 + $0x44] sm:$0xf]
      %v309 = vld [vmem:[%s264] sm:$0xf]
      %v310 = vld [vmem:[%s264 + $0x4] sm:$0xf]
      %v311 = vld [vmem:[%s264 + $0x8] sm:$0xf]
      %v312 = vld [vmem:[%s264 + $0xc] sm:$0xf]
      %v313 = vld [vmem:[%s264 + $0x10] sm:$0xf]
      %v314 = vld [vmem:[%s264 + $0x14] sm:$0xf]
      %v315 = vld [vmem:[%s264 + $0x18] sm:$0xf]
      %v316 = vld [vmem:[%s264 + $0x1c] sm:$0xf]
      %v317 = vld [vmem:[%s264 + $0x20] sm:$0xf]
      %v318 = vld [vmem:[%s264 + $0x24] sm:$0xf]
      %v319 = vld [vmem:[%s264 + $0x28] sm:$0xf]
      %v320 = vld [vmem:[%s264 + $0x2c] sm:$0xf]
      %v321 = vld [vmem:[%s264 + $0x30] sm:$0xf]
      %v322 = vld [vmem:[%s264 + $0x34] sm:$0xf]
      %v323 = vld [vmem:[%s264 + $0x38] sm:$0xf]
      %v324 = vld [vmem:[%s264 + $0x3c] sm:$0xf]
      %v325 = vld [vmem:[%s264 + $0x40] sm:$0xf]
      %v326 = vld [vmem:[%s264 + $0x44] sm:$0xf]
      %v327 = vld [vmem:[%s3] sm:$0xf]
      %v328 = vld [vmem:[%s3 + $0xc] sm:$0xf]
      %v347 = vunpack.c.l.b16 %v291
      %v348 = vunpack.c.l.b16 %v292
      %v349 = vunpack.c.l.b16 %v293
      %v350 = vunpack.c.l.b16 %v294
      %v351 = vunpack.c.l.b16 %v295
      %v352 = vunpack.c.l.b16 %v296
      %v353 = vunpack.c.l.b16 %v297
      %v354 = vunpack.c.l.b16 %v298
      %v355 = vunpack.c.l.b16 %v299
      %v356 = vunpack.c.l.b16 %v300
      %v357 = vunpack.c.l.b16 %v301
      %v358 = vunpack.c.l.b16 %v302
      %v359 = vunpack.c.l.b16 %v303
      %v360 = vunpack.c.l.b16 %v304
      %v361 = vunpack.c.l.b16 %v305
      %v362 = vunpack.c.l.b16 %v306
      %v363 = vunpack.c.l.b16 %v307
      %v364 = vunpack.c.l.b16 %v308
      %v365 = vpack.c.b16 %v348, %v347
      %v366 = vpack.c.b16 %v350, %v349
      %v367 = vpack.c.b16 %v352, %v351
      %v368 = vpack.c.b16 %v354, %v353
      %v369 = vpack.c.b16 %v356, %v355
      %v370 = vpack.c.b16 %v358, %v357
      %v371 = vpack.c.b16 %v360, %v359
      %v372 = vpack.c.b16 %v362, %v361
      %v373 = vpack.c.b16 %v364, %v363
      %vm374 = vcmask 64512
      %v376 = vsel %vm374, %v365, 0
      %v379 = vsel %vm374, %v366, 0
      %v382 = vsel %vm374, %v367, 0
      %v385 = vsel %vm374, %v368, 0
      %v388 = vsel %vm374, %v369, 0
      %v391 = vsel %vm374, %v370, 0
      %v394 = vsel %vm374, %v371, 0
      %v397 = vsel %vm374, %v372, 0
      %v400 = vsel %vm374, %v373, 0
      %vm402 = vcmask 1043456
      %v404 = vsel %vm402, %v328, 0
      %406 = vmatprep.subr.bf16.mxu0 0
      %407 = vmatpush1.bf16.msra.mxu0 0
      %408 = vmatprep.subr.bf16.mxu0 0
      %409 = vmatpush1.bf16.msra.mxu0 0
      %410 = vmatprep.subr.bf16.mxu0 0
      %411 = vmatpush1.bf16.msra.mxu0 0
      %412 = vmatprep.subr.bf16.mxu0 0
      %413 = vmatpush1.bf16.msra.mxu0 0
      %414 = vmatprep.subr.bf16.mxu0 0
      %415 = vmatpush1.bf16.msra.mxu0 0
      %416 = vmatprep.subr.bf16.mxu0 0
      %417 = vmatpush1.bf16.msra.mxu0 0
      %418 = vmatprep.subr.bf16.mxu0 0
      %419 = vmatpush1.bf16.msra.mxu0 0
      %420 = vmatprep.subr.bf16.mxu0 0
      %421 = vmatpush1.bf16.msra.mxu0 %v404
      %422 = vmatprep.subr.bf16.mxu0 0
      %423 = vmatpush2.bf16.msra.mxu0 0
      %424 = vmatprep.subr.bf16.mxu0 0
      %425 = vmatpush2.bf16.msra.mxu0 0
      %426 = vmatprep.subr.bf16.mxu0 0
      %427 = vmatpush2.bf16.msra.mxu0 0
      %428 = vmatprep.subr.bf16.mxu0 0
      %429 = vmatpush2.bf16.msra.mxu0 0
      %430 = vmatprep.subr.bf16.mxu0 0
      %431 = vmatpush2.bf16.msra.mxu0 0
      %432 = vmatprep.subr.bf16.mxu0 0
      %433 = vmatpush2.bf16.msra.mxu0 0
      %434 = vmatprep.subr.bf16.mxu0 0
      %435 = vmatpush2.bf16.msra.mxu0 0
      %436 = vmatprep.subr.bf16.mxu0 0
      %437 = vmatpush2.bf16.msra.mxu0 0
      %438 = vmatprep.mubr.bf16.mxu0 0
      %439 = vmatmul.mubr.bf16.gmra.mxu0 %v376
      %v440 = vpop.f32.mrf.mxu0
      %v441 = vadd.f32 0.0, %v440
      %v442 = vpop.f32.mrf.mxu0
      %v443 = vpop.f32.mrf.mxu0
      %v444 = vadd.f32 0.0, %v443
      %v445 = vpop.f32.mrf.mxu0
      %446 = vmatprep.mubr.bf16.mxu0 0
      %447 = vmatmul.mubr.bf16.gmra.mxu0 %v379
      %v448 = vpop.f32.mrf.mxu0
      %v449 = vadd.f32 0.0, %v448
      %v450 = vpop.f32.mrf.mxu0
      %v451 = vpop.f32.mrf.mxu0
      %v452 = vadd.f32 0.0, %v451
      %v453 = vpop.f32.mrf.mxu0
      %454 = vmatprep.mubr.bf16.mxu0 0
      %455 = vmatmul.mubr.bf16.gmra.mxu0 %v382
      %v456 = vpop.f32.mrf.mxu0
      %v457 = vadd.f32 0.0, %v456
      %v458 = vpop.f32.mrf.mxu0
      %v459 = vpop.f32.mrf.mxu0
      %v460 = vadd.f32 0.0, %v459
      %v461 = vpop.f32.mrf.mxu0
      %462 = vmatprep.mubr.bf16.mxu0 0
      %463 = vmatmul.mubr.bf16.gmra.mxu0 %v385
      %v464 = vpop.f32.mrf.mxu0
      %v465 = vadd.f32 0.0, %v464
      %v466 = vpop.f32.mrf.mxu0
      %v467 = vpop.f32.mrf.mxu0
      %v468 = vadd.f32 0.0, %v467
      %v469 = vpop.f32.mrf.mxu0
      %470 = vmatprep.mubr.bf16.mxu0 0
      %471 = vmatmul.mubr.bf16.gmra.mxu0 %v388
      %v472 = vpop.f32.mrf.mxu0
      %v473 = vadd.f32 0.0, %v472
      %v474 = vpop.f32.mrf.mxu0
      %v475 = vpop.f32.mrf.mxu0
      %v476 = vadd.f32 0.0, %v475
      %v477 = vpop.f32.mrf.mxu0
      %478 = vmatprep.mubr.bf16.mxu0 0
      %479 = vmatmul.mubr.bf16.gmra.mxu0 %v391
      %v480 = vpop.f32.mrf.mxu0
      %v481 = vadd.f32 0.0, %v480
      %v482 = vpop.f32.mrf.mxu0
      %v483 = vpop.f32.mrf.mxu0
      %v484 = vadd.f32 0.0, %v483
      %v485 = vpop.f32.mrf.mxu0
      %486 = vmatprep.mubr.bf16.mxu0 0
      %487 = vmatmul.mubr.bf16.gmra.mxu0 %v394
      %v488 = vpop.f32.mrf.mxu0
      %v489 = vadd.f32 0.0, %v488
      %v490 = vpop.f32.mrf.mxu0
      %v491 = vpop.f32.mrf.mxu0
      %v492 = vadd.f32 0.0, %v491
      %v493 = vpop.f32.mrf.mxu0
      %494 = vmatprep.mubr.bf16.mxu0 0
      %495 = vmatmul.mubr.bf16.gmra.mxu0 %v397
      %v496 = vpop.f32.mrf.mxu0
      %v497 = vadd.f32 0.0, %v496
      %v498 = vpop.f32.mrf.mxu0
      %v499 = vpop.f32.mrf.mxu0
      %v500 = vadd.f32 0.0, %v499
      %v501 = vpop.f32.mrf.mxu0
      %502 = vmatprep.mubr.bf16.mxu0 0
      %503 = vmatmul.mubr.bf16.gmra.mxu0 %v400
      %v504 = vpop.f32.mrf.mxu0
      %v505 = vadd.f32 0.0, %v504
      %v506 = vpop.f32.mrf.mxu0
      %v507 = vpop.f32.mrf.mxu0
      %v508 = vadd.f32 0.0, %v507
      %v509 = vpop.f32.mrf.mxu0
      %510 = vdwg.mxu0
      %v529 = vunpack.c.l.b16 %v273
      %v530 = vunpack.c.l.b16 %v274
      %v531 = vunpack.c.l.b16 %v275
      %v532 = vunpack.c.l.b16 %v276
      %v533 = vunpack.c.l.b16 %v277
      %v534 = vunpack.c.l.b16 %v278
      %v535 = vunpack.c.l.b16 %v279
      %v536 = vunpack.c.l.b16 %v280
      %v537 = vunpack.c.l.b16 %v281
      %v538 = vunpack.c.l.b16 %v282
      %v539 = vunpack.c.l.b16 %v283
      %v540 = vunpack.c.l.b16 %v284
      %v541 = vunpack.c.l.b16 %v285
      %v542 = vunpack.c.l.b16 %v286
      %v543 = vunpack.c.l.b16 %v287
      %v544 = vunpack.c.l.b16 %v288
      %v545 = vunpack.c.l.b16 %v289
      %v546 = vunpack.c.l.b16 %v290
      %v547 = vpack.c.b16 %v530, %v529
      %v548 = vpack.c.b16 %v532, %v531
      %v549 = vpack.c.b16 %v534, %v533
      %v550 = vpack.c.b16 %v536, %v535
      %v551 = vpack.c.b16 %v538, %v537
      %v552 = vpack.c.b16 %v540, %v539
      %v553 = vpack.c.b16 %v542, %v541
      %v554 = vpack.c.b16 %v544, %v543
      %v555 = vpack.c.b16 %v546, %v545
      %v557 = vsel %vm374, %v547, 0
      %v560 = vsel %vm374, %v548, 0
      %v563 = vsel %vm374, %v549, 0
      %v566 = vsel %vm374, %v550, 0
      %v569 = vsel %vm374, %v551, 0
      %v572 = vsel %vm374, %v552, 0
      %v575 = vsel %vm374, %v553, 0
      %v578 = vsel %vm374, %v554, 0
      %v581 = vsel %vm374, %v555, 0
      %v584 = vsel %vm402, %v327, 0
      %586 = vmatprep.subr.bf16.mxu0 0
      %587 = vmatpush1.bf16.msra.mxu0 0
      %588 = vmatprep.subr.bf16.mxu0 0
      %589 = vmatpush1.bf16.msra.mxu0 0
      %590 = vmatprep.subr.bf16.mxu0 0
      %591 = vmatpush1.bf16.msra.mxu0 0
      %592 = vmatprep.subr.bf16.mxu0 0
      %593 = vmatpush1.bf16.msra.mxu0 0
      %594 = vmatprep.subr.bf16.mxu0 0
      %595 = vmatpush1.bf16.msra.mxu0 0
      %596 = vmatprep.subr.bf16.mxu0 0
      %597 = vmatpush1.bf16.msra.mxu0 0
      %598 = vmatprep.subr.bf16.mxu0 0
      %599 = vmatpush1.bf16.msra.mxu0 0
      %600 = vmatprep.subr.bf16.mxu0 0
      %601 = vmatpush1.bf16.msra.mxu0 %v584
      %602 = vmatprep.subr.bf16.mxu0 0
      %603 = vmatpush2.bf16.msra.mxu0 0
      %604 = vmatprep.subr.bf16.mxu0 0
      %605 = vmatpush2.bf16.msra.mxu0 0
      %606 = vmatprep.subr.bf16.mxu0 0
      %607 = vmatpush2.bf16.msra.mxu0 0
      %608 = vmatprep.subr.bf16.mxu0 0
      %609 = vmatpush2.bf16.msra.mxu0 0
      %610 = vmatprep.subr.bf16.mxu0 0
      %611 = vmatpush2.bf16.msra.mxu0 0
      %612 = vmatprep.subr.bf16.mxu0 0
      %613 = vmatpush2.bf16.msra.mxu0 0
      %614 = vmatprep.subr.bf16.mxu0 0
      %615 = vmatpush2.bf16.msra.mxu0 0
      %616 = vmatprep.subr.bf16.mxu0 0
      %617 = vmatpush2.bf16.msra.mxu0 0
      %618 = vmatprep.mubr.bf16.mxu0 0
      %619 = vmatmul.mubr.bf16.gmra.mxu0 %v557
      %v620 = vpop.f32.mrf.mxu0
      %v621 = vadd.f32 %v441, %v620
      %v622 = vpop.f32.mrf.mxu0
      %v623 = vpop.f32.mrf.mxu0
      %v624 = vadd.f32 %v444, %v623
      %v625 = vpop.f32.mrf.mxu0
      %626 = vmatprep.mubr.bf16.mxu0 0
      %627 = vmatmul.mubr.bf16.gmra.mxu0 %v560
      %v628 = vpop.f32.mrf.mxu0
      %v629 = vadd.f32 %v449, %v628
      %v630 = vpop.f32.mrf.mxu0
      %v631 = vpop.f32.mrf.mxu0
      %v632 = vadd.f32 %v452, %v631
      %v633 = vpop.f32.mrf.mxu0
      %634 = vmatprep.mubr.bf16.mxu0 0
      %635 = vmatmul.mubr.bf16.gmra.mxu0 %v563
      %v636 = vpop.f32.mrf.mxu0
      %v637 = vadd.f32 %v457, %v636
      %v638 = vpop.f32.mrf.mxu0
      %v639 = vpop.f32.mrf.mxu0
      %v640 = vadd.f32 %v460, %v639
      %v641 = vpop.f32.mrf.mxu0
      %642 = vmatprep.mubr.bf16.mxu0 0
      %643 = vmatmul.mubr.bf16.gmra.mxu0 %v566
      %v644 = vpop.f32.mrf.mxu0
      %v645 = vadd.f32 %v465, %v644
      %v646 = vpop.f32.mrf.mxu0
      %v647 = vpop.f32.mrf.mxu0
      %v648 = vadd.f32 %v468, %v647
      %v649 = vpop.f32.mrf.mxu0
      %650 = vmatprep.mubr.bf16.mxu0 0
      %651 = vmatmul.mubr.bf16.gmra.mxu0 %v569
      %v652 = vpop.f32.mrf.mxu0
      %v653 = vadd.f32 %v473, %v652
      %v654 = vpop.f32.mrf.mxu0
      %v655 = vpop.f32.mrf.mxu0
      %v656 = vadd.f32 %v476, %v655
      %v657 = vpop.f32.mrf.mxu0
      %658 = vmatprep.mubr.bf16.mxu0 0
      %659 = vmatmul.mubr.bf16.gmra.mxu0 %v572
      %v660 = vpop.f32.mrf.mxu0
      %v661 = vadd.f32 %v481, %v660
      %v662 = vpop.f32.mrf.mxu0
      %v663 = vpop.f32.mrf.mxu0
      %v664 = vadd.f32 %v484, %v663
      %v665 = vpop.f32.mrf.mxu0
      %666 = vmatprep.mubr.bf16.mxu0 0
      %667 = vmatmul.mubr.bf16.gmra.mxu0 %v575
      %v668 = vpop.f32.mrf.mxu0
      %v669 = vadd.f32 %v489, %v668
      %v670 = vpop.f32.mrf.mxu0
      %v671 = vpop.f32.mrf.mxu0
      %v672 = vadd.f32 %v492, %v671
      %v673 = vpop.f32.mrf.mxu0
      %674 = vmatprep.mubr.bf16.mxu0 0
      %675 = vmatmul.mubr.bf16.gmra.mxu0 %v578
      %v676 = vpop.f32.mrf.mxu0
      %v677 = vadd.f32 %v497, %v676
      %v678 = vpop.f32.mrf.mxu0
      %v679 = vpop.f32.mrf.mxu0
      %v680 = vadd.f32 %v500, %v679
      %v681 = vpop.f32.mrf.mxu0
      %682 = vmatprep.mubr.bf16.mxu0 0
      %683 = vmatmul.mubr.bf16.gmra.mxu0 %v581
      %v684 = vpop.f32.mrf.mxu0
      %v685 = vadd.f32 %v505, %v684
      %v686 = vpop.f32.mrf.mxu0
      %v687 = vpop.f32.mrf.mxu0
      %v688 = vadd.f32 %v508, %v687
      %v689 = vpop.f32.mrf.mxu0
      %690 = vdwg.mxu0
      %v691 = vld [vmem:[%s3 + $0x18] sm:$0xf]
      %v710 = vunpack.c.l.b16 %v309
      %v711 = vunpack.c.l.b16 %v310
      %v712 = vunpack.c.l.b16 %v311
      %v713 = vunpack.c.l.b16 %v312
      %v714 = vunpack.c.l.b16 %v313
      %v715 = vunpack.c.l.b16 %v314
      %v716 = vunpack.c.l.b16 %v315
      %v717 = vunpack.c.l.b16 %v316
      %v718 = vunpack.c.l.b16 %v317
      %v719 = vunpack.c.l.b16 %v318
      %v720 = vunpack.c.l.b16 %v319
      %v721 = vunpack.c.l.b16 %v320
      %v722 = vunpack.c.l.b16 %v321
      %v723 = vunpack.c.l.b16 %v322
      %v724 = vunpack.c.l.b16 %v323
      %v725 = vunpack.c.l.b16 %v324
      %v726 = vunpack.c.l.b16 %v325
      %v727 = vunpack.c.l.b16 %v326
      %v728 = vpack.c.b16 %v711, %v710
      %v729 = vpack.c.b16 %v713, %v712
      %v730 = vpack.c.b16 %v715, %v714
      %v731 = vpack.c.b16 %v717, %v716
      %v732 = vpack.c.b16 %v719, %v718
      %v733 = vpack.c.b16 %v721, %v720
      %v734 = vpack.c.b16 %v723, %v722
      %v735 = vpack.c.b16 %v725, %v724
      %v736 = vpack.c.b16 %v727, %v726
      %v738 = vsel %vm374, %v728, 0
      %v741 = vsel %vm374, %v729, 0
      %v744 = vsel %vm374, %v730, 0
      %v747 = vsel %vm374, %v731, 0
      %v750 = vsel %vm374, %v732, 0
      %v753 = vsel %vm374, %v733, 0
      %v756 = vsel %vm374, %v734, 0
      %v759 = vsel %vm374, %v735, 0
      %v762 = vsel %vm374, %v736, 0
      %v765 = vsel %vm402, %v691, 0
      %767 = vmatprep.subr.bf16.mxu0 0
      %768 = vmatpush1.bf16.msra.mxu0 0
      %769 = vmatprep.subr.bf16.mxu0 0
      %770 = vmatpush1.bf16.msra.mxu0 0
      %771 = vmatprep.subr.bf16.mxu0 0
      %772 = vmatpush1.bf16.msra.mxu0 0
      %773 = vmatprep.subr.bf16.mxu0 0
      %774 = vmatpush1.bf16.msra.mxu0 0
      %775 = vmatprep.subr.bf16.mxu0 0
      %776 = vmatpush1.bf16.msra.mxu0 0
      %777 = vmatprep.subr.bf16.mxu0 0
      %778 = vmatpush1.bf16.msra.mxu0 0
      %779 = vmatprep.subr.bf16.mxu0 0
      %780 = vmatpush1.bf16.msra.mxu0 0
      %781 = vmatprep.subr.bf16.mxu0 0
      %782 = vmatpush1.bf16.msra.mxu0 %v765
      %783 = vmatprep.subr.bf16.mxu0 0
      %784 = vmatpush2.bf16.msra.mxu0 0
      %785 = vmatprep.subr.bf16.mxu0 0
      %786 = vmatpush2.bf16.msra.mxu0 0
      %787 = vmatprep.subr.bf16.mxu0 0
      %788 = vmatpush2.bf16.msra.mxu0 0
      %789 = vmatprep.subr.bf16.mxu0 0
      %790 = vmatpush2.bf16.msra.mxu0 0
      %791 = vmatprep.subr.bf16.mxu0 0
      %792 = vmatpush2.bf16.msra.mxu0 0
      %793 = vmatprep.subr.bf16.mxu0 0
      %794 = vmatpush2.bf16.msra.mxu0 0
      %795 = vmatprep.subr.bf16.mxu0 0
      %796 = vmatpush2.bf16.msra.mxu0 0
      %797 = vmatprep.subr.bf16.mxu0 0
      %798 = vmatpush2.bf16.msra.mxu0 0
      %799 = vmatprep.mubr.bf16.mxu0 0
      %800 = vmatmul.mubr.bf16.gmra.mxu0 %v738
      %v801 = vpop.f32.mrf.mxu0
      %v802 = vadd.f32 0.0, %v801
      %v803 = vpop.f32.mrf.mxu0
      %v804 = vpop.f32.mrf.mxu0
      %v805 = vadd.f32 0.0, %v804
      %v806 = vpop.f32.mrf.mxu0
      %807 = vmatprep.mubr.bf16.mxu0 0
      %808 = vmatmul.mubr.bf16.gmra.mxu0 %v741
      %v809 = vpop.f32.mrf.mxu0
      %v810 = vadd.f32 0.0, %v809
      %v811 = vpop.f32.mrf.mxu0
      %v812 = vpop.f32.mrf.mxu0
      %v813 = vadd.f32 0.0, %v812
      %v814 = vpop.f32.mrf.mxu0
      %815 = vmatprep.mubr.bf16.mxu0 0
      %816 = vmatmul.mubr.bf16.gmra.mxu0 %v744
      %v817 = vpop.f32.mrf.mxu0
      %v818 = vadd.f32 0.0, %v817
      %v819 = vpop.f32.mrf.mxu0
      %v820 = vpop.f32.mrf.mxu0
      %v821 = vadd.f32 0.0, %v820
      %v822 = vpop.f32.mrf.mxu0
      %823 = vmatprep.mubr.bf16.mxu0 0
      %824 = vmatmul.mubr.bf16.gmra.mxu0 %v747
      %v825 = vpop.f32.mrf.mxu0
      %v826 = vadd.f32 0.0, %v825
      %v827 = vpop.f32.mrf.mxu0
      %v828 = vpop.f32.mrf.mxu0
      %v829 = vadd.f32 0.0, %v828
      %v830 = vpop.f32.mrf.mxu0
      %831 = vmatprep.mubr.bf16.mxu0 0
      %832 = vmatmul.mubr.bf16.gmra.mxu0 %v750
      %v833 = vpop.f32.mrf.mxu0
      %v834 = vadd.f32 0.0, %v833
      %v835 = vpop.f32.mrf.mxu0
      %v836 = vpop.f32.mrf.mxu0
      %v837 = vadd.f32 0.0, %v836
      %v838 = vpop.f32.mrf.mxu0
      %839 = vmatprep.mubr.bf16.mxu0 0
      %840 = vmatmul.mubr.bf16.gmra.mxu0 %v753
      %v841 = vpop.f32.mrf.mxu0
      %v842 = vadd.f32 0.0, %v841
      %v843 = vpop.f32.mrf.mxu0
      %v844 = vpop.f32.mrf.mxu0
      %v845 = vadd.f32 0.0, %v844
      %v846 = vpop.f32.mrf.mxu0
      %847 = vmatprep.mubr.bf16.mxu0 0
      %848 = vmatmul.mubr.bf16.gmra.mxu0 %v756
      %v849 = vpop.f32.mrf.mxu0
      %v850 = vadd.f32 0.0, %v849
      %v851 = vpop.f32.mrf.mxu0
      %v852 = vpop.f32.mrf.mxu0
      %v853 = vadd.f32 0.0, %v852
      %v854 = vpop.f32.mrf.mxu0
      %855 = vmatprep.mubr.bf16.mxu0 0
      %856 = vmatmul.mubr.bf16.gmra.mxu0 %v759
      %v857 = vpop.f32.mrf.mxu0
      %v858 = vadd.f32 0.0, %v857
      %v859 = vpop.f32.mrf.mxu0
      %v860 = vpop.f32.mrf.mxu0
      %v861 = vadd.f32 0.0, %v860
      %v862 = vpop.f32.mrf.mxu0
      %863 = vmatprep.mubr.bf16.mxu0 0
      %864 = vmatmul.mubr.bf16.gmra.mxu0 %v762
      %v865 = vpop.f32.mrf.mxu0
      %v866 = vadd.f32 0.0, %v865
      %v867 = vpop.f32.mrf.mxu0
      %v868 = vpop.f32.mrf.mxu0
      %v869 = vadd.f32 0.0, %v868
      %v870 = vpop.f32.mrf.mxu0
      %871 = vdwg.mxu0
      %v872 = vadd.f32 %v621, %v802
      %v873 = vadd.f32 %v624, %v805
      %v874 = vadd.f32 %v629, %v810
      %v875 = vadd.f32 %v632, %v813
      %v876 = vadd.f32 %v637, %v818
      %v877 = vadd.f32 %v640, %v821
      %v878 = vadd.f32 %v645, %v826
      %v879 = vadd.f32 %v648, %v829
      %v880 = vadd.f32 %v653, %v834
      %v881 = vadd.f32 %v656, %v837
      %v882 = vadd.f32 %v661, %v842
      %v883 = vadd.f32 %v664, %v845
      %v884 = vadd.f32 %v669, %v850
      %v885 = vadd.f32 %v672, %v853
      %v886 = vadd.f32 %v677, %v858
      %v887 = vadd.f32 %v680, %v861
      %v888 = vadd.f32 %v685, %v866
      %v889 = vadd.f32 %v688, %v869
      %v890 = vld [vmem:[%s3 + $0x4] sm:$0xf]
      %v891 = vld [vmem:[%s3 + $0x10] sm:$0xf]
      %v893 = vsel %vm402, %v891, 0
      %895 = vmatprep.subr.bf16.mxu0 0
      %896 = vmatpush1.bf16.msra.mxu0 0
      %897 = vmatprep.subr.bf16.mxu0 0
      %898 = vmatpush1.bf16.msra.mxu0 0
      %899 = vmatprep.subr.bf16.mxu0 0
      %900 = vmatpush1.bf16.msra.mxu0 0
      %901 = vmatprep.subr.bf16.mxu0 0
      %902 = vmatpush1.bf16.msra.mxu0 0
      %903 = vmatprep.subr.bf16.mxu0 0
      %904 = vmatpush1.bf16.msra.mxu0 0
      %905 = vmatprep.subr.bf16.mxu0 0
      %906 = vmatpush1.bf16.msra.mxu0 0
      %907 = vmatprep.subr.bf16.mxu0 0
      %908 = vmatpush1.bf16.msra.mxu0 0
      %909 = vmatprep.subr.bf16.mxu0 0
      %910 = vmatpush1.bf16.msra.mxu0 %v893
      %911 = vmatprep.subr.bf16.mxu0 0
      %912 = vmatpush2.bf16.msra.mxu0 0
      %913 = vmatprep.subr.bf16.mxu0 0
      %914 = vmatpush2.bf16.msra.mxu0 0
      %915 = vmatprep.subr.bf16.mxu0 0
      %916 = vmatpush2.bf16.msra.mxu0 0
      %917 = vmatprep.subr.bf16.mxu0 0
      %918 = vmatpush2.bf16.msra.mxu0 0
      %919 = vmatprep.subr.bf16.mxu0 0
      %920 = vmatpush2.bf16.msra.mxu0 0
      %921 = vmatprep.subr.bf16.mxu0 0
      %922 = vmatpush2.bf16.msra.mxu0 0
      %923 = vmatprep.subr.bf16.mxu0 0
      %924 = vmatpush2.bf16.msra.mxu0 0
      %925 = vmatprep.subr.bf16.mxu0 0
      %926 = vmatpush2.bf16.msra.mxu0 0
      %927 = vmatprep.mubr.bf16.mxu0 0
      %928 = vmatmul.mubr.bf16.gmra.mxu0 %v376
      %v929 = vpop.f32.mrf.mxu0
      %v930 = vadd.f32 0.0, %v929
      %v931 = vpop.f32.mrf.mxu0
      %v932 = vpop.f32.mrf.mxu0
      %v933 = vadd.f32 0.0, %v932
      %v934 = vpop.f32.mrf.mxu0
      %935 = vmatprep.mubr.bf16.mxu0 0
      %936 = vmatmul.mubr.bf16.gmra.mxu0 %v379
      %v937 = vpop.f32.mrf.mxu0
      %v938 = vadd.f32 0.0, %v937
      %v939 = vpop.f32.mrf.mxu0
      %v940 = vpop.f32.mrf.mxu0
      %v941 = vadd.f32 0.0, %v940
      %v942 = vpop.f32.mrf.mxu0
      %943 = vmatprep.mubr.bf16.mxu0 0
      %944 = vmatmul.mubr.bf16.gmra.mxu0 %v382
      %v945 = vpop.f32.mrf.mxu0
      %v946 = vadd.f32 0.0, %v945
      %v947 = vpop.f32.mrf.mxu0
      %v948 = vpop.f32.mrf.mxu0
      %v949 = vadd.f32 0.0, %v948
      %v950 = vpop.f32.mrf.mxu0
      %951 = vmatprep.mubr.bf16.mxu0 0
      %952 = vmatmul.mubr.bf16.gmra.mxu0 %v385
      %v953 = vpop.f32.mrf.mxu0
      %v954 = vadd.f32 0.0, %v953
      %v955 = vpop.f32.mrf.mxu0
      %v956 = vpop.f32.mrf.mxu0
      %v957 = vadd.f32 0.0, %v956
      %v958 = vpop.f32.mrf.mxu0
      %959 = vmatprep.mubr.bf16.mxu0 0
      %960 = vmatmul.mubr.bf16.gmra.mxu0 %v388
      %v961 = vpop.f32.mrf.mxu0
      %v962 = vadd.f32 0.0, %v961
      %v963 = vpop.f32.mrf.mxu0
      %v964 = vpop.f32.mrf.mxu0
      %v965 = vadd.f32 0.0, %v964
      %v966 = vpop.f32.mrf.mxu0
      %967 = vmatprep.mubr.bf16.mxu0 0
      %968 = vmatmul.mubr.bf16.gmra.mxu0 %v391
      %v969 = vpop.f32.mrf.mxu0
      %v970 = vadd.f32 0.0, %v969
      %v971 = vpop.f32.mrf.mxu0
      %v972 = vpop.f32.mrf.mxu0
      %v973 = vadd.f32 0.0, %v972
      %v974 = vpop.f32.mrf.mxu0
      %975 = vmatprep.mubr.bf16.mxu0 0
      %976 = vmatmul.mubr.bf16.gmra.mxu0 %v394
      %v977 = vpop.f32.mrf.mxu0
      %v978 = vadd.f32 0.0, %v977
      %v979 = vpop.f32.mrf.mxu0
      %v980 = vpop.f32.mrf.mxu0
      %v981 = vadd.f32 0.0, %v980
      %v982 = vpop.f32.mrf.mxu0
      %983 = vmatprep.mubr.bf16.mxu0 0
      %984 = vmatmul.mubr.bf16.gmra.mxu0 %v397
      %v985 = vpop.f32.mrf.mxu0
      %v986 = vadd.f32 0.0, %v985
      %v987 = vpop.f32.mrf.mxu0
      %v988 = vpop.f32.mrf.mxu0
      %v989 = vadd.f32 0.0, %v988
      %v990 = vpop.f32.mrf.mxu0
      %991 = vmatprep.mubr.bf16.mxu0 0
      %992 = vmatmul.mubr.bf16.gmra.mxu0 %v400
      %v993 = vpop.f32.mrf.mxu0
      %v994 = vadd.f32 0.0, %v993
      %v995 = vpop.f32.mrf.mxu0
      %v996 = vpop.f32.mrf.mxu0
      %v997 = vadd.f32 0.0, %v996
      %v998 = vpop.f32.mrf.mxu0
      %999 = vdwg.mxu0
      %v1001 = vsel %vm402, %v890, 0
      %1003 = vmatprep.subr.bf16.mxu0 0
      %1004 = vmatpush1.bf16.msra.mxu0 0
      %1005 = vmatprep.subr.bf16.mxu0 0
      %1006 = vmatpush1.bf16.msra.mxu0 0
      %1007 = vmatprep.subr.bf16.mxu0 0
      %1008 = vmatpush1.bf16.msra.mxu0 0
      %1009 = vmatprep.subr.bf16.mxu0 0
      %1010 = vmatpush1.bf16.msra.mxu0 0
      %1011 = vmatprep.subr.bf16.mxu0 0
      %1012 = vmatpush1.bf16.msra.mxu0 0
      %1013 = vmatprep.subr.bf16.mxu0 0
      %1014 = vmatpush1.bf16.msra.mxu0 0
      %1015 = vmatprep.subr.bf16.mxu0 0
      %1016 = vmatpush1.bf16.msra.mxu0 0
      %1017 = vmatprep.subr.bf16.mxu0 0
      %1018 = vmatpush1.bf16.msra.mxu0 %v1001
      %1019 = vmatprep.subr.bf16.mxu0 0
      %1020 = vmatpush2.bf16.msra.mxu0 0
      %1021 = vmatprep.subr.bf16.mxu0 0
      %1022 = vmatpush2.bf16.msra.mxu0 0
      %1023 = vmatprep.subr.bf16.mxu0 0
      %1024 = vmatpush2.bf16.msra.mxu0 0
      %1025 = vmatprep.subr.bf16.mxu0 0
      %1026 = vmatpush2.bf16.msra.mxu0 0
      %1027 = vmatprep.subr.bf16.mxu0 0
      %1028 = vmatpush2.bf16.msra.mxu0 0
      %1029 = vmatprep.subr.bf16.mxu0 0
      %1030 = vmatpush2.bf16.msra.mxu0 0
      %1031 = vmatprep.subr.bf16.mxu0 0
      %1032 = vmatpush2.bf16.msra.mxu0 0
      %1033 = vmatprep.subr.bf16.mxu0 0
      %1034 = vmatpush2.bf16.msra.mxu0 0
      %1035 = vmatprep.mubr.bf16.mxu0 0
      %1036 = vmatmul.mubr.bf16.gmra.mxu0 %v557
      %v1037 = vpop.f32.mrf.mxu0
      %v1038 = vadd.f32 %v930, %v1037
      %v1039 = vpop.f32.mrf.mxu0
      %v1040 = vpop.f32.mrf.mxu0
      %v1041 = vadd.f32 %v933, %v1040
      %v1042 = vpop.f32.mrf.mxu0
      %1043 = vmatprep.mubr.bf16.mxu0 0
      %1044 = vmatmul.mubr.bf16.gmra.mxu0 %v560
      %v1045 = vpop.f32.mrf.mxu0
      %v1046 = vadd.f32 %v938, %v1045
      %v1047 = vpop.f32.mrf.mxu0
      %v1048 = vpop.f32.mrf.mxu0
      %v1049 = vadd.f32 %v941, %v1048
      %v1050 = vpop.f32.mrf.mxu0
      %1051 = vmatprep.mubr.bf16.mxu0 0
      %1052 = vmatmul.mubr.bf16.gmra.mxu0 %v563
      %v1053 = vpop.f32.mrf.mxu0
      %v1054 = vadd.f32 %v946, %v1053
      %v1055 = vpop.f32.mrf.mxu0
      %v1056 = vpop.f32.mrf.mxu0
      %v1057 = vadd.f32 %v949, %v1056
      %v1058 = vpop.f32.mrf.mxu0
      %1059 = vmatprep.mubr.bf16.mxu0 0
      %1060 = vmatmul.mubr.bf16.gmra.mxu0 %v566
      %v1061 = vpop.f32.mrf.mxu0
      %v1062 = vadd.f32 %v954, %v1061
      %v1063 = vpop.f32.mrf.mxu0
      %v1064 = vpop.f32.mrf.mxu0
      %v1065 = vadd.f32 %v957, %v1064
      %v1066 = vpop.f32.mrf.mxu0
      %1067 = vmatprep.mubr.bf16.mxu0 0
      %1068 = vmatmul.mubr.bf16.gmra.mxu0 %v569
      %v1069 = vpop.f32.mrf.mxu0
      %v1070 = vadd.f32 %v962, %v1069
      %v1071 = vpop.f32.mrf.mxu0
      %v1072 = vpop.f32.mrf.mxu0
      %v1073 = vadd.f32 %v965, %v1072
      %v1074 = vpop.f32.mrf.mxu0
      %1075 = vmatprep.mubr.bf16.mxu0 0
      %1076 = vmatmul.mubr.bf16.gmra.mxu0 %v572
      %v1077 = vpop.f32.mrf.mxu0
      %v1078 = vadd.f32 %v970, %v1077
      %v1079 = vpop.f32.mrf.mxu0
      %v1080 = vpop.f32.mrf.mxu0
      %v1081 = vadd.f32 %v973, %v1080
      %v1082 = vpop.f32.mrf.mxu0
      %1083 = vmatprep.mubr.bf16.mxu0 0
      %1084 = vmatmul.mubr.bf16.gmra.mxu0 %v575
      %v1085 = vpop.f32.mrf.mxu0
      %v1086 = vadd.f32 %v978, %v1085
      %v1087 = vpop.f32.mrf.mxu0
      %v1088 = vpop.f32.mrf.mxu0
      %v1089 = vadd.f32 %v981, %v1088
      %v1090 = vpop.f32.mrf.mxu0
      %1091 = vmatprep.mubr.bf16.mxu0 0
      %1092 = vmatmul.mubr.bf16.gmra.mxu0 %v578
      %v1093 = vpop.f32.mrf.mxu0
      %v1094 = vadd.f32 %v986, %v1093
      %v1095 = vpop.f32.mrf.mxu0
      %v1096 = vpop.f32.mrf.mxu0
      %v1097 = vadd.f32 %v989, %v1096
      %v1098 = vpop.f32.mrf.mxu0
      %1099 = vmatprep.mubr.bf16.mxu0 0
      %1100 = vmatmul.mubr.bf16.gmra.mxu0 %v581
      %v1101 = vpop.f32.mrf.mxu0
      %v1102 = vadd.f32 %v994, %v1101
      %v1103 = vpop.f32.mrf.mxu0
      %v1104 = vpop.f32.mrf.mxu0
      %v1105 = vadd.f32 %v997, %v1104
      %v1106 = vpop.f32.mrf.mxu0
      %1107 = vdwg.mxu0
      %v1108 = vld [vmem:[%s3 + $0x1c] sm:$0xf]
      %v1110 = vsel %vm402, %v1108, 0
      %1112 = vmatprep.subr.bf16.mxu0 0
      %1113 = vmatpush1.bf16.msra.mxu0 0
      %1114 = vmatprep.subr.bf16.mxu0 0
      %1115 = vmatpush1.bf16.msra.mxu0 0
      %1116 = vmatprep.subr.bf16.mxu0 0
      %1117 = vmatpush1.bf16.msra.mxu0 0
      %1118 = vmatprep.subr.bf16.mxu0 0
      %1119 = vmatpush1.bf16.msra.mxu0 0
      %1120 = vmatprep.subr.bf16.mxu0 0
      %1121 = vmatpush1.bf16.msra.mxu0 0
      %1122 = vmatprep.subr.bf16.mxu0 0
      %1123 = vmatpush1.bf16.msra.mxu0 0
      %1124 = vmatprep.subr.bf16.mxu0 0
      %1125 = vmatpush1.bf16.msra.mxu0 0
      %1126 = vmatprep.subr.bf16.mxu0 0
      %1127 = vmatpush1.bf16.msra.mxu0 %v1110
      %1128 = vmatprep.subr.bf16.mxu0 0
      %1129 = vmatpush2.bf16.msra.mxu0 0
      %1130 = vmatprep.subr.bf16.mxu0 0
      %1131 = vmatpush2.bf16.msra.mxu0 0
      %1132 = vmatprep.subr.bf16.mxu0 0
      %1133 = vmatpush2.bf16.msra.mxu0 0
      %1134 = vmatprep.subr.bf16.mxu0 0
      %1135 = vmatpush2.bf16.msra.mxu0 0
      %1136 = vmatprep.subr.bf16.mxu0 0
      %1137 = vmatpush2.bf16.msra.mxu0 0
      %1138 = vmatprep.subr.bf16.mxu0 0
      %1139 = vmatpush2.bf16.msra.mxu0 0
      %1140 = vmatprep.subr.bf16.mxu0 0
      %1141 = vmatpush2.bf16.msra.mxu0 0
      %1142 = vmatprep.subr.bf16.mxu0 0
      %1143 = vmatpush2.bf16.msra.mxu0 0
      %1144 = vmatprep.mubr.bf16.mxu0 0
      %1145 = vmatmul.mubr.bf16.gmra.mxu0 %v738
      %v1146 = vpop.f32.mrf.mxu0
      %v1147 = vadd.f32 0.0, %v1146
      %v1148 = vpop.f32.mrf.mxu0
      %v1149 = vpop.f32.mrf.mxu0
      %v1150 = vadd.f32 0.0, %v1149
      %v1151 = vpop.f32.mrf.mxu0
      %1152 = vmatprep.mubr.bf16.mxu0 0
      %1153 = vmatmul.mubr.bf16.gmra.mxu0 %v741
      %v1154 = vpop.f32.mrf.mxu0
      %v1155 = vadd.f32 0.0, %v1154
      %v1156 = vpop.f32.mrf.mxu0
      %v1157 = vpop.f32.mrf.mxu0
      %v1158 = vadd.f32 0.0, %v1157
      %v1159 = vpop.f32.mrf.mxu0
      %1160 = vmatprep.mubr.bf16.mxu0 0
      %1161 = vmatmul.mubr.bf16.gmra.mxu0 %v744
      %v1162 = vpop.f32.mrf.mxu0
      %v1163 = vadd.f32 0.0, %v1162
      %v1164 = vpop.f32.mrf.mxu0
      %v1165 = vpop.f32.mrf.mxu0
      %v1166 = vadd.f32 0.0, %v1165
      %v1167 = vpop.f32.mrf.mxu0
      %1168 = vmatprep.mubr.bf16.mxu0 0
      %1169 = vmatmul.mubr.bf16.gmra.mxu0 %v747
      %v1170 = vpop.f32.mrf.mxu0
      %v1171 = vadd.f32 0.0, %v1170
      %v1172 = vpop.f32.mrf.mxu0
      %v1173 = vpop.f32.mrf.mxu0
      %v1174 = vadd.f32 0.0, %v1173
      %v1175 = vpop.f32.mrf.mxu0
      %1176 = vmatprep.mubr.bf16.mxu0 0
      %1177 = vmatmul.mubr.bf16.gmra.mxu0 %v750
      %v1178 = vpop.f32.mrf.mxu0
      %v1179 = vadd.f32 0.0, %v1178
      %v1180 = vpop.f32.mrf.mxu0
      %v1181 = vpop.f32.mrf.mxu0
      %v1182 = vadd.f32 0.0, %v1181
      %v1183 = vpop.f32.mrf.mxu0
      %1184 = vmatprep.mubr.bf16.mxu0 0
      %1185 = vmatmul.mubr.bf16.gmra.mxu0 %v753
      %v1186 = vpop.f32.mrf.mxu0
      %v1187 = vadd.f32 0.0, %v1186
      %v1188 = vpop.f32.mrf.mxu0
      %v1189 = vpop.f32.mrf.mxu0
      %v1190 = vadd.f32 0.0, %v1189
      %v1191 = vpop.f32.mrf.mxu0
      %1192 = vmatprep.mubr.bf16.mxu0 0
      %1193 = vmatmul.mubr.bf16.gmra.mxu0 %v756
      %v1194 = vpop.f32.mrf.mxu0
      %v1195 = vadd.f32 0.0, %v1194
      %v1196 = vpop.f32.mrf.mxu0
      %v1197 = vpop.f32.mrf.mxu0
      %v1198 = vadd.f32 0.0, %v1197
      %v1199 = vpop.f32.mrf.mxu0
      %1200 = vmatprep.mubr.bf16.mxu0 0
      %1201 = vmatmul.mubr.bf16.gmra.mxu0 %v759
      %v1202 = vpop.f32.mrf.mxu0
      %v1203 = vadd.f32 0.0, %v1202
      %v1204 = vpop.f32.mrf.mxu0
      %v1205 = vpop.f32.mrf.mxu0
      %v1206 = vadd.f32 0.0, %v1205
      %v1207 = vpop.f32.mrf.mxu0
      %1208 = vmatprep.mubr.bf16.mxu0 0
      %1209 = vmatmul.mubr.bf16.gmra.mxu0 %v762
      %v1210 = vpop.f32.mrf.mxu0
      %v1211 = vadd.f32 0.0, %v1210
      %v1212 = vpop.f32.mrf.mxu0
      %v1213 = vpop.f32.mrf.mxu0
      %v1214 = vadd.f32 0.0, %v1213
      %v1215 = vpop.f32.mrf.mxu0
      %1216 = vdwg.mxu0
      %v1217 = vadd.f32 %v1038, %v1147
      %v1218 = vadd.f32 %v1041, %v1150
      %v1219 = vadd.f32 %v1046, %v1155
      %v1220 = vadd.f32 %v1049, %v1158
      %v1221 = vadd.f32 %v1054, %v1163
      %v1222 = vadd.f32 %v1057, %v1166
      %v1223 = vadd.f32 %v1062, %v1171
      %v1224 = vadd.f32 %v1065, %v1174
      %v1225 = vadd.f32 %v1070, %v1179
      %v1226 = vadd.f32 %v1073, %v1182
      %v1227 = vadd.f32 %v1078, %v1187
      %v1228 = vadd.f32 %v1081, %v1190
      %v1229 = vadd.f32 %v1086, %v1195
      %v1230 = vadd.f32 %v1089, %v1198
      %v1231 = vadd.f32 %v1094, %v1203
      %v1232 = vadd.f32 %v1097, %v1206
      %v1233 = vadd.f32 %v1102, %v1211
      %v1234 = vadd.f32 %v1105, %v1214
      %vm1253 = vcmask 1046528
      %v1254 = vrot.slane %v1217, 1
      %v1255 = vrot.slane %v1218, 1
      %v1256 = vsel %vm1253, %v1254, %v1255
      %v1257 = vrot.slane %v1219, 1
      %v1258 = vsel %vm1253, %v1255, %v1257
      %v1259 = vrot.slane %v1220, 1
      %v1260 = vsel %vm1253, %v1257, %v1259
      %v1261 = vrot.slane %v1221, 1
      %v1262 = vsel %vm1253, %v1259, %v1261
      %v1263 = vrot.slane %v1222, 1
      %v1264 = vsel %vm1253, %v1261, %v1263
      %v1265 = vrot.slane %v1223, 1
      %v1266 = vsel %vm1253, %v1263, %v1265
      %v1267 = vrot.slane %v1224, 1
      %v1268 = vsel %vm1253, %v1265, %v1267
      %v1269 = vrot.slane %v1225, 1
      %v1270 = vsel %vm1253, %v1267, %v1269
      %v1271 = vrot.slane %v1226, 1
      %v1272 = vsel %vm1253, %v1269, %v1271
      %v1273 = vrot.slane %v1227, 1
      %v1274 = vsel %vm1253, %v1271, %v1273
      %v1275 = vrot.slane %v1228, 1
      %v1276 = vsel %vm1253, %v1273, %v1275
      %v1277 = vrot.slane %v1229, 1
      %v1278 = vsel %vm1253, %v1275, %v1277
      %v1279 = vrot.slane %v1230, 1
      %v1280 = vsel %vm1253, %v1277, %v1279
      %v1281 = vrot.slane %v1231, 1
      %v1282 = vsel %vm1253, %v1279, %v1281
      %v1283 = vrot.slane %v1232, 1
      %v1284 = vsel %vm1253, %v1281, %v1283
      %v1285 = vrot.slane %v1233, 1
      %v1286 = vsel %vm1253, %v1283, %v1285
      %v1287 = vrot.slane %v1234, 1
      %v1288 = vsel %vm1253, %v1285, %v1287
      %v1307 = vsel %vm1253, %v1287, 0.0
      %v1308 = vadd.f32 %v872, %v1256
      %v1309 = vadd.f32 %v873, %v1258
      %v1310 = vadd.f32 %v874, %v1260
      %v1311 = vadd.f32 %v875, %v1262
      %v1312 = vadd.f32 %v876, %v1264
      %v1313 = vadd.f32 %v877, %v1266
      %v1314 = vadd.f32 %v878, %v1268
      %v1315 = vadd.f32 %v879, %v1270
      %v1316 = vadd.f32 %v880, %v1272
      %v1317 = vadd.f32 %v881, %v1274
      %v1318 = vadd.f32 %v882, %v1276
      %v1319 = vadd.f32 %v883, %v1278
      %v1320 = vadd.f32 %v884, %v1280
      %v1321 = vadd.f32 %v885, %v1282
      %v1322 = vadd.f32 %v886, %v1284
      %v1323 = vadd.f32 %v887, %v1286
      %v1324 = vadd.f32 %v888, %v1288
      %v1325 = vadd.f32 %v889, %v1307
      %v1326 = vld [vmem:[%s3 + $0x8] sm:$0xf]
      %v1327 = vld [vmem:[%s3 + $0x14] sm:$0xf]
      %v1329 = vsel %vm402, %v1327, 0
      %1331 = vmatprep.subr.bf16.mxu0 0
      %1332 = vmatpush1.bf16.msra.mxu0 0
      %1333 = vmatprep.subr.bf16.mxu0 0
      %1334 = vmatpush1.bf16.msra.mxu0 0
      %1335 = vmatprep.subr.bf16.mxu0 0
      %1336 = vmatpush1.bf16.msra.mxu0 0
      %1337 = vmatprep.subr.bf16.mxu0 0
      %1338 = vmatpush1.bf16.msra.mxu0 0
      %1339 = vmatprep.subr.bf16.mxu0 0
      %1340 = vmatpush1.bf16.msra.mxu0 0
      %1341 = vmatprep.subr.bf16.mxu0 0
      %1342 = vmatpush1.bf16.msra.mxu0 0
      %1343 = vmatprep.subr.bf16.mxu0 0
      %1344 = vmatpush1.bf16.msra.mxu0 0
      %1345 = vmatprep.subr.bf16.mxu0 0
      %1346 = vmatpush1.bf16.msra.mxu0 %v1329
      %1347 = vmatprep.subr.bf16.mxu0 0
      %1348 = vmatpush2.bf16.msra.mxu0 0
      %1349 = vmatprep.subr.bf16.mxu0 0
      %1350 = vmatpush2.bf16.msra.mxu0 0
      %1351 = vmatprep.subr.bf16.mxu0 0
      %1352 = vmatpush2.bf16.msra.mxu0 0
      %1353 = vmatprep.subr.bf16.mxu0 0
      %1354 = vmatpush2.bf16.msra.mxu0 0
      %1355 = vmatprep.subr.bf16.mxu0 0
      %1356 = vmatpush2.bf16.msra.mxu0 0
      %1357 = vmatprep.subr.bf16.mxu0 0
      %1358 = vmatpush2.bf16.msra.mxu0 0
      %1359 = vmatprep.subr.bf16.mxu0 0
      %1360 = vmatpush2.bf16.msra.mxu0 0
      %1361 = vmatprep.subr.bf16.mxu0 0
      %1362 = vmatpush2.bf16.msra.mxu0 0
      %1363 = vmatprep.mubr.bf16.mxu0 0
      %1364 = vmatmul.mubr.bf16.gmra.mxu0 %v376
      %v1365 = vpop.f32.mrf.mxu0
      %v1366 = vadd.f32 0.0, %v1365
      %v1367 = vpop.f32.mrf.mxu0
      %v1368 = vpop.f32.mrf.mxu0
      %v1369 = vadd.f32 0.0, %v1368
      %v1370 = vpop.f32.mrf.mxu0
      %1371 = vmatprep.mubr.bf16.mxu0 0
      %1372 = vmatmul.mubr.bf16.gmra.mxu0 %v379
      %v1373 = vpop.f32.mrf.mxu0
      %v1374 = vadd.f32 0.0, %v1373
      %v1375 = vpop.f32.mrf.mxu0
      %v1376 = vpop.f32.mrf.mxu0
      %v1377 = vadd.f32 0.0, %v1376
      %v1378 = vpop.f32.mrf.mxu0
      %1379 = vmatprep.mubr.bf16.mxu0 0
      %1380 = vmatmul.mubr.bf16.gmra.mxu0 %v382
      %v1381 = vpop.f32.mrf.mxu0
      %v1382 = vadd.f32 0.0, %v1381
      %v1383 = vpop.f32.mrf.mxu0
      %v1384 = vpop.f32.mrf.mxu0
      %v1385 = vadd.f32 0.0, %v1384
      %v1386 = vpop.f32.mrf.mxu0
      %1387 = vmatprep.mubr.bf16.mxu0 0
      %1388 = vmatmul.mubr.bf16.gmra.mxu0 %v385
      %v1389 = vpop.f32.mrf.mxu0
      %v1390 = vadd.f32 0.0, %v1389
      %v1391 = vpop.f32.mrf.mxu0
      %v1392 = vpop.f32.mrf.mxu0
      %v1393 = vadd.f32 0.0, %v1392
      %v1394 = vpop.f32.mrf.mxu0
      %1395 = vmatprep.mubr.bf16.mxu0 0
      %1396 = vmatmul.mubr.bf16.gmra.mxu0 %v388
      %v1397 = vpop.f32.mrf.mxu0
      %v1398 = vadd.f32 0.0, %v1397
      %v1399 = vpop.f32.mrf.mxu0
      %v1400 = vpop.f32.mrf.mxu0
      %v1401 = vadd.f32 0.0, %v1400
      %v1402 = vpop.f32.mrf.mxu0
      %1403 = vmatprep.mubr.bf16.mxu0 0
      %1404 = vmatmul.mubr.bf16.gmra.mxu0 %v391
      %v1405 = vpop.f32.mrf.mxu0
      %v1406 = vadd.f32 0.0, %v1405
      %v1407 = vpop.f32.mrf.mxu0
      %v1408 = vpop.f32.mrf.mxu0
      %v1409 = vadd.f32 0.0, %v1408
      %v1410 = vpop.f32.mrf.mxu0
      %1411 = vmatprep.mubr.bf16.mxu0 0
      %1412 = vmatmul.mubr.bf16.gmra.mxu0 %v394
      %v1413 = vpop.f32.mrf.mxu0
      %v1414 = vadd.f32 0.0, %v1413
      %v1415 = vpop.f32.mrf.mxu0
      %v1416 = vpop.f32.mrf.mxu0
      %v1417 = vadd.f32 0.0, %v1416
      %v1418 = vpop.f32.mrf.mxu0
      %1419 = vmatprep.mubr.bf16.mxu0 0
      %1420 = vmatmul.mubr.bf16.gmra.mxu0 %v397
      %v1421 = vpop.f32.mrf.mxu0
      %v1422 = vadd.f32 0.0, %v1421
      %v1423 = vpop.f32.mrf.mxu0
      %v1424 = vpop.f32.mrf.mxu0
      %v1425 = vadd.f32 0.0, %v1424
      %v1426 = vpop.f32.mrf.mxu0
      %1427 = vmatprep.mubr.bf16.mxu0 0
      %1428 = vmatmul.mubr.bf16.gmra.mxu0 %v400
      %v1429 = vpop.f32.mrf.mxu0
      %v1430 = vadd.f32 0.0, %v1429
      %v1431 = vpop.f32.mrf.mxu0
      %v1432 = vpop.f32.mrf.mxu0
      %v1433 = vadd.f32 0.0, %v1432
      %v1434 = vpop.f32.mrf.mxu0
      %1435 = vdwg.mxu0
      %v1437 = vsel %vm402, %v1326, 0
      %1439 = vmatprep.subr.bf16.mxu0 0
      %1440 = vmatpush1.bf16.msra.mxu0 0
      %1441 = vmatprep.subr.bf16.mxu0 0
      %1442 = vmatpush1.bf16.msra.mxu0 0
      %1443 = vmatprep.subr.bf16.mxu0 0
      %1444 = vmatpush1.bf16.msra.mxu0 0
      %1445 = vmatprep.subr.bf16.mxu0 0
      %1446 = vmatpush1.bf16.msra.mxu0 0
      %1447 = vmatprep.subr.bf16.mxu0 0
      %1448 = vmatpush1.bf16.msra.mxu0 0
      %1449 = vmatprep.subr.bf16.mxu0 0
      %1450 = vmatpush1.bf16.msra.mxu0 0
      %1451 = vmatprep.subr.bf16.mxu0 0
      %1452 = vmatpush1.bf16.msra.mxu0 0
      %1453 = vmatprep.subr.bf16.mxu0 0
      %1454 = vmatpush1.bf16.msra.mxu0 %v1437
      %1455 = vmatprep.subr.bf16.mxu0 0
      %1456 = vmatpush2.bf16.msra.mxu0 0
      %1457 = vmatprep.subr.bf16.mxu0 0
      %1458 = vmatpush2.bf16.msra.mxu0 0
      %1459 = vmatprep.subr.bf16.mxu0 0
      %1460 = vmatpush2.bf16.msra.mxu0 0
      %1461 = vmatprep.subr.bf16.mxu0 0
      %1462 = vmatpush2.bf16.msra.mxu0 0
      %1463 = vmatprep.subr.bf16.mxu0 0
      %1464 = vmatpush2.bf16.msra.mxu0 0
      %1465 = vmatprep.subr.bf16.mxu0 0
      %1466 = vmatpush2.bf16.msra.mxu0 0
      %1467 = vmatprep.subr.bf16.mxu0 0
      %1468 = vmatpush2.bf16.msra.mxu0 0
      %1469 = vmatprep.subr.bf16.mxu0 0
      %1470 = vmatpush2.bf16.msra.mxu0 0
      %1471 = vmatprep.mubr.bf16.mxu0 0
      %1472 = vmatmul.mubr.bf16.gmra.mxu0 %v557
      %v1473 = vpop.f32.mrf.mxu0
      %v1474 = vadd.f32 %v1366, %v1473
      %v1475 = vpop.f32.mrf.mxu0
      %v1476 = vpop.f32.mrf.mxu0
      %v1477 = vadd.f32 %v1369, %v1476
      %v1478 = vpop.f32.mrf.mxu0
      %1479 = vmatprep.mubr.bf16.mxu0 0
      %1480 = vmatmul.mubr.bf16.gmra.mxu0 %v560
      %v1481 = vpop.f32.mrf.mxu0
      %v1482 = vadd.f32 %v1374, %v1481
      %v1483 = vpop.f32.mrf.mxu0
      %v1484 = vpop.f32.mrf.mxu0
      %v1485 = vadd.f32 %v1377, %v1484
      %v1486 = vpop.f32.mrf.mxu0
      %1487 = vmatprep.mubr.bf16.mxu0 0
      %1488 = vmatmul.mubr.bf16.gmra.mxu0 %v563
      %v1489 = vpop.f32.mrf.mxu0
      %v1490 = vadd.f32 %v1382, %v1489
      %v1491 = vpop.f32.mrf.mxu0
      %v1492 = vpop.f32.mrf.mxu0
      %v1493 = vadd.f32 %v1385, %v1492
      %v1494 = vpop.f32.mrf.mxu0
      %1495 = vmatprep.mubr.bf16.mxu0 0
      %1496 = vmatmul.mubr.bf16.gmra.mxu0 %v566
      %v1497 = vpop.f32.mrf.mxu0
      %v1498 = vadd.f32 %v1390, %v1497
      %v1499 = vpop.f32.mrf.mxu0
      %v1500 = vpop.f32.mrf.mxu0
      %v1501 = vadd.f32 %v1393, %v1500
      %v1502 = vpop.f32.mrf.mxu0
      %1503 = vmatprep.mubr.bf16.mxu0 0
      %1504 = vmatmul.mubr.bf16.gmra.mxu0 %v569
      %v1505 = vpop.f32.mrf.mxu0
      %v1506 = vadd.f32 %v1398, %v1505
      %v1507 = vpop.f32.mrf.mxu0
      %v1508 = vpop.f32.mrf.mxu0
      %v1509 = vadd.f32 %v1401, %v1508
      %v1510 = vpop.f32.mrf.mxu0
      %1511 = vmatprep.mubr.bf16.mxu0 0
      %1512 = vmatmul.mubr.bf16.gmra.mxu0 %v572
      %v1513 = vpop.f32.mrf.mxu0
      %v1514 = vadd.f32 %v1406, %v1513
      %v1515 = vpop.f32.mrf.mxu0
      %v1516 = vpop.f32.mrf.mxu0
      %v1517 = vadd.f32 %v1409, %v1516
      %v1518 = vpop.f32.mrf.mxu0
      %1519 = vmatprep.mubr.bf16.mxu0 0
      %1520 = vmatmul.mubr.bf16.gmra.mxu0 %v575
      %v1521 = vpop.f32.mrf.mxu0
      %v1522 = vadd.f32 %v1414, %v1521
      %v1523 = vpop.f32.mrf.mxu0
      %v1524 = vpop.f32.mrf.mxu0
      %v1525 = vadd.f32 %v1417, %v1524
      %v1526 = vpop.f32.mrf.mxu0
      %1527 = vmatprep.mubr.bf16.mxu0 0
      %1528 = vmatmul.mubr.bf16.gmra.mxu0 %v578
      %v1529 = vpop.f32.mrf.mxu0
      %v1530 = vadd.f32 %v1422, %v1529
      %v1531 = vpop.f32.mrf.mxu0
      %v1532 = vpop.f32.mrf.mxu0
      %v1533 = vadd.f32 %v1425, %v1532
      %v1534 = vpop.f32.mrf.mxu0
      %1535 = vmatprep.mubr.bf16.mxu0 0
      %1536 = vmatmul.mubr.bf16.gmra.mxu0 %v581
      %v1537 = vpop.f32.mrf.mxu0
      %v1538 = vadd.f32 %v1430, %v1537
      %v1539 = vpop.f32.mrf.mxu0
      %v1540 = vpop.f32.mrf.mxu0
      %v1541 = vadd.f32 %v1433, %v1540
      %v1542 = vpop.f32.mrf.mxu0
      %1543 = vdwg.mxu0
      %v1544 = vld [vmem:[%s3 + $0x20] sm:$0xf]
      %v1546 = vsel %vm402, %v1544, 0
      %1548 = vmatprep.subr.bf16.mxu0 0
      %1549 = vmatpush1.bf16.msra.mxu0 0
      %1550 = vmatprep.subr.bf16.mxu0 0
      %1551 = vmatpush1.bf16.msra.mxu0 0
      %1552 = vmatprep.subr.bf16.mxu0 0
      %1553 = vmatpush1.bf16.msra.mxu0 0
      %1554 = vmatprep.subr.bf16.mxu0 0
      %1555 = vmatpush1.bf16.msra.mxu0 0
      %1556 = vmatprep.subr.bf16.mxu0 0
      %1557 = vmatpush1.bf16.msra.mxu0 0
      %1558 = vmatprep.subr.bf16.mxu0 0
      %1559 = vmatpush1.bf16.msra.mxu0 0
      %1560 = vmatprep.subr.bf16.mxu0 0
      %1561 = vmatpush1.bf16.msra.mxu0 0
      %1562 = vmatprep.subr.bf16.mxu0 0
      %1563 = vmatpush1.bf16.msra.mxu0 %v1546
      %1564 = vmatprep.subr.bf16.mxu0 0
      %1565 = vmatpush2.bf16.msra.mxu0 0
      %1566 = vmatprep.subr.bf16.mxu0 0
      %1567 = vmatpush2.bf16.msra.mxu0 0
      %1568 = vmatprep.subr.bf16.mxu0 0
      %1569 = vmatpush2.bf16.msra.mxu0 0
      %1570 = vmatprep.subr.bf16.mxu0 0
      %1571 = vmatpush2.bf16.msra.mxu0 0
      %1572 = vmatprep.subr.bf16.mxu0 0
      %1573 = vmatpush2.bf16.msra.mxu0 0
      %1574 = vmatprep.subr.bf16.mxu0 0
      %1575 = vmatpush2.bf16.msra.mxu0 0
      %1576 = vmatprep.subr.bf16.mxu0 0
      %1577 = vmatpush2.bf16.msra.mxu0 0
      %1578 = vmatprep.subr.bf16.mxu0 0
      %1579 = vmatpush2.bf16.msra.mxu0 0
      %1580 = vmatprep.mubr.bf16.mxu0 0
      %1581 = vmatmul.mubr.bf16.gmra.mxu0 %v738
      %v1582 = vpop.f32.mrf.mxu0
      %v1583 = vadd.f32 0.0, %v1582
      %v1584 = vpop.f32.mrf.mxu0
      %v1585 = vpop.f32.mrf.mxu0
      %v1586 = vadd.f32 0.0, %v1585
      %v1587 = vpop.f32.mrf.mxu0
      %1588 = vmatprep.mubr.bf16.mxu0 0
      %1589 = vmatmul.mubr.bf16.gmra.mxu0 %v741
      %v1590 = vpop.f32.mrf.mxu0
      %v1591 = vadd.f32 0.0, %v1590
      %v1592 = vpop.f32.mrf.mxu0
      %v1593 = vpop.f32.mrf.mxu0
      %v1594 = vadd.f32 0.0, %v1593
      %v1595 = vpop.f32.mrf.mxu0
      %1596 = vmatprep.mubr.bf16.mxu0 0
      %1597 = vmatmul.mubr.bf16.gmra.mxu0 %v744
      %v1598 = vpop.f32.mrf.mxu0
      %v1599 = vadd.f32 0.0, %v1598
      %v1600 = vpop.f32.mrf.mxu0
      %v1601 = vpop.f32.mrf.mxu0
      %v1602 = vadd.f32 0.0, %v1601
      %v1603 = vpop.f32.mrf.mxu0
      %1604 = vmatprep.mubr.bf16.mxu0 0
      %1605 = vmatmul.mubr.bf16.gmra.mxu0 %v747
      %v1606 = vpop.f32.mrf.mxu0
      %v1607 = vadd.f32 0.0, %v1606
      %v1608 = vpop.f32.mrf.mxu0
      %v1609 = vpop.f32.mrf.mxu0
      %v1610 = vadd.f32 0.0, %v1609
      %v1611 = vpop.f32.mrf.mxu0
      %1612 = vmatprep.mubr.bf16.mxu0 0
      %1613 = vmatmul.mubr.bf16.gmra.mxu0 %v750
      %v1614 = vpop.f32.mrf.mxu0
      %v1615 = vadd.f32 0.0, %v1614
      %v1616 = vpop.f32.mrf.mxu0
      %v1617 = vpop.f32.mrf.mxu0
      %v1618 = vadd.f32 0.0, %v1617
      %v1619 = vpop.f32.mrf.mxu0
      %1620 = vmatprep.mubr.bf16.mxu0 0
      %1621 = vmatmul.mubr.bf16.gmra.mxu0 %v753
      %v1622 = vpop.f32.mrf.mxu0
      %v1623 = vadd.f32 0.0, %v1622
      %v1624 = vpop.f32.mrf.mxu0
      %v1625 = vpop.f32.mrf.mxu0
      %v1626 = vadd.f32 0.0, %v1625
      %v1627 = vpop.f32.mrf.mxu0
      %1628 = vmatprep.mubr.bf16.mxu0 0
      %1629 = vmatmul.mubr.bf16.gmra.mxu0 %v756
      %v1630 = vpop.f32.mrf.mxu0
      %v1631 = vadd.f32 0.0, %v1630
      %v1632 = vpop.f32.mrf.mxu0
      %v1633 = vpop.f32.mrf.mxu0
      %v1634 = vadd.f32 0.0, %v1633
      %v1635 = vpop.f32.mrf.mxu0
      %1636 = vmatprep.mubr.bf16.mxu0 0
      %1637 = vmatmul.mubr.bf16.gmra.mxu0 %v759
      %v1638 = vpop.f32.mrf.mxu0
      %v1639 = vadd.f32 0.0, %v1638
      %v1640 = vpop.f32.mrf.mxu0
      %v1641 = vpop.f32.mrf.mxu0
      %v1642 = vadd.f32 0.0, %v1641
      %v1643 = vpop.f32.mrf.mxu0
      %1644 = vmatprep.mubr.bf16.mxu0 0
      %1645 = vmatmul.mubr.bf16.gmra.mxu0 %v762
      %v1646 = vpop.f32.mrf.mxu0
      %v1647 = vadd.f32 0.0, %v1646
      %v1648 = vpop.f32.mrf.mxu0
      %v1649 = vpop.f32.mrf.mxu0
      %v1650 = vadd.f32 0.0, %v1649
      %v1651 = vpop.f32.mrf.mxu0
      %1652 = vdwg.mxu0
      %v1653 = vadd.f32 %v1474, %v1583
      %v1654 = vadd.f32 %v1477, %v1586
      %v1655 = vadd.f32 %v1482, %v1591
      %v1656 = vadd.f32 %v1485, %v1594
      %v1657 = vadd.f32 %v1490, %v1599
      %v1658 = vadd.f32 %v1493, %v1602
      %v1659 = vadd.f32 %v1498, %v1607
      %v1660 = vadd.f32 %v1501, %v1610
      %v1661 = vadd.f32 %v1506, %v1615
      %v1662 = vadd.f32 %v1509, %v1618
      %v1663 = vadd.f32 %v1514, %v1623
      %v1664 = vadd.f32 %v1517, %v1626
      %v1665 = vadd.f32 %v1522, %v1631
      %v1666 = vadd.f32 %v1525, %v1634
      %v1667 = vadd.f32 %v1530, %v1639
      %v1668 = vadd.f32 %v1533, %v1642
      %v1669 = vadd.f32 %v1538, %v1647
      %v1670 = vadd.f32 %v1541, %v1650
      %vm1689 = vcmask 1045504
      %v1690 = vrot.slane %v1653, 2
      %v1691 = vrot.slane %v1654, 2
      %v1692 = vsel %vm1689, %v1690, %v1691
      %v1693 = vrot.slane %v1655, 2
      %v1694 = vsel %vm1689, %v1691, %v1693
      %v1695 = vrot.slane %v1656, 2
      %v1696 = vsel %vm1689, %v1693, %v1695
      %v1697 = vrot.slane %v1657, 2
      %v1698 = vsel %vm1689, %v1695, %v1697
      %v1699 = vrot.slane %v1658, 2
      %v1700 = vsel %vm1689, %v1697, %v1699
      %v1701 = vrot.slane %v1659, 2
      %v1702 = vsel %vm1689, %v1699, %v1701
      %v1703 = vrot.slane %v1660, 2
      %v1704 = vsel %vm1689, %v1701, %v1703
      %v1705 = vrot.slane %v1661, 2
      %v1706 = vsel %vm1689, %v1703, %v1705
      %v1707 = vrot.slane %v1662, 2
      %v1708 = vsel %vm1689, %v1705, %v1707
      %v1709 = vrot.slane %v1663, 2
      %v1710 = vsel %vm1689, %v1707, %v1709
      %v1711 = vrot.slane %v1664, 2
      %v1712 = vsel %vm1689, %v1709, %v1711
      %v1713 = vrot.slane %v1665, 2
      %v1714 = vsel %vm1689, %v1711, %v1713
      %v1715 = vrot.slane %v1666, 2
      %v1716 = vsel %vm1689, %v1713, %v1715
      %v1717 = vrot.slane %v1667, 2
      %v1718 = vsel %vm1689, %v1715, %v1717
      %v1719 = vrot.slane %v1668, 2
      %v1720 = vsel %vm1689, %v1717, %v1719
      %v1721 = vrot.slane %v1669, 2
      %v1722 = vsel %vm1689, %v1719, %v1721
      %v1723 = vrot.slane %v1670, 2
      %v1724 = vsel %vm1689, %v1721, %v1723
      %v1743 = vsel %vm1689, %v1723, 0.0
      %v1744 = vadd.f32 %v1308, %v1692
      %v1745 = vadd.f32 %v1309, %v1694
      %v1746 = vadd.f32 %v1310, %v1696
      %v1747 = vadd.f32 %v1311, %v1698
      %v1748 = vadd.f32 %v1312, %v1700
      %v1749 = vadd.f32 %v1313, %v1702
      %v1750 = vadd.f32 %v1314, %v1704
      %v1751 = vadd.f32 %v1315, %v1706
      %v1752 = vadd.f32 %v1316, %v1708
      %v1753 = vadd.f32 %v1317, %v1710
      %v1754 = vadd.f32 %v1318, %v1712
      %v1755 = vadd.f32 %v1319, %v1714
      %v1756 = vadd.f32 %v1320, %v1716
      %v1757 = vadd.f32 %v1321, %v1718
      %v1758 = vadd.f32 %v1322, %v1720
      %v1759 = vadd.f32 %v1323, %v1722
      %v1760 = vadd.f32 %v1324, %v1724
      %v1761 = vadd.f32 %v1325, %v1743
      %v1762 = vld [vmem:[%s4] sm:$0x1]
      %v1764 = vlaneseq
      %v1765 = vshrl.u32 %v1764, 7
      %v1766 = vsub.s32 0, %v1765
      %v1767 = vrot.slane %v1762, %v1766
      %v1769 = vadd.f32 %v1744, %v1767
      %v1770 = vadd.f32 %v1745, %v1767
      %v1771 = vadd.f32 %v1746, %v1767
      %v1772 = vadd.f32 %v1747, %v1767
      %v1773 = vadd.f32 %v1748, %v1767
      %v1774 = vadd.f32 %v1749, %v1767
      %v1775 = vadd.f32 %v1750, %v1767
      %v1776 = vadd.f32 %v1751, %v1767
      %v1777 = vadd.f32 %v1752, %v1767
      %v1778 = vadd.f32 %v1753, %v1767
      %v1779 = vadd.f32 %v1754, %v1767
      %v1780 = vadd.f32 %v1755, %v1767
      %v1781 = vadd.f32 %v1756, %v1767
      %v1782 = vadd.f32 %v1757, %v1767
      %v1783 = vadd.f32 %v1758, %v1767
      %v1784 = vadd.f32 %v1759, %v1767
      %v1785 = vadd.f32 %v1760, %v1767
      %v1786 = vadd.f32 %v1761, %v1767
      %v1787 = vmax.f32 %v1769, 0.0
      %v1788 = vmax.f32 %v1770, 0.0
      %v1789 = vmax.f32 %v1771, 0.0
      %v1790 = vmax.f32 %v1772, 0.0
      %v1791 = vmax.f32 %v1773, 0.0
      %v1792 = vmax.f32 %v1774, 0.0
      %v1793 = vmax.f32 %v1775, 0.0
      %v1794 = vmax.f32 %v1776, 0.0
      %v1795 = vmax.f32 %v1777, 0.0
      %v1796 = vmax.f32 %v1778, 0.0
      %v1797 = vmax.f32 %v1779, 0.0
      %v1798 = vmax.f32 %v1780, 0.0
      %v1799 = vmax.f32 %v1781, 0.0
      %v1800 = vmax.f32 %v1782, 0.0
      %v1801 = vmax.f32 %v1783, 0.0
      %v1802 = vmax.f32 %v1784, 0.0
      %v1803 = vmax.f32 %v1785, 0.0
      %v1804 = vmax.f32 %v1786, 0.0
      %v1805 = vpack.c.bf16 %v1788, %v1787
      %v1806 = vpack.c.bf16 %v1790, %v1789
      %v1807 = vpack.c.bf16 %v1792, %v1791
      %v1808 = vpack.c.bf16 %v1794, %v1793
      %v1809 = vpack.c.bf16 %v1796, %v1795
      %v1810 = vpack.c.bf16 %v1798, %v1797
      %v1811 = vpack.c.bf16 %v1800, %v1799
      %v1812 = vpack.c.bf16 %v1802, %v1801
      %v1813 = vpack.c.bf16 %v1804, %v1803
      %v1823 = vunpack.c.l.b16 %v1805
      %v1824 = vunpack.c.h.b16 %v1805
      %v1825 = vunpack.c.l.b16 %v1806
      %v1826 = vunpack.c.h.b16 %v1806
      %v1827 = vunpack.c.l.b16 %v1807
      %v1828 = vunpack.c.h.b16 %v1807
      %v1829 = vunpack.c.l.b16 %v1808
      %v1830 = vunpack.c.h.b16 %v1808
      %v1831 = vunpack.c.l.b16 %v1809
      %v1832 = vunpack.c.h.b16 %v1809
      %v1833 = vunpack.c.l.b16 %v1810
      %v1834 = vunpack.c.h.b16 %v1810
      %v1835 = vunpack.c.l.b16 %v1811
      %v1836 = vunpack.c.h.b16 %v1811
      %v1837 = vunpack.c.l.b16 %v1812
      %v1838 = vunpack.c.h.b16 %v1812
      %v1839 = vunpack.c.l.b16 %v1813
      %v1840 = vunpack.c.h.b16 %v1813
      %v1841 = vpack.c.b16 %v1823, %v1823
      %v1842 = vpack.c.b16 %v1824, %v1824
      %v1843 = vpack.c.b16 %v1825, %v1825
      %v1844 = vpack.c.b16 %v1826, %v1826
      %v1845 = vpack.c.b16 %v1827, %v1827
      %v1846 = vpack.c.b16 %v1828, %v1828
      %v1847 = vpack.c.b16 %v1829, %v1829
      %v1848 = vpack.c.b16 %v1830, %v1830
      %v1849 = vpack.c.b16 %v1831, %v1831
      %v1850 = vpack.c.b16 %v1832, %v1832
      %v1851 = vpack.c.b16 %v1833, %v1833
      %v1852 = vpack.c.b16 %v1834, %v1834
      %v1853 = vpack.c.b16 %v1835, %v1835
      %v1854 = vpack.c.b16 %v1836, %v1836
      %v1855 = vpack.c.b16 %v1837, %v1837
      %v1856 = vpack.c.b16 %v1838, %v1838
      %v1857 = vpack.c.b16 %v1839, %v1839
      %v1858 = vpack.c.b16 %v1840, %v1840
      %vm1877 = vcmask 125952
      %1878 = vst.msk [vmem:[%s270] sm:$0xf] %vm1877, %v1841
      %1879 = vst.msk [vmem:[%s270 + $0x4] sm:$0xf] %vm1877, %v1842
      %1880 = vst.msk [vmem:[%s270 + $0x8] sm:$0xf] %vm1877, %v1843
      %1881 = vst.msk [vmem:[%s270 + $0xc] sm:$0xf] %vm1877, %v1844
      %1882 = vst.msk [vmem:[%s270 + $0x10] sm:$0xf] %vm1877, %v1845
      %1883 = vst.msk [vmem:[%s270 + $0x14] sm:$0xf] %vm1877, %v1846
      %1884 = vst.msk [vmem:[%s270 + $0x18] sm:$0xf] %vm1877, %v1847
      %1885 = vst.msk [vmem:[%s270 + $0x1c] sm:$0xf] %vm1877, %v1848
      %1886 = vst.msk [vmem:[%s270 + $0x20] sm:$0xf] %vm1877, %v1849
      %1887 = vst.msk [vmem:[%s270 + $0x24] sm:$0xf] %vm1877, %v1850
      %1888 = vst.msk [vmem:[%s270 + $0x28] sm:$0xf] %vm1877, %v1851
      %1889 = vst.msk [vmem:[%s270 + $0x2c] sm:$0xf] %vm1877, %v1852
      %1890 = vst.msk [vmem:[%s270 + $0x30] sm:$0xf] %vm1877, %v1853
      %1891 = vst.msk [vmem:[%s270 + $0x34] sm:$0xf] %vm1877, %v1854
      %1892 = vst.msk [vmem:[%s270 + $0x38] sm:$0xf] %vm1877, %v1855
      %1893 = vst.msk [vmem:[%s270 + $0x3c] sm:$0xf] %vm1877, %v1856
      %1894 = vst.msk [vmem:[%s270 + $0x40] sm:$0xf] %vm1877, %v1857
      %1895 = vst.msk [vmem:[%s270 + $0x44] sm:$0xf] %vm1877, %v1858
      %s1896 = smul.u32 18, %s16
      %p1897 = scmp.lt.s32.totalorder %s1896, 35
      %s1898 = scalar_select %p1897, %s1896, 35
      %s1899 = smul.addr %s1898, 4
      %s1900 = scalar_lea.vmem %s5, %s1899
      // Predicated region
      $region41: #{_lambda_.4} parent=39 // pred_check
        %p1901 = pneg %p154
      $region42: #{_lambda_.4} parent=39 // pred_check_branch
        %1903 = sbr.rel (%p1901) target = $region44
      $region43: #{_lambda_.4} parent=39 // pred_region
        %s1904 = smul.u32 18, %s16
      $region44: #{_lambda_.4} parent=39 // pred_fallthru
        _
    $region40: #{_lambda_.4} parent=5 // pred_fallthru
      _
    %p1905 = scmp.le.s32.totalorder 2, %s11
    // Predicated region
    $region45: #{_lambda_.4} parent=5 // pred_check
      %p1906 = pneg %p1905
    $region46: #{_lambda_.4} parent=5 // pred_check_branch
      %1908 = sbr.rel (%p1906) target = $region48
    $region47: #{_lambda_.4} parent=5 // pred_region
      %s1909 = ssub.s32 %s11, 2
      // Predicated region
      $region49: #{_lambda_.4} parent=47 // pred_check
        %p1910 = pneg %p160
      $region50: #{_lambda_.4} parent=47 // pred_check_branch
        %1912 = sbr.rel (%p1910) target = $region52
      $region51: #{_lambda_.4} parent=47 // pred_region
        %s1913 = smul.u32 18, %s17
        %p1914 = scmp.lt.s32.totalorder %s1913, 35
        %s1915 = scalar_select %p1914, %s1913, 35
        %s1916 = smul.addr %s1915, 4
        %s1917 = scalar_lea.vmem %s5, %s1916
      $region52: #{_lambda_.4} parent=47 // pred_fallthru
        _
    $region48: #{_lambda_.4} parent=5 // pred_fallthru
      _
  $region6: #{_lambda_.4} parent=0 // loop_footer
    %s15 = sadd.s32 1, %s11
  $region7: #{_lambda_.4} parent=0 // loop_footer_branch
    %10 = sbr.rel target = $region3
  $region8: #{_lambda_.4} parent=0 // loop_exit
    _

// kernel: _lambda_.5
$region0: #{_lambda_.5}
  #allocation0 [shape = 'u32[]', space=smem, size = 0x4, offset = 0x4, fixed_abs, tag = 'smem constant byte address 0x4 - core index']
  #allocation1 [shape = 'u32[144,128]{1,0:T(1,128)}', space=vmem, size = 0x12000, scoped, tag = 'internal scratch']
  %s0 = inlined_call_operand.vmem [shape: bf16[160,16], index: 0, kind: input, shape index: {}]
  %s1 = inlined_call_operand.vmem [shape: bf16[160,16], index: 1, kind: input, shape index: {}]
  %s2 = inlined_call_operand.vmem [shape: bf16[160,16], index: 2, kind: input, shape index: {}]
  %s3 = inlined_call_operand.vmem [shape: bf16[144,8], index: 3, kind: input, shape index: {}]
  %s4 = inlined_call_operand.vmem [shape: f32[1,8], index: 4, kind: input, shape index: {}]
  %s5 = inlined_call_operand.vmem [shape: bf16[160,8], index: 5, kind: output, shape index: {0}]
  %s6 = inlined_call_operand.vmem [shape: bf16[160,16], index: 6, kind: output, shape index: {1}]
  %7 = xla_tuple %s5, %s6
  %s8 = sld [smem:[#allocation0]]
  $region61: #{_lambda_.5} parent=0
    _
  %s10 = ssub.s32 1, %s8
  %s11 = scalar_select 0, %s10, %s8
  loop: start=0, step=1, limit=4
  $region2: #{_lambda_.5} parent=0 // loop_pre_header
    _
  $region3: #{_lambda_.5} parent=0 // loop_header
    %s13 = sphi 0, %s17
    %p14 = scmp.ge.s32.totalorder %s13, 4
    %s23 = sphi 0, %s25
    %s26 = sphi 0, %s23
    %s27 = sphi 0, %s26
    %s43 = sphi 0, %s27
    %s49 = sphi 0, %s51
    %s52 = sphi 0, %s49
    %s53 = sphi 0, %s52
    %s69 = sphi 0, %s53
    %s75 = sphi 0, %s77
    %s78 = sphi 0, %s75
    %s79 = sphi 0, %s78
    %s95 = sphi 0, %s79
    %s99 = sphi 0, %s99
    %s101 = sphi 0, %s99
    %s102 = sphi 0, %s101
    %s116 = sphi 0, %s102
    %s120 = sphi 0, %s120
    %s122 = sphi 0, %s120
    %s123 = sphi 0, %s122
    %s137 = sphi 0, %s123
    %s143 = sphi 0, %s145
    %s146 = sphi 0, %s143
    %s147 = sphi 0, %s146
    %s163 = sphi 0, %s147
    %s169 = sphi 0, %s171
    %s172 = sphi 0, %s169
    %s173 = sphi 0, %s172
    %s189 = sphi 0, %s173
  $region4: #{_lambda_.5} parent=0 // loop_header_branch
    %16 = sbr.rel (%p14) target = $region8
  $region5: #{_lambda_.5} parent=0 // loop_body
    %s18 = ssub.s32 %s13, 1
    %s19 = ssub.s32 %s13, 2
    %s20 = sadd.s32 %s13, 1
    %s21 = ssub.s32 %s13, %s20
    %p22 = scmp.eq.s32.totalorder %s21, 0
    %s24 = sadd.s32 %s23, 1
    %s25 = scalar_select %p22, %s23, %s24
    %p28 = pneg %p22
    %p29 = scmp.eq.s32.totalorder %s13, 1
    %p30 = por %p28, %p29
    %p31 = scmp.ne.s32.totalorder %s23, %s26
    %p32 = scmp.eq.s32.totalorder %s13, 0
    %p33 = por %p31, %p32
    %p34 = scmp.ne.s32.totalorder %s23, %s26
    %p35 = scmp.eq.s32.totalorder %s18, 1
    %p36 = por %p34, %p35
    %p37 = scmp.ne.s32.totalorder %s26, %s27
    %p38 = scmp.eq.s32.totalorder %s18, 0
    %p39 = por %p37, %p38
    %p40 = scmp.ne.s32.totalorder %s26, %s27
    %p41 = scmp.eq.s32.totalorder %s19, 1
    %p42 = por %p40, %p41
    %p44 = scmp.ne.s32.totalorder %s27, %s43
    %p45 = scmp.eq.s32.totalorder %s19, 0
    %p46 = por %p44, %p45
    %s47 = ssub.s32 %s13, %s20
    %p48 = scmp.eq.s32.totalorder %s47, 0
    %s50 = sadd.s32 %s49, 1
    %s51 = scalar_select %p48, %s49, %s50
    %p54 = pneg %p48
    %p55 = scmp.eq.s32.totalorder %s13, 1
    %p56 = por %p54, %p55
    %p57 = scmp.ne.s32.totalorder %s49, %s52
    %p58 = scmp.eq.s32.totalorder %s13, 0
    %p59 = por %p57, %p58
    %p60 = scmp.ne.s32.totalorder %s49, %s52
    %p61 = scmp.eq.s32.totalorder %s18, 1
    %p62 = por %p60, %p61
    %p63 = scmp.ne.s32.totalorder %s52, %s53
    %p64 = scmp.eq.s32.totalorder %s18, 0
    %p65 = por %p63, %p64
    %p66 = scmp.ne.s32.totalorder %s52, %s53
    %p67 = scmp.eq.s32.totalorder %s19, 1
    %p68 = por %p66, %p67
    %p70 = scmp.ne.s32.totalorder %s53, %s69
    %p71 = scmp.eq.s32.totalorder %s19, 0
    %p72 = por %p70, %p71
    %s73 = ssub.s32 %s13, %s20
    %p74 = scmp.eq.s32.totalorder %s73, 0
    %s76 = sadd.s32 %s75, 1
    %s77 = scalar_select %p74, %s75, %s76
    %p80 = pneg %p74
    %p81 = scmp.eq.s32.totalorder %s13, 1
    %p82 = por %p80, %p81
    %p83 = scmp.ne.s32.totalorder %s75, %s78
    %p84 = scmp.eq.s32.totalorder %s13, 0
    %p85 = por %p83, %p84
    %p86 = scmp.ne.s32.totalorder %s75, %s78
    %p87 = scmp.eq.s32.totalorder %s18, 1
    %p88 = por %p86, %p87
    %p89 = scmp.ne.s32.totalorder %s78, %s79
    %p90 = scmp.eq.s32.totalorder %s18, 0
    %p91 = por %p89, %p90
    %p92 = scmp.ne.s32.totalorder %s78, %s79
    %p93 = scmp.eq.s32.totalorder %s19, 1
    %p94 = por %p92, %p93
    %p96 = scmp.ne.s32.totalorder %s79, %s95
    %p97 = scmp.eq.s32.totalorder %s19, 0
    %p98 = por %p96, %p97
    %s100 = sadd.s32 %s99, 1
    %p103 = scmp.eq.s32.totalorder %s13, 1
    %p104 = scmp.ne.s32.totalorder %s99, %s101
    %p105 = scmp.eq.s32.totalorder %s13, 0
    %p106 = por %p104, %p105
    %p107 = scmp.ne.s32.totalorder %s99, %s101
    %p108 = scmp.eq.s32.totalorder %s18, 1
    %p109 = por %p107, %p108
    %p110 = scmp.ne.s32.totalorder %s101, %s102
    %p111 = scmp.eq.s32.totalorder %s18, 0
    %p112 = por %p110, %p111
    %p113 = scmp.ne.s32.totalorder %s101, %s102
    %p114 = scmp.eq.s32.totalorder %s19, 1
    %p115 = por %p113, %p114
    %p117 = scmp.ne.s32.totalorder %s102, %s116
    %p118 = scmp.eq.s32.totalorder %s19, 0
    %p119 = por %p117, %p118
    %s121 = sadd.s32 %s120, 1
    %p124 = scmp.eq.s32.totalorder %s13, 1
    %p125 = scmp.ne.s32.totalorder %s120, %s122
    %p126 = scmp.eq.s32.totalorder %s13, 0
    %p127 = por %p125, %p126
    %p128 = scmp.ne.s32.totalorder %s120, %s122
    %p129 = scmp.eq.s32.totalorder %s18, 1
    %p130 = por %p128, %p129
    %p131 = scmp.ne.s32.totalorder %s122, %s123
    %p132 = scmp.eq.s32.totalorder %s18, 0
    %p133 = por %p131, %p132
    %p134 = scmp.ne.s32.totalorder %s122, %s123
    %p135 = scmp.eq.s32.totalorder %s19, 1
    %p136 = por %p134, %p135
    %p138 = scmp.ne.s32.totalorder %s123, %s137
    %p139 = scmp.eq.s32.totalorder %s19, 0
    %p140 = por %p138, %p139
    %s141 = ssub.s32 %s13, %s20
    %p142 = scmp.eq.s32.totalorder %s141, 0
    %s144 = sadd.s32 %s143, 1
    %s145 = scalar_select %p142, %s143, %s144
    %p148 = pneg %p142
    %p149 = scmp.eq.s32.totalorder %s13, 1
    %p150 = por %p148, %p149
    %p151 = scmp.ne.s32.totalorder %s143, %s146
    %p152 = scmp.eq.s32.totalorder %s13, 0
    %p153 = por %p151, %p152
    %p154 = scmp.ne.s32.totalorder %s143, %s146
    %p155 = scmp.eq.s32.totalorder %s18, 1
    %p156 = por %p154, %p155
    %p157 = scmp.ne.s32.totalorder %s146, %s147
    %p158 = scmp.eq.s32.totalorder %s18, 0
    %p159 = por %p157, %p158
    %p160 = scmp.ne.s32.totalorder %s146, %s147
    %p161 = scmp.eq.s32.totalorder %s19, 1
    %p162 = por %p160, %p161
    %p164 = scmp.ne.s32.totalorder %s147, %s163
    %p165 = scmp.eq.s32.totalorder %s19, 0
    %p166 = por %p164, %p165
    %s167 = ssub.s32 %s13, %s20
    %p168 = scmp.eq.s32.totalorder %s167, 0
    %s170 = sadd.s32 %s169, 1
    %s171 = scalar_select %p168, %s169, %s170
    %p174 = pneg %p168
    %p175 = scmp.eq.s32.totalorder %s13, 1
    %p176 = por %p174, %p175
    %p177 = scmp.ne.s32.totalorder %s169, %s172
    %p178 = scmp.eq.s32.totalorder %s13, 0
    %p179 = por %p177, %p178
    %p180 = scmp.ne.s32.totalorder %s169, %s172
    %p181 = scmp.eq.s32.totalorder %s18, 1
    %p182 = por %p180, %p181
    %p183 = scmp.ne.s32.totalorder %s172, %s173
    %p184 = scmp.eq.s32.totalorder %s18, 0
    %p185 = por %p183, %p184
    %p186 = scmp.ne.s32.totalorder %s172, %s173
    %p187 = scmp.eq.s32.totalorder %s19, 1
    %p188 = por %p186, %p187
    %p190 = scmp.ne.s32.totalorder %s173, %s189
    %p191 = scmp.eq.s32.totalorder %s19, 0
    %p192 = por %p190, %p191
    %p193 = scmp.le.s32.totalorder 1, %s13
    %p194 = scmp.lt.s32.totalorder %s13, 3
    %p195 = pnand %p193, %p194
    %p196 = pneg %p195
    // Predicated region
    $region9: #{_lambda_.5} parent=5 // pred_check
      _
    $region10: #{_lambda_.5} parent=5 // pred_check_branch
      %198 = sbr.rel (%p195) target = $region12
    $region11: #{_lambda_.5} parent=5 // pred_region
      %s199 = ssub.s32 %s13, 1
      // Predicated region
      $region13: #{_lambda_.5} parent=11 // pred_check
        %p200 = pneg %p112
      $region14: #{_lambda_.5} parent=11 // pred_check_branch
        %202 = sbr.rel (%p200) target = $region16
      $region15: #{_lambda_.5} parent=11 // pred_region
        _
      $region16: #{_lambda_.5} parent=11 // pred_fallthru
        _
      // Predicated region
      $region17: #{_lambda_.5} parent=11 // pred_check
        %p203 = pneg %p133
      $region18: #{_lambda_.5} parent=11 // pred_check_branch
        %205 = sbr.rel (%p203) target = $region20
      $region19: #{_lambda_.5} parent=11 // pred_region
        _
      $region20: #{_lambda_.5} parent=11 // pred_fallthru
        _
    $region12: #{_lambda_.5} parent=5 // pred_fallthru
      _
    %p206 = scmp.lt.s32.totalorder %s13, 2
    // Predicated region
    $region21: #{_lambda_.5} parent=5 // pred_check
      %p207 = pneg %p206
    $region22: #{_lambda_.5} parent=5 // pred_check_branch
      %209 = sbr.rel (%p207) target = $region24
    $region23: #{_lambda_.5} parent=5 // pred_region
      // Predicated region
      $region25: #{_lambda_.5} parent=23 // pred_check
        %p210 = pneg %p33
      $region26: #{_lambda_.5} parent=23 // pred_check_branch
        %212 = sbr.rel (%p210) target = $region28
      $region27: #{_lambda_.5} parent=23 // pred_region
        %s213 = smul.u32 10, %s13
        %p214 = scmp.lt.s32.totalorder %s213, 19
        %s215 = scalar_select %p214, %s213, 19
        %s216 = smul.addr %s215, 4
        %s217 = scalar_lea.vmem %s0, %s216
        %s218 = smul.u32 10, %s13
      $region28: #{_lambda_.5} parent=23 // pred_fallthru
        _
      // Predicated region
      $region29: #{_lambda_.5} parent=23 // pred_check
        %p219 = pneg %p59
      $region30: #{_lambda_.5} parent=23 // pred_check_branch
        %221 = sbr.rel (%p219) target = $region32
      $region31: #{_lambda_.5} parent=23 // pred_region
        %s222 = smul.u32 10, %s13
        %p223 = scmp.lt.s32.totalorder %s222, 19
        %s224 = scalar_select %p223, %s222, 19
        %s225 = smul.addr %s224, 4
        %s226 = scalar_lea.vmem %s1, %s225
        %s227 = smul.u32 10, %s13
      $region32: #{_lambda_.5} parent=23 // pred_fallthru
        _
      // Predicated region
      $region33: #{_lambda_.5} parent=23 // pred_check
        %p228 = pneg %p85
      $region34: #{_lambda_.5} parent=23 // pred_check_branch
        %230 = sbr.rel (%p228) target = $region36
      $region35: #{_lambda_.5} parent=23 // pred_region
        %s231 = smul.u32 10, %s13
        %p232 = scmp.lt.s32.totalorder %s231, 19
        %s233 = scalar_select %p232, %s231, 19
        %s234 = smul.addr %s233, 4
        %s235 = scalar_lea.vmem %s2, %s234
        %s236 = smul.u32 10, %s13
      $region36: #{_lambda_.5} parent=23 // pred_fallthru
        _
    $region24: #{_lambda_.5} parent=5 // pred_fallthru
      _
    %p237 = scmp.le.s32.totalorder 1, %s13
    %p238 = scmp.lt.s32.totalorder %s13, 3
    %p239 = pnand %p237, %p238
    %p240 = pneg %p239
    // Predicated region
    $region37: #{_lambda_.5} parent=5 // pred_check
      _
    $region38: #{_lambda_.5} parent=5 // pred_check_branch
      %242 = sbr.rel (%p239) target = $region40
    $region39: #{_lambda_.5} parent=5 // pred_region
      %s243 = ssub.s32 %s13, 1
      %s244 = smul.u32 10, %s18
      %p245 = scmp.lt.s32.totalorder %s244, 19
      %s246 = scalar_select %p245, %s244, 19
      %s247 = smul.addr %s246, 4
      %s248 = scalar_lea.vmem %s0, %s247
      %p249 = pneg %p39
      %p250 = pneg %p36
      %s251 = smul.u32 10, %s18
      %p252 = scmp.lt.s32.totalorder %s251, 19
      %s253 = scalar_select %p252, %s251, 19
      %s254 = smul.addr %s253, 4
      %s255 = scalar_lea.vmem %s1, %s254
      %p256 = pneg %p65
      %p257 = pneg %p62
      %s258 = smul.u32 10, %s18
      %p259 = scmp.lt.s32.totalorder %s258, 19
      %s260 = scalar_select %p259, %s258, 19
      %s261 = smul.addr %s260, 4
      %s262 = scalar_lea.vmem %s2, %s261
      %p263 = pneg %p91
      %p264 = pneg %p88
      %p265 = pneg %p112
      %p266 = pneg %p109
      %p267 = pneg %p133
      %p268 = pneg %p130
      %p269 = pneg %p159
      %p270 = pneg %p156
      %s271 = smul.u32 10, %s18
      %p272 = scmp.lt.s32.totalorder %s271, 19
      %s273 = scalar_select %p272, %s271, 19
      %s274 = smul.addr %s273, 4
      %s275 = scalar_lea.vmem %s5, %s274
      %p276 = pneg %p185
      %p277 = pneg %p182
      %s278 = smul.u32 10, %s18
      %p279 = scmp.lt.s32.totalorder %s278, 19
      %s280 = scalar_select %p279, %s278, 19
      %s281 = smul.addr %s280, 4
      %s282 = scalar_lea.vmem %s6, %s281
      %s283 = smul.u32 10, %s18
      %p284 = scmp.lt.s32.totalorder %s283, 19
      %s285 = scalar_select %p284, %s283, 19
      %s286 = smul.addr %s285, 4
      %s287 = scalar_lea.vmem %s0, %s286
      %s288 = smul.u32 10, %s18
      %s289 = smul.u32 10, %s18
      %p290 = scmp.lt.s32.totalorder %s289, 19
      %s291 = scalar_select %p290, %s289, 19
      %s292 = smul.addr %s291, 4
      %s293 = scalar_lea.vmem %s1, %s292
      %s294 = smul.u32 10, %s18
      %s295 = smul.u32 10, %s18
      %p296 = scmp.lt.s32.totalorder %s295, 19
      %s297 = scalar_select %p296, %s295, 19
      %s298 = smul.addr %s297, 4
      %s299 = scalar_lea.vmem %s2, %s298
      %s300 = smul.u32 10, %s18
      %s301 = smul.u32 10, %s18
      %p302 = scmp.lt.s32.totalorder %s301, 19
      %s303 = scalar_select %p302, %s301, 19
      %s304 = smul.addr %s303, 4
      %s305 = scalar_lea.vmem %s5, %s304
      %s306 = smul.u32 10, %s18
      %s307 = smul.u32 10, %s18
      %p308 = scmp.lt.s32.totalorder %s307, 19
      %s309 = scalar_select %p308, %s307, 19
      %s310 = smul.addr %s309, 4
      %s311 = scalar_lea.vmem %s6, %s310
      %s312 = smul.u32 10, %s18
      %v314 = vld [vmem:[%s287] sm:$0xf]
      %v315 = vld [vmem:[%s287 + $0x4] sm:$0xf]
      %v316 = vld [vmem:[%s287 + $0x8] sm:$0xf]
      %v317 = vld [vmem:[%s287 + $0xc] sm:$0xf]
      %v318 = vld [vmem:[%s287 + $0x10] sm:$0xf]
      %v319 = vld [vmem:[%s287 + $0x14] sm:$0xf]
      %v320 = vld [vmem:[%s287 + $0x18] sm:$0xf]
      %v321 = vld [vmem:[%s287 + $0x1c] sm:$0xf]
      %v322 = vld [vmem:[%s287 + $0x20] sm:$0xf]
      %v323 = vld [vmem:[%s287 + $0x24] sm:$0xf]
      %v324 = vld [vmem:[%s293] sm:$0xf]
      %v325 = vld [vmem:[%s293 + $0x4] sm:$0xf]
      %v326 = vld [vmem:[%s293 + $0x8] sm:$0xf]
      %v327 = vld [vmem:[%s293 + $0xc] sm:$0xf]
      %v328 = vld [vmem:[%s293 + $0x10] sm:$0xf]
      %v329 = vld [vmem:[%s293 + $0x14] sm:$0xf]
      %v330 = vld [vmem:[%s293 + $0x18] sm:$0xf]
      %v331 = vld [vmem:[%s293 + $0x1c] sm:$0xf]
      %v332 = vld [vmem:[%s293 + $0x20] sm:$0xf]
      %v333 = vld [vmem:[%s293 + $0x24] sm:$0xf]
      %v334 = vld [vmem:[%s299] sm:$0xf]
      %v335 = vld [vmem:[%s299 + $0x4] sm:$0xf]
      %v336 = vld [vmem:[%s299 + $0x8] sm:$0xf]
      %v337 = vld [vmem:[%s299 + $0xc] sm:$0xf]
      %v338 = vld [vmem:[%s299 + $0x10] sm:$0xf]
      %v339 = vld [vmem:[%s299 + $0x14] sm:$0xf]
      %v340 = vld [vmem:[%s299 + $0x18] sm:$0xf]
      %v341 = vld [vmem:[%s299 + $0x1c] sm:$0xf]
      %v342 = vld [vmem:[%s299 + $0x20] sm:$0xf]
      %v343 = vld [vmem:[%s299 + $0x24] sm:$0xf]
      %v344 = vld [vmem:[%s3] sm:$0xf]
      %v345 = vld [vmem:[%s3 + $0x4] sm:$0xf]
      %v346 = vld [vmem:[%s3 + $0x18] sm:$0xf]
      %v347 = vld [vmem:[%s3 + $0x1c] sm:$0xf]
      %v358 = vunpack.c.l.b16 %v324
      %v359 = vunpack.c.l.b16 %v325
      %v360 = vunpack.c.l.b16 %v326
      %v361 = vunpack.c.l.b16 %v327
      %v362 = vunpack.c.l.b16 %v328
      %v363 = vunpack.c.l.b16 %v329
      %v364 = vunpack.c.l.b16 %v330
      %v365 = vunpack.c.l.b16 %v331
      %v366 = vunpack.c.l.b16 %v332
      %v367 = vunpack.c.l.b16 %v333
      %v368 = vpack.c.b16 %v359, %v358
      %v369 = vpack.c.b16 %v361, %v360
      %v370 = vpack.c.b16 %v363, %v362
      %v371 = vpack.c.b16 %v365, %v364
      %v372 = vpack.c.b16 %v367, %v366
      %v375 = vunpack.c.l.b16 %v346
      %v376 = vunpack.c.l.b16 %v347
      %v377 = vpack.c.b16 %v376, %v375
      %vm379 = vcmask 130048
      %v381 = vsel %vm379, %v368, 0
      %v384 = vsel %vm379, %v369, 0
      %v387 = vsel %vm379, %v370, 0
      %v390 = vsel %vm379, %v371, 0
      %v393 = vsel %vm379, %v372, 0
      %395 = vmatprep.subr.bf16.mxu0 0
      %396 = vmatpush1.bf16.msra.mxu0 0
      %397 = vmatprep.subr.bf16.mxu0 0
      %398 = vmatpush1.bf16.msra.mxu0 0
      %399 = vmatprep.subr.bf16.mxu0 0
      %400 = vmatpush1.bf16.msra.mxu0 0
      %401 = vmatprep.subr.bf16.mxu0 0
      %402 = vmatpush1.bf16.msra.mxu0 0
      %403 = vmatprep.subr.bf16.mxu0 0
      %404 = vmatpush1.bf16.msra.mxu0 0
      %405 = vmatprep.subr.bf16.mxu0 0
      %406 = vmatpush1.bf16.msra.mxu0 0
      %407 = vmatprep.subr.bf16.mxu0 0
      %408 = vmatpush1.bf16.msra.mxu0 0
      %409 = vmatprep.subr.bf16.mxu0 0
      %410 = vmatpush1.bf16.msra.mxu0 %v377
      %411 = vmatprep.subr.bf16.mxu0 0
      %412 = vmatpush2.bf16.msra.mxu0 0
      %413 = vmatprep.subr.bf16.mxu0 0
      %414 = vmatpush2.bf16.msra.mxu0 0
      %415 = vmatprep.subr.bf16.mxu0 0
      %416 = vmatpush2.bf16.msra.mxu0 0
      %417 = vmatprep.subr.bf16.mxu0 0
      %418 = vmatpush2.bf16.msra.mxu0 0
      %419 = vmatprep.subr.bf16.mxu0 0
      %420 = vmatpush2.bf16.msra.mxu0 0
      %421 = vmatprep.subr.bf16.mxu0 0
      %422 = vmatpush2.bf16.msra.mxu0 0
      %423 = vmatprep.subr.bf16.mxu0 0
      %424 = vmatpush2.bf16.msra.mxu0 0
      %425 = vmatprep.subr.bf16.mxu0 0
      %426 = vmatpush2.bf16.msra.mxu0 0
      %427 = vmatprep.mubr.bf16.mxu0 0
      %428 = vmatmul.mubr.bf16.gmra.mxu0 %v381
      %v429 = vpop.f32.mrf.mxu0
      %v430 = vadd.f32 0.0, %v429
      %v431 = vpop.f32.mrf.mxu0
      %v432 = vpop.f32.mrf.mxu0
      %v433 = vadd.f32 0.0, %v432
      %v434 = vpop.f32.mrf.mxu0
      %435 = vmatprep.mubr.bf16.mxu0 0
      %436 = vmatmul.mubr.bf16.gmra.mxu0 %v384
      %v437 = vpop.f32.mrf.mxu0
      %v438 = vadd.f32 0.0, %v437
      %v439 = vpop.f32.mrf.mxu0
      %v440 = vpop.f32.mrf.mxu0
      %v441 = vadd.f32 0.0, %v440
      %v442 = vpop.f32.mrf.mxu0
      %443 = vmatprep.mubr.bf16.mxu0 0
      %444 = vmatmul.mubr.bf16.gmra.mxu0 %v387
      %v445 = vpop.f32.mrf.mxu0
      %v446 = vadd.f32 0.0, %v445
      %v447 = vpop.f32.mrf.mxu0
      %v448 = vpop.f32.mrf.mxu0
      %v449 = vadd.f32 0.0, %v448
      %v450 = vpop.f32.mrf.mxu0
      %451 = vmatprep.mubr.bf16.mxu0 0
      %452 = vmatmul.mubr.bf16.gmra.mxu0 %v390
      %v453 = vpop.f32.mrf.mxu0
      %v454 = vadd.f32 0.0, %v453
      %v455 = vpop.f32.mrf.mxu0
      %v456 = vpop.f32.mrf.mxu0
      %v457 = vadd.f32 0.0, %v456
      %v458 = vpop.f32.mrf.mxu0
      %459 = vmatprep.mubr.bf16.mxu0 0
      %460 = vmatmul.mubr.bf16.gmra.mxu0 %v393
      %v461 = vpop.f32.mrf.mxu0
      %v462 = vadd.f32 0.0, %v461
      %v463 = vpop.f32.mrf.mxu0
      %v464 = vpop.f32.mrf.mxu0
      %v465 = vadd.f32 0.0, %v464
      %v466 = vpop.f32.mrf.mxu0
      %467 = vdwg.mxu0
      %v478 = vunpack.c.l.b16 %v314
      %v479 = vunpack.c.l.b16 %v315
      %v480 = vunpack.c.l.b16 %v316
      %v481 = vunpack.c.l.b16 %v317
      %v482 = vunpack.c.l.b16 %v318
      %v483 = vunpack.c.l.b16 %v319
      %v484 = vunpack.c.l.b16 %v320
      %v485 = vunpack.c.l.b16 %v321
      %v486 = vunpack.c.l.b16 %v322
      %v487 = vunpack.c.l.b16 %v323
      %v488 = vpack.c.b16 %v479, %v478
      %v489 = vpack.c.b16 %v481, %v480
      %v490 = vpack.c.b16 %v483, %v482
      %v491 = vpack.c.b16 %v485, %v484
      %v492 = vpack.c.b16 %v487, %v486
      %v495 = vunpack.c.l.b16 %v344
      %v496 = vunpack.c.l.b16 %v345
      %v497 = vpack.c.b16 %v496, %v495
      %v500 = vsel %vm379, %v488, 0
      %v503 = vsel %vm379, %v489, 0
      %v506 = vsel %vm379, %v490, 0
      %v509 = vsel %vm379, %v491, 0
      %v512 = vsel %vm379, %v492, 0
      %514 = vmatprep.subr.bf16.mxu0 0
      %515 = vmatpush1.bf16.msra.mxu0 0
      %516 = vmatprep.subr.bf16.mxu0 0
      %517 = vmatpush1.bf16.msra.mxu0 0
      %518 = vmatprep.subr.bf16.mxu0 0
      %519 = vmatpush1.bf16.msra.mxu0 0
      %520 = vmatprep.subr.bf16.mxu0 0
      %521 = vmatpush1.bf16.msra.mxu0 0
      %522 = vmatprep.subr.bf16.mxu0 0
      %523 = vmatpush1.bf16.msra.mxu0 0
      %524 = vmatprep.subr.bf16.mxu0 0
      %525 = vmatpush1.bf16.msra.mxu0 0
      %526 = vmatprep.subr.bf16.mxu0 0
      %527 = vmatpush1.bf16.msra.mxu0 0
      %528 = vmatprep.subr.bf16.mxu0 0
      %529 = vmatpush1.bf16.msra.mxu0 %v497
      %530 = vmatprep.subr.bf16.mxu0 0
      %531 = vmatpush2.bf16.msra.mxu0 0
      %532 = vmatprep.subr.bf16.mxu0 0
      %533 = vmatpush2.bf16.msra.mxu0 0
      %534 = vmatprep.subr.bf16.mxu0 0
      %535 = vmatpush2.bf16.msra.mxu0 0
      %536 = vmatprep.subr.bf16.mxu0 0
      %537 = vmatpush2.bf16.msra.mxu0 0
      %538 = vmatprep.subr.bf16.mxu0 0
      %539 = vmatpush2.bf16.msra.mxu0 0
      %540 = vmatprep.subr.bf16.mxu0 0
      %541 = vmatpush2.bf16.msra.mxu0 0
      %542 = vmatprep.subr.bf16.mxu0 0
      %543 = vmatpush2.bf16.msra.mxu0 0
      %544 = vmatprep.subr.bf16.mxu0 0
      %545 = vmatpush2.bf16.msra.mxu0 0
      %546 = vmatprep.mubr.bf16.mxu0 0
      %547 = vmatmul.mubr.bf16.gmra.mxu0 %v500
      %v548 = vpop.f32.mrf.mxu0
      %v549 = vadd.f32 %v430, %v548
      %v550 = vpop.f32.mrf.mxu0
      %v551 = vpop.f32.mrf.mxu0
      %v552 = vadd.f32 %v433, %v551
      %v553 = vpop.f32.mrf.mxu0
      %554 = vmatprep.mubr.bf16.mxu0 0
      %555 = vmatmul.mubr.bf16.gmra.mxu0 %v503
      %v556 = vpop.f32.mrf.mxu0
      %v557 = vadd.f32 %v438, %v556
      %v558 = vpop.f32.mrf.mxu0
      %v559 = vpop.f32.mrf.mxu0
      %v560 = vadd.f32 %v441, %v559
      %v561 = vpop.f32.mrf.mxu0
      %562 = vmatprep.mubr.bf16.mxu0 0
      %563 = vmatmul.mubr.bf16.gmra.mxu0 %v506
      %v564 = vpop.f32.mrf.mxu0
      %v565 = vadd.f32 %v446, %v564
      %v566 = vpop.f32.mrf.mxu0
      %v567 = vpop.f32.mrf.mxu0
      %v568 = vadd.f32 %v449, %v567
      %v569 = vpop.f32.mrf.mxu0
      %570 = vmatprep.mubr.bf16.mxu0 0
      %571 = vmatmul.mubr.bf16.gmra.mxu0 %v509
      %v572 = vpop.f32.mrf.mxu0
      %v573 = vadd.f32 %v454, %v572
      %v574 = vpop.f32.mrf.mxu0
      %v575 = vpop.f32.mrf.mxu0
      %v576 = vadd.f32 %v457, %v575
      %v577 = vpop.f32.mrf.mxu0
      %578 = vmatprep.mubr.bf16.mxu0 0
      %579 = vmatmul.mubr.bf16.gmra.mxu0 %v512
      %v580 = vpop.f32.mrf.mxu0
      %v581 = vadd.f32 %v462, %v580
      %v582 = vpop.f32.mrf.mxu0
      %v583 = vpop.f32.mrf.mxu0
      %v584 = vadd.f32 %v465, %v583
      %v585 = vpop.f32.mrf.mxu0
      %586 = vdwg.mxu0
      %v587 = vld [vmem:[%s3 + $0x30] sm:$0xf]
      %v588 = vld [vmem:[%s3 + $0x34] sm:$0xf]
      %v599 = vunpack.c.l.b16 %v334
      %v600 = vunpack.c.l.b16 %v335
      %v601 = vunpack.c.l.b16 %v336
      %v602 = vunpack.c.l.b16 %v337
      %v603 = vunpack.c.l.b16 %v338
      %v604 = vunpack.c.l.b16 %v339
      %v605 = vunpack.c.l.b16 %v340
      %v606 = vunpack.c.l.b16 %v341
      %v607 = vunpack.c.l.b16 %v342
      %v608 = vunpack.c.l.b16 %v343
      %v609 = vpack.c.b16 %v600, %v599
      %v610 = vpack.c.b16 %v602, %v601
      %v611 = vpack.c.b16 %v604, %v603
      %v612 = vpack.c.b16 %v606, %v605
      %v613 = vpack.c.b16 %v608, %v607
      %v616 = vunpack.c.l.b16 %v587
      %v617 = vunpack.c.l.b16 %v588
      %v618 = vpack.c.b16 %v617, %v616
      %v621 = vsel %vm379, %v609, 0
      %v624 = vsel %vm379, %v610, 0
      %v627 = vsel %vm379, %v611, 0
      %v630 = vsel %vm379, %v612, 0
      %v633 = vsel %vm379, %v613, 0
      %635 = vmatprep.subr.bf16.mxu0 0
      %636 = vmatpush1.bf16.msra.mxu0 0
      %637 = vmatprep.subr.bf16.mxu0 0
      %638 = vmatpush1.bf16.msra.mxu0 0
      %639 = vmatprep.subr.bf16.mxu0 0
      %640 = vmatpush1.bf16.msra.mxu0 0
      %641 = vmatprep.subr.bf16.mxu0 0
      %642 = vmatpush1.bf16.msra.mxu0 0
      %643 = vmatprep.subr.bf16.mxu0 0
      %644 = vmatpush1.bf16.msra.mxu0 0
      %645 = vmatprep.subr.bf16.mxu0 0
      %646 = vmatpush1.bf16.msra.mxu0 0
      %647 = vmatprep.subr.bf16.mxu0 0
      %648 = vmatpush1.bf16.msra.mxu0 0
      %649 = vmatprep.subr.bf16.mxu0 0
      %650 = vmatpush1.bf16.msra.mxu0 %v618
      %651 = vmatprep.subr.bf16.mxu0 0
      %652 = vmatpush2.bf16.msra.mxu0 0
      %653 = vmatprep.subr.bf16.mxu0 0
      %654 = vmatpush2.bf16.msra.mxu0 0
      %655 = vmatprep.subr.bf16.mxu0 0
      %656 = vmatpush2.bf16.msra.mxu0 0
      %657 = vmatprep.subr.bf16.mxu0 0
      %658 = vmatpush2.bf16.msra.mxu0 0
      %659 = vmatprep.subr.bf16.mxu0 0
      %660 = vmatpush2.bf16.msra.mxu0 0
      %661 = vmatprep.subr.bf16.mxu0 0
      %662 = vmatpush2.bf16.msra.mxu0 0
      %663 = vmatprep.subr.bf16.mxu0 0
      %664 = vmatpush2.bf16.msra.mxu0 0
      %665 = vmatprep.subr.bf16.mxu0 0
      %666 = vmatpush2.bf16.msra.mxu0 0
      %667 = vmatprep.mubr.bf16.mxu0 0
      %668 = vmatmul.mubr.bf16.gmra.mxu0 %v621
      %v669 = vpop.f32.mrf.mxu0
      %v670 = vadd.f32 0.0, %v669
      %v671 = vpop.f32.mrf.mxu0
      %v672 = vpop.f32.mrf.mxu0
      %v673 = vadd.f32 0.0, %v672
      %v674 = vpop.f32.mrf.mxu0
      %675 = vmatprep.mubr.bf16.mxu0 0
      %676 = vmatmul.mubr.bf16.gmra.mxu0 %v624
      %v677 = vpop.f32.mrf.mxu0
      %v678 = vadd.f32 0.0, %v677
      %v679 = vpop.f32.mrf.mxu0
      %v680 = vpop.f32.mrf.mxu0
      %v681 = vadd.f32 0.0, %v680
      %v682 = vpop.f32.mrf.mxu0
      %683 = vmatprep.mubr.bf16.mxu0 0
      %684 = vmatmul.mubr.bf16.gmra.mxu0 %v627
      %v685 = vpop.f32.mrf.mxu0
      %v686 = vadd.f32 0.0, %v685
      %v687 = vpop.f32.mrf.mxu0
      %v688 = vpop.f32.mrf.mxu0
      %v689 = vadd.f32 0.0, %v688
      %v690 = vpop.f32.mrf.mxu0
      %691 = vmatprep.mubr.bf16.mxu0 0
      %692 = vmatmul.mubr.bf16.gmra.mxu0 %v630
      %v693 = vpop.f32.mrf.mxu0
      %v694 = vadd.f32 0.0, %v693
      %v695 = vpop.f32.mrf.mxu0
      %v696 = vpop.f32.mrf.mxu0
      %v697 = vadd.f32 0.0, %v696
      %v698 = vpop.f32.mrf.mxu0
      %699 = vmatprep.mubr.bf16.mxu0 0
      %700 = vmatmul.mubr.bf16.gmra.mxu0 %v633
      %v701 = vpop.f32.mrf.mxu0
      %v702 = vadd.f32 0.0, %v701
      %v703 = vpop.f32.mrf.mxu0
      %v704 = vpop.f32.mrf.mxu0
      %v705 = vadd.f32 0.0, %v704
      %v706 = vpop.f32.mrf.mxu0
      %707 = vdwg.mxu0
      %v708 = vadd.f32 %v549, %v670
      %v709 = vadd.f32 %v552, %v673
      %v710 = vadd.f32 %v557, %v678
      %v711 = vadd.f32 %v560, %v681
      %v712 = vadd.f32 %v565, %v686
      %v713 = vadd.f32 %v568, %v689
      %v714 = vadd.f32 %v573, %v694
      %v715 = vadd.f32 %v576, %v697
      %v716 = vadd.f32 %v581, %v702
      %v717 = vadd.f32 %v584, %v705
      %v718 = vld [vmem:[%s3 + $0x8] sm:$0xf]
      %v719 = vld [vmem:[%s3 + $0xc] sm:$0xf]
      %v720 = vld [vmem:[%s3 + $0x20] sm:$0xf]
      %v721 = vld [vmem:[%s3 + $0x24] sm:$0xf]
      %v724 = vunpack.c.l.b16 %v720
      %v725 = vunpack.c.l.b16 %v721
      %v726 = vpack.c.b16 %v725, %v724
      %728 = vmatprep.subr.bf16.mxu0 0
      %729 = vmatpush1.bf16.msra.mxu0 0
      %730 = vmatprep.subr.bf16.mxu0 0
      %731 = vmatpush1.bf16.msra.mxu0 0
      %732 = vmatprep.subr.bf16.mxu0 0
      %733 = vmatpush1.bf16.msra.mxu0 0
      %734 = vmatprep.subr.bf16.mxu0 0
      %735 = vmatpush1.bf16.msra.mxu0 0
      %736 = vmatprep.subr.bf16.mxu0 0
      %737 = vmatpush1.bf16.msra.mxu0 0
      %738 = vmatprep.subr.bf16.mxu0 0
      %739 = vmatpush1.bf16.msra.mxu0 0
      %740 = vmatprep.subr.bf16.mxu0 0
      %741 = vmatpush1.bf16.msra.mxu0 0
      %742 = vmatprep.subr.bf16.mxu0 0
      %743 = vmatpush1.bf16.msra.mxu0 %v726
      %744 = vmatprep.subr.bf16.mxu0 0
      %745 = vmatpush2.bf16.msra.mxu0 0
      %746 = vmatprep.subr.bf16.mxu0 0
      %747 = vmatpush2.bf16.msra.mxu0 0
      %748 = vmatprep.subr.bf16.mxu0 0
      %749 = vmatpush2.bf16.msra.mxu0 0
      %750 = vmatprep.subr.bf16.mxu0 0
      %751 = vmatpush2.bf16.msra.mxu0 0
      %752 = vmatprep.subr.bf16.mxu0 0
      %753 = vmatpush2.bf16.msra.mxu0 0
      %754 = vmatprep.subr.bf16.mxu0 0
      %755 = vmatpush2.bf16.msra.mxu0 0
      %756 = vmatprep.subr.bf16.mxu0 0
      %757 = vmatpush2.bf16.msra.mxu0 0
      %758 = vmatprep.subr.bf16.mxu0 0
      %759 = vmatpush2.bf16.msra.mxu0 0
      %760 = vmatprep.mubr.bf16.mxu0 0
      %761 = vmatmul.mubr.bf16.gmra.mxu0 %v381
      %v762 = vpop.f32.mrf.mxu0
      %v763 = vadd.f32 0.0, %v762
      %v764 = vpop.f32.mrf.mxu0
      %v765 = vpop.f32.mrf.mxu0
      %v766 = vadd.f32 0.0, %v765
      %v767 = vpop.f32.mrf.mxu0
      %768 = vmatprep.mubr.bf16.mxu0 0
      %769 = vmatmul.mubr.bf16.gmra.mxu0 %v384
      %v770 = vpop.f32.mrf.mxu0
      %v771 = vadd.f32 0.0, %v770
      %v772 = vpop.f32.mrf.mxu0
      %v773 = vpop.f32.mrf.mxu0
      %v774 = vadd.f32 0.0, %v773
      %v775 = vpop.f32.mrf.mxu0
      %776 = vmatprep.mubr.bf16.mxu0 0
      %777 = vmatmul.mubr.bf16.gmra.mxu0 %v387
      %v778 = vpop.f32.mrf.mxu0
      %v779 = vadd.f32 0.0, %v778
      %v780 = vpop.f32.mrf.mxu0
      %v781 = vpop.f32.mrf.mxu0
      %v782 = vadd.f32 0.0, %v781
      %v783 = vpop.f32.mrf.mxu0
      %784 = vmatprep.mubr.bf16.mxu0 0
      %785 = vmatmul.mubr.bf16.gmra.mxu0 %v390
      %v786 = vpop.f32.mrf.mxu0
      %v787 = vadd.f32 0.0, %v786
      %v788 = vpop.f32.mrf.mxu0
      %v789 = vpop.f32.mrf.mxu0
      %v790 = vadd.f32 0.0, %v789
      %v791 = vpop.f32.mrf.mxu0
      %792 = vmatprep.mubr.bf16.mxu0 0
      %793 = vmatmul.mubr.bf16.gmra.mxu0 %v393
      %v794 = vpop.f32.mrf.mxu0
      %v795 = vadd.f32 0.0, %v794
      %v796 = vpop.f32.mrf.mxu0
      %v797 = vpop.f32.mrf.mxu0
      %v798 = vadd.f32 0.0, %v797
      %v799 = vpop.f32.mrf.mxu0
      %800 = vdwg.mxu0
      %v803 = vunpack.c.l.b16 %v718
      %v804 = vunpack.c.l.b16 %v719
      %v805 = vpack.c.b16 %v804, %v803
      %807 = vmatprep.subr.bf16.mxu0 0
      %808 = vmatpush1.bf16.msra.mxu0 0
      %809 = vmatprep.subr.bf16.mxu0 0
      %810 = vmatpush1.bf16.msra.mxu0 0
      %811 = vmatprep.subr.bf16.mxu0 0
      %812 = vmatpush1.bf16.msra.mxu0 0
      %813 = vmatprep.subr.bf16.mxu0 0
      %814 = vmatpush1.bf16.msra.mxu0 0
      %815 = vmatprep.subr.bf16.mxu0 0
      %816 = vmatpush1.bf16.msra.mxu0 0
      %817 = vmatprep.subr.bf16.mxu0 0
      %818 = vmatpush1.bf16.msra.mxu0 0
      %819 = vmatprep.subr.bf16.mxu0 0
      %820 = vmatpush1.bf16.msra.mxu0 0
      %821 = vmatprep.subr.bf16.mxu0 0
      %822 = vmatpush1.bf16.msra.mxu0 %v805
      %823 = vmatprep.subr.bf16.mxu0 0
      %824 = vmatpush2.bf16.msra.mxu0 0
      %825 = vmatprep.subr.bf16.mxu0 0
      %826 = vmatpush2.bf16.msra.mxu0 0
      %827 = vmatprep.subr.bf16.mxu0 0
      %828 = vmatpush2.bf16.msra.mxu0 0
      %829 = vmatprep.subr.bf16.mxu0 0
      %830 = vmatpush2.bf16.msra.mxu0 0
      %831 = vmatprep.subr.bf16.mxu0 0
      %832 = vmatpush2.bf16.msra.mxu0 0
      %833 = vmatprep.subr.bf16.mxu0 0
      %834 = vmatpush2.bf16.msra.mxu0 0
      %835 = vmatprep.subr.bf16.mxu0 0
      %836 = vmatpush2.bf16.msra.mxu0 0
      %837 = vmatprep.subr.bf16.mxu0 0
      %838 = vmatpush2.bf16.msra.mxu0 0
      %839 = vmatprep.mubr.bf16.mxu0 0
      %840 = vmatmul.mubr.bf16.gmra.mxu0 %v500
      %v841 = vpop.f32.mrf.mxu0
      %v842 = vadd.f32 %v763, %v841
      %v843 = vpop.f32.mrf.mxu0
      %v844 = vpop.f32.mrf.mxu0
      %v845 = vadd.f32 %v766, %v844
      %v846 = vpop.f32.mrf.mxu0
      %847 = vmatprep.mubr.bf16.mxu0 0
      %848 = vmatmul.mubr.bf16.gmra.mxu0 %v503
      %v849 = vpop.f32.mrf.mxu0
      %v850 = vadd.f32 %v771, %v849
      %v851 = vpop.f32.mrf.mxu0
      %v852 = vpop.f32.mrf.mxu0
      %v853 = vadd.f32 %v774, %v852
      %v854 = vpop.f32.mrf.mxu0
      %855 = vmatprep.mubr.bf16.mxu0 0
      %856 = vmatmul.mubr.bf16.gmra.mxu0 %v506
      %v857 = vpop.f32.mrf.mxu0
      %v858 = vadd.f32 %v779, %v857
      %v859 = vpop.f32.mrf.mxu0
      %v860 = vpop.f32.mrf.mxu0
      %v861 = vadd.f32 %v782, %v860
      %v862 = vpop.f32.mrf.mxu0
      %863 = vmatprep.mubr.bf16.mxu0 0
      %864 = vmatmul.mubr.bf16.gmra.mxu0 %v509
      %v865 = vpop.f32.mrf.mxu0
      %v866 = vadd.f32 %v787, %v865
      %v867 = vpop.f32.mrf.mxu0
      %v868 = vpop.f32.mrf.mxu0
      %v869 = vadd.f32 %v790, %v868
      %v870 = vpop.f32.mrf.mxu0
      %871 = vmatprep.mubr.bf16.mxu0 0
      %872 = vmatmul.mubr.bf16.gmra.mxu0 %v512
      %v873 = vpop.f32.mrf.mxu0
      %v874 = vadd.f32 %v795, %v873
      %v875 = vpop.f32.mrf.mxu0
      %v876 = vpop.f32.mrf.mxu0
      %v877 = vadd.f32 %v798, %v876
      %v878 = vpop.f32.mrf.mxu0
      %879 = vdwg.mxu0
      %v880 = vld [vmem:[%s3 + $0x38] sm:$0xf]
      %v881 = vld [vmem:[%s3 + $0x3c] sm:$0xf]
      %v884 = vunpack.c.l.b16 %v880
      %v885 = vunpack.c.l.b16 %v881
      %v886 = vpack.c.b16 %v885, %v884
      %888 = vmatprep.subr.bf16.mxu0 0
      %889 = vmatpush1.bf16.msra.mxu0 0
      %890 = vmatprep.subr.bf16.mxu0 0
      %891 = vmatpush1.bf16.msra.mxu0 0
      %892 = vmatprep.subr.bf16.mxu0 0
      %893 = vmatpush1.bf16.msra.mxu0 0
      %894 = vmatprep.subr.bf16.mxu0 0
      %895 = vmatpush1.bf16.msra.mxu0 0
      %896 = vmatprep.subr.bf16.mxu0 0
      %897 = vmatpush1.bf16.msra.mxu0 0
      %898 = vmatprep.subr.bf16.mxu0 0
      %899 = vmatpush1.bf16.msra.mxu0 0
      %900 = vmatprep.subr.bf16.mxu0 0
      %901 = vmatpush1.bf16.msra.mxu0 0
      %902 = vmatprep.subr.bf16.mxu0 0
      %903 = vmatpush1.bf16.msra.mxu0 %v886
      %904 = vmatprep.subr.bf16.mxu0 0
      %905 = vmatpush2.bf16.msra.mxu0 0
      %906 = vmatprep.subr.bf16.mxu0 0
      %907 = vmatpush2.bf16.msra.mxu0 0
      %908 = vmatprep.subr.bf16.mxu0 0
      %909 = vmatpush2.bf16.msra.mxu0 0
      %910 = vmatprep.subr.bf16.mxu0 0
      %911 = vmatpush2.bf16.msra.mxu0 0
      %912 = vmatprep.subr.bf16.mxu0 0
      %913 = vmatpush2.bf16.msra.mxu0 0
      %914 = vmatprep.subr.bf16.mxu0 0
      %915 = vmatpush2.bf16.msra.mxu0 0
      %916 = vmatprep.subr.bf16.mxu0 0
      %917 = vmatpush2.bf16.msra.mxu0 0
      %918 = vmatprep.subr.bf16.mxu0 0
      %919 = vmatpush2.bf16.msra.mxu0 0
      %920 = vmatprep.mubr.bf16.mxu0 0
      %921 = vmatmul.mubr.bf16.gmra.mxu0 %v621
      %v922 = vpop.f32.mrf.mxu0
      %v923 = vadd.f32 0.0, %v922
      %v924 = vpop.f32.mrf.mxu0
      %v925 = vpop.f32.mrf.mxu0
      %v926 = vadd.f32 0.0, %v925
      %v927 = vpop.f32.mrf.mxu0
      %928 = vmatprep.mubr.bf16.mxu0 0
      %929 = vmatmul.mubr.bf16.gmra.mxu0 %v624
      %v930 = vpop.f32.mrf.mxu0
      %v931 = vadd.f32 0.0, %v930
      %v932 = vpop.f32.mrf.mxu0
      %v933 = vpop.f32.mrf.mxu0
      %v934 = vadd.f32 0.0, %v933
      %v935 = vpop.f32.mrf.mxu0
      %936 = vmatprep.mubr.bf16.mxu0 0
      %937 = vmatmul.mubr.bf16.gmra.mxu0 %v627
      %v938 = vpop.f32.mrf.mxu0
      %v939 = vadd.f32 0.0, %v938
      %v940 = vpop.f32.mrf.mxu0
      %v941 = vpop.f32.mrf.mxu0
      %v942 = vadd.f32 0.0, %v941
      %v943 = vpop.f32.mrf.mxu0
      %944 = vmatprep.mubr.bf16.mxu0 0
      %945 = vmatmul.mubr.bf16.gmra.mxu0 %v630
      %v946 = vpop.f32.mrf.mxu0
      %v947 = vadd.f32 0.0, %v946
      %v948 = vpop.f32.mrf.mxu0
      %v949 = vpop.f32.mrf.mxu0
      %v950 = vadd.f32 0.0, %v949
      %v951 = vpop.f32.mrf.mxu0
      %952 = vmatprep.mubr.bf16.mxu0 0
      %953 = vmatmul.mubr.bf16.gmra.mxu0 %v633
      %v954 = vpop.f32.mrf.mxu0
      %v955 = vadd.f32 0.0, %v954
      %v956 = vpop.f32.mrf.mxu0
      %v957 = vpop.f32.mrf.mxu0
      %v958 = vadd.f32 0.0, %v957
      %v959 = vpop.f32.mrf.mxu0
      %960 = vdwg.mxu0
      %v961 = vadd.f32 %v842, %v923
      %v962 = vadd.f32 %v845, %v926
      %v963 = vadd.f32 %v850, %v931
      %v964 = vadd.f32 %v853, %v934
      %v965 = vadd.f32 %v858, %v939
      %v966 = vadd.f32 %v861, %v942
      %v967 = vadd.f32 %v866, %v947
      %v968 = vadd.f32 %v869, %v950
      %v969 = vadd.f32 %v874, %v955
      %v970 = vadd.f32 %v877, %v958
      %vm981 = vcmask 1046528
      %v982 = vrot.slane %v961, 1
      %v983 = vrot.slane %v962, 1
      %v984 = vsel %vm981, %v982, %v983
      %v985 = vrot.slane %v963, 1
      %v986 = vsel %vm981, %v983, %v985
      %v987 = vrot.slane %v964, 1
      %v988 = vsel %vm981, %v985, %v987
      %v989 = vrot.slane %v965, 1
      %v990 = vsel %vm981, %v987, %v989
      %v991 = vrot.slane %v966, 1
      %v992 = vsel %vm981, %v989, %v991
      %v993 = vrot.slane %v967, 1
      %v994 = vsel %vm981, %v991, %v993
      %v995 = vrot.slane %v968, 1
      %v996 = vsel %vm981, %v993, %v995
      %v997 = vrot.slane %v969, 1
      %v998 = vsel %vm981, %v995, %v997
      %v999 = vrot.slane %v970, 1
      %v1000 = vsel %vm981, %v997, %v999
      %v1011 = vsel %vm981, %v999, 0.0
      %v1012 = vadd.f32 %v708, %v984
      %v1013 = vadd.f32 %v709, %v986
      %v1014 = vadd.f32 %v710, %v988
      %v1015 = vadd.f32 %v711, %v990
      %v1016 = vadd.f32 %v712, %v992
      %v1017 = vadd.f32 %v713, %v994
      %v1018 = vadd.f32 %v714, %v996
      %v1019 = vadd.f32 %v715, %v998
      %v1020 = vadd.f32 %v716, %v1000
      %v1021 = vadd.f32 %v717, %v1011
      %v1022 = vld [vmem:[%s3 + $0x10] sm:$0xf]
      %v1023 = vld [vmem:[%s3 + $0x14] sm:$0xf]
      %v1024 = vld [vmem:[%s3 + $0x28] sm:$0xf]
      %v1025 = vld [vmem:[%s3 + $0x2c] sm:$0xf]
      %v1028 = vunpack.c.l.b16 %v1024
      %v1029 = vunpack.c.l.b16 %v1025
      %v1030 = vpack.c.b16 %v1029, %v1028
      %1032 = vmatprep.subr.bf16.mxu0 0
      %1033 = vmatpush1.bf16.msra.mxu0 0
      %1034 = vmatprep.subr.bf16.mxu0 0
      %1035 = vmatpush1.bf16.msra.mxu0 0
      %1036 = vmatprep.subr.bf16.mxu0 0
      %1037 = vmatpush1.bf16.msra.mxu0 0
      %1038 = vmatprep.subr.bf16.mxu0 0
      %1039 = vmatpush1.bf16.msra.mxu0 0
      %1040 = vmatprep.subr.bf16.mxu0 0
      %1041 = vmatpush1.bf16.msra.mxu0 0
      %1042 = vmatprep.subr.bf16.mxu0 0
      %1043 = vmatpush1.bf16.msra.mxu0 0
      %1044 = vmatprep.subr.bf16.mxu0 0
      %1045 = vmatpush1.bf16.msra.mxu0 0
      %1046 = vmatprep.subr.bf16.mxu0 0
      %1047 = vmatpush1.bf16.msra.mxu0 %v1030
      %1048 = vmatprep.subr.bf16.mxu0 0
      %1049 = vmatpush2.bf16.msra.mxu0 0
      %1050 = vmatprep.subr.bf16.mxu0 0
      %1051 = vmatpush2.bf16.msra.mxu0 0
      %1052 = vmatprep.subr.bf16.mxu0 0
      %1053 = vmatpush2.bf16.msra.mxu0 0
      %1054 = vmatprep.subr.bf16.mxu0 0
      %1055 = vmatpush2.bf16.msra.mxu0 0
      %1056 = vmatprep.subr.bf16.mxu0 0
      %1057 = vmatpush2.bf16.msra.mxu0 0
      %1058 = vmatprep.subr.bf16.mxu0 0
      %1059 = vmatpush2.bf16.msra.mxu0 0
      %1060 = vmatprep.subr.bf16.mxu0 0
      %1061 = vmatpush2.bf16.msra.mxu0 0
      %1062 = vmatprep.subr.bf16.mxu0 0
      %1063 = vmatpush2.bf16.msra.mxu0 0
      %1064 = vmatprep.mubr.bf16.mxu0 0
      %1065 = vmatmul.mubr.bf16.gmra.mxu0 %v381
      %v1066 = vpop.f32.mrf.mxu0
      %v1067 = vadd.f32 0.0, %v1066
      %v1068 = vpop.f32.mrf.mxu0
      %v1069 = vpop.f32.mrf.mxu0
      %v1070 = vadd.f32 0.0, %v1069
      %v1071 = vpop.f32.mrf.mxu0
      %1072 = vmatprep.mubr.bf16.mxu0 0
      %1073 = vmatmul.mubr.bf16.gmra.mxu0 %v384
      %v1074 = vpop.f32.mrf.mxu0
      %v1075 = vadd.f32 0.0, %v1074
      %v1076 = vpop.f32.mrf.mxu0
      %v1077 = vpop.f32.mrf.mxu0
      %v1078 = vadd.f32 0.0, %v1077
      %v1079 = vpop.f32.mrf.mxu0
      %1080 = vmatprep.mubr.bf16.mxu0 0
      %1081 = vmatmul.mubr.bf16.gmra.mxu0 %v387
      %v1082 = vpop.f32.mrf.mxu0
      %v1083 = vadd.f32 0.0, %v1082
      %v1084 = vpop.f32.mrf.mxu0
      %v1085 = vpop.f32.mrf.mxu0
      %v1086 = vadd.f32 0.0, %v1085
      %v1087 = vpop.f32.mrf.mxu0
      %1088 = vmatprep.mubr.bf16.mxu0 0
      %1089 = vmatmul.mubr.bf16.gmra.mxu0 %v390
      %v1090 = vpop.f32.mrf.mxu0
      %v1091 = vadd.f32 0.0, %v1090
      %v1092 = vpop.f32.mrf.mxu0
      %v1093 = vpop.f32.mrf.mxu0
      %v1094 = vadd.f32 0.0, %v1093
      %v1095 = vpop.f32.mrf.mxu0
      %1096 = vmatprep.mubr.bf16.mxu0 0
      %1097 = vmatmul.mubr.bf16.gmra.mxu0 %v393
      %v1098 = vpop.f32.mrf.mxu0
      %v1099 = vadd.f32 0.0, %v1098
      %v1100 = vpop.f32.mrf.mxu0
      %v1101 = vpop.f32.mrf.mxu0
      %v1102 = vadd.f32 0.0, %v1101
      %v1103 = vpop.f32.mrf.mxu0
      %1104 = vdwg.mxu0
      %v1107 = vunpack.c.l.b16 %v1022
      %v1108 = vunpack.c.l.b16 %v1023
      %v1109 = vpack.c.b16 %v1108, %v1107
      %1111 = vmatprep.subr.bf16.mxu0 0
      %1112 = vmatpush1.bf16.msra.mxu0 0
      %1113 = vmatprep.subr.bf16.mxu0 0
      %1114 = vmatpush1.bf16.msra.mxu0 0
      %1115 = vmatprep.subr.bf16.mxu0 0
      %1116 = vmatpush1.bf16.msra.mxu0 0
      %1117 = vmatprep.subr.bf16.mxu0 0
      %1118 = vmatpush1.bf16.msra.mxu0 0
      %1119 = vmatprep.subr.bf16.mxu0 0
      %1120 = vmatpush1.bf16.msra.mxu0 0
      %1121 = vmatprep.subr.bf16.mxu0 0
      %1122 = vmatpush1.bf16.msra.mxu0 0
      %1123 = vmatprep.subr.bf16.mxu0 0
      %1124 = vmatpush1.bf16.msra.mxu0 0
      %1125 = vmatprep.subr.bf16.mxu0 0
      %1126 = vmatpush1.bf16.msra.mxu0 %v1109
      %1127 = vmatprep.subr.bf16.mxu0 0
      %1128 = vmatpush2.bf16.msra.mxu0 0
      %1129 = vmatprep.subr.bf16.mxu0 0
      %1130 = vmatpush2.bf16.msra.mxu0 0
      %1131 = vmatprep.subr.bf16.mxu0 0
      %1132 = vmatpush2.bf16.msra.mxu0 0
      %1133 = vmatprep.subr.bf16.mxu0 0
      %1134 = vmatpush2.bf16.msra.mxu0 0
      %1135 = vmatprep.subr.bf16.mxu0 0
      %1136 = vmatpush2.bf16.msra.mxu0 0
      %1137 = vmatprep.subr.bf16.mxu0 0
      %1138 = vmatpush2.bf16.msra.mxu0 0
      %1139 = vmatprep.subr.bf16.mxu0 0
      %1140 = vmatpush2.bf16.msra.mxu0 0
      %1141 = vmatprep.subr.bf16.mxu0 0
      %1142 = vmatpush2.bf16.msra.mxu0 0
      %1143 = vmatprep.mubr.bf16.mxu0 0
      %1144 = vmatmul.mubr.bf16.gmra.mxu0 %v500
      %v1145 = vpop.f32.mrf.mxu0
      %v1146 = vadd.f32 %v1067, %v1145
      %v1147 = vpop.f32.mrf.mxu0
      %v1148 = vpop.f32.mrf.mxu0
      %v1149 = vadd.f32 %v1070, %v1148
      %v1150 = vpop.f32.mrf.mxu0
      %1151 = vmatprep.mubr.bf16.mxu0 0
      %1152 = vmatmul.mubr.bf16.gmra.mxu0 %v503
      %v1153 = vpop.f32.mrf.mxu0
      %v1154 = vadd.f32 %v1075, %v1153
      %v1155 = vpop.f32.mrf.mxu0
      %v1156 = vpop.f32.mrf.mxu0
      %v1157 = vadd.f32 %v1078, %v1156
      %v1158 = vpop.f32.mrf.mxu0
      %1159 = vmatprep.mubr.bf16.mxu0 0
      %1160 = vmatmul.mubr.bf16.gmra.mxu0 %v506
      %v1161 = vpop.f32.mrf.mxu0
      %v1162 = vadd.f32 %v1083, %v1161
      %v1163 = vpop.f32.mrf.mxu0
      %v1164 = vpop.f32.mrf.mxu0
      %v1165 = vadd.f32 %v1086, %v1164
      %v1166 = vpop.f32.mrf.mxu0
      %1167 = vmatprep.mubr.bf16.mxu0 0
      %1168 = vmatmul.mubr.bf16.gmra.mxu0 %v509
      %v1169 = vpop.f32.mrf.mxu0
      %v1170 = vadd.f32 %v1091, %v1169
      %v1171 = vpop.f32.mrf.mxu0
      %v1172 = vpop.f32.mrf.mxu0
      %v1173 = vadd.f32 %v1094, %v1172
      %v1174 = vpop.f32.mrf.mxu0
      %1175 = vmatprep.mubr.bf16.mxu0 0
      %1176 = vmatmul.mubr.bf16.gmra.mxu0 %v512
      %v1177 = vpop.f32.mrf.mxu0
      %v1178 = vadd.f32 %v1099, %v1177
      %v1179 = vpop.f32.mrf.mxu0
      %v1180 = vpop.f32.mrf.mxu0
      %v1181 = vadd.f32 %v1102, %v1180
      %v1182 = vpop.f32.mrf.mxu0
      %1183 = vdwg.mxu0
      %v1184 = vld [vmem:[%s3 + $0x40] sm:$0xf]
      %v1185 = vld [vmem:[%s3 + $0x44] sm:$0xf]
      %v1188 = vunpack.c.l.b16 %v1184
      %v1189 = vunpack.c.l.b16 %v1185
      %v1190 = vpack.c.b16 %v1189, %v1188
      %1192 = vmatprep.subr.bf16.mxu0 0
      %1193 = vmatpush1.bf16.msra.mxu0 0
      %1194 = vmatprep.subr.bf16.mxu0 0
      %1195 = vmatpush1.bf16.msra.mxu0 0
      %1196 = vmatprep.subr.bf16.mxu0 0
      %1197 = vmatpush1.bf16.msra.mxu0 0
      %1198 = vmatprep.subr.bf16.mxu0 0
      %1199 = vmatpush1.bf16.msra.mxu0 0
      %1200 = vmatprep.subr.bf16.mxu0 0
      %1201 = vmatpush1.bf16.msra.mxu0 0
      %1202 = vmatprep.subr.bf16.mxu0 0
      %1203 = vmatpush1.bf16.msra.mxu0 0
      %1204 = vmatprep.subr.bf16.mxu0 0
      %1205 = vmatpush1.bf16.msra.mxu0 0
      %1206 = vmatprep.subr.bf16.mxu0 0
      %1207 = vmatpush1.bf16.msra.mxu0 %v1190
      %1208 = vmatprep.subr.bf16.mxu0 0
      %1209 = vmatpush2.bf16.msra.mxu0 0
      %1210 = vmatprep.subr.bf16.mxu0 0
      %1211 = vmatpush2.bf16.msra.mxu0 0
      %1212 = vmatprep.subr.bf16.mxu0 0
      %1213 = vmatpush2.bf16.msra.mxu0 0
      %1214 = vmatprep.subr.bf16.mxu0 0
      %1215 = vmatpush2.bf16.msra.mxu0 0
      %1216 = vmatprep.subr.bf16.mxu0 0
      %1217 = vmatpush2.bf16.msra.mxu0 0
      %1218 = vmatprep.subr.bf16.mxu0 0
      %1219 = vmatpush2.bf16.msra.mxu0 0
      %1220 = vmatprep.subr.bf16.mxu0 0
      %1221 = vmatpush2.bf16.msra.mxu0 0
      %1222 = vmatprep.subr.bf16.mxu0 0
      %1223 = vmatpush2.bf16.msra.mxu0 0
      %1224 = vmatprep.mubr.bf16.mxu0 0
      %1225 = vmatmul.mubr.bf16.gmra.mxu0 %v621
      %v1226 = vpop.f32.mrf.mxu0
      %v1227 = vadd.f32 0.0, %v1226
      %v1228 = vpop.f32.mrf.mxu0
      %v1229 = vpop.f32.mrf.mxu0
      %v1230 = vadd.f32 0.0, %v1229
      %v1231 = vpop.f32.mrf.mxu0
      %1232 = vmatprep.mubr.bf16.mxu0 0
      %1233 = vmatmul.mubr.bf16.gmra.mxu0 %v624
      %v1234 = vpop.f32.mrf.mxu0
      %v1235 = vadd.f32 0.0, %v1234
      %v1236 = vpop.f32.mrf.mxu0
      %v1237 = vpop.f32.mrf.mxu0
      %v1238 = vadd.f32 0.0, %v1237
      %v1239 = vpop.f32.mrf.mxu0
      %1240 = vmatprep.mubr.bf16.mxu0 0
      %1241 = vmatmul.mubr.bf16.gmra.mxu0 %v627
      %v1242 = vpop.f32.mrf.mxu0
      %v1243 = vadd.f32 0.0, %v1242
      %v1244 = vpop.f32.mrf.mxu0
      %v1245 = vpop.f32.mrf.mxu0
      %v1246 = vadd.f32 0.0, %v1245
      %v1247 = vpop.f32.mrf.mxu0
      %1248 = vmatprep.mubr.bf16.mxu0 0
      %1249 = vmatmul.mubr.bf16.gmra.mxu0 %v630
      %v1250 = vpop.f32.mrf.mxu0
      %v1251 = vadd.f32 0.0, %v1250
      %v1252 = vpop.f32.mrf.mxu0
      %v1253 = vpop.f32.mrf.mxu0
      %v1254 = vadd.f32 0.0, %v1253
      %v1255 = vpop.f32.mrf.mxu0
      %1256 = vmatprep.mubr.bf16.mxu0 0
      %1257 = vmatmul.mubr.bf16.gmra.mxu0 %v633
      %v1258 = vpop.f32.mrf.mxu0
      %v1259 = vadd.f32 0.0, %v1258
      %v1260 = vpop.f32.mrf.mxu0
      %v1261 = vpop.f32.mrf.mxu0
      %v1262 = vadd.f32 0.0, %v1261
      %v1263 = vpop.f32.mrf.mxu0
      %1264 = vdwg.mxu0
      %v1265 = vadd.f32 %v1146, %v1227
      %v1266 = vadd.f32 %v1149, %v1230
      %v1267 = vadd.f32 %v1154, %v1235
      %v1268 = vadd.f32 %v1157, %v1238
      %v1269 = vadd.f32 %v1162, %v1243
      %v1270 = vadd.f32 %v1165, %v1246
      %v1271 = vadd.f32 %v1170, %v1251
      %v1272 = vadd.f32 %v1173, %v1254
      %v1273 = vadd.f32 %v1178, %v1259
      %v1274 = vadd.f32 %v1181, %v1262
      %vm1285 = vcmask 1045504
      %v1286 = vrot.slane %v1265, 2
      %v1287 = vrot.slane %v1266, 2
      %v1288 = vsel %vm1285, %v1286, %v1287
      %v1289 = vrot.slane %v1267, 2
      %v1290 = vsel %vm1285, %v1287, %v1289
      %v1291 = vrot.slane %v1268, 2
      %v1292 = vsel %vm1285, %v1289, %v1291
      %v1293 = vrot.slane %v1269, 2
      %v1294 = vsel %vm1285, %v1291, %v1293
      %v1295 = vrot.slane %v1270, 2
      %v1296 = vsel %vm1285, %v1293, %v1295
      %v1297 = vrot.slane %v1271, 2
      %v1298 = vsel %vm1285, %v1295, %v1297
      %v1299 = vrot.slane %v1272, 2
      %v1300 = vsel %vm1285, %v1297, %v1299
      %v1301 = vrot.slane %v1273, 2
      %v1302 = vsel %vm1285, %v1299, %v1301
      %v1303 = vrot.slane %v1274, 2
      %v1304 = vsel %vm1285, %v1301, %v1303
      %v1315 = vsel %vm1285, %v1303, 0.0
      %v1316 = vadd.f32 %v1012, %v1288
      %v1317 = vadd.f32 %v1013, %v1290
      %v1318 = vadd.f32 %v1014, %v1292
      %v1319 = vadd.f32 %v1015, %v1294
      %v1320 = vadd.f32 %v1016, %v1296
      %v1321 = vadd.f32 %v1017, %v1298
      %v1322 = vadd.f32 %v1018, %v1300
      %v1323 = vadd.f32 %v1019, %v1302
      %v1324 = vadd.f32 %v1020, %v1304
      %v1325 = vadd.f32 %v1021, %v1315
      %v1326 = vld [vmem:[%s4] sm:$0x1]
      %v1328 = vlaneseq
      %v1329 = vshrl.u32 %v1328, 7
      %v1330 = vsub.s32 0, %v1329
      %v1331 = vrot.slane %v1326, %v1330
      %v1333 = vadd.f32 %v1316, %v1331
      %v1334 = vadd.f32 %v1317, %v1331
      %v1335 = vadd.f32 %v1318, %v1331
      %v1336 = vadd.f32 %v1319, %v1331
      %v1337 = vadd.f32 %v1320, %v1331
      %v1338 = vadd.f32 %v1321, %v1331
      %v1339 = vadd.f32 %v1322, %v1331
      %v1340 = vadd.f32 %v1323, %v1331
      %v1341 = vadd.f32 %v1324, %v1331
      %v1342 = vadd.f32 %v1325, %v1331
      %v1343 = vmax.f32 %v1333, 0.0
      %v1344 = vmax.f32 %v1334, 0.0
      %v1345 = vmax.f32 %v1335, 0.0
      %v1346 = vmax.f32 %v1336, 0.0
      %v1347 = vmax.f32 %v1337, 0.0
      %v1348 = vmax.f32 %v1338, 0.0
      %v1349 = vmax.f32 %v1339, 0.0
      %v1350 = vmax.f32 %v1340, 0.0
      %v1351 = vmax.f32 %v1341, 0.0
      %v1352 = vmax.f32 %v1342, 0.0
      %v1353 = vpack.c.bf16 %v1344, %v1343
      %v1354 = vpack.c.bf16 %v1346, %v1345
      %v1355 = vpack.c.bf16 %v1348, %v1347
      %v1356 = vpack.c.bf16 %v1350, %v1349
      %v1357 = vpack.c.bf16 %v1352, %v1351
      %v1363 = vunpack.c.l.b16 %v1353
      %v1364 = vunpack.c.h.b16 %v1353
      %v1365 = vunpack.c.l.b16 %v1354
      %v1366 = vunpack.c.h.b16 %v1354
      %v1367 = vunpack.c.l.b16 %v1355
      %v1368 = vunpack.c.h.b16 %v1355
      %v1369 = vunpack.c.l.b16 %v1356
      %v1370 = vunpack.c.h.b16 %v1356
      %v1371 = vunpack.c.l.b16 %v1357
      %v1372 = vunpack.c.h.b16 %v1357
      %v1373 = vpack.c.b16 %v1363, %v1363
      %v1374 = vpack.c.b16 %v1364, %v1364
      %v1375 = vpack.c.b16 %v1365, %v1365
      %v1376 = vpack.c.b16 %v1366, %v1366
      %v1377 = vpack.c.b16 %v1367, %v1367
      %v1378 = vpack.c.b16 %v1368, %v1368
      %v1379 = vpack.c.b16 %v1369, %v1369
      %v1380 = vpack.c.b16 %v1370, %v1370
      %v1381 = vpack.c.b16 %v1371, %v1371
      %v1382 = vpack.c.b16 %v1372, %v1372
      %vm1393 = vcmask 60416
      %1394 = vst.msk [vmem:[%s305] sm:$0xf] %vm1393, %v1373
      %1395 = vst.msk [vmem:[%s305 + $0x4] sm:$0xf] %vm1393, %v1374
      %1396 = vst.msk [vmem:[%s305 + $0x8] sm:$0xf] %vm1393, %v1375
      %1397 = vst.msk [vmem:[%s305 + $0xc] sm:$0xf] %vm1393, %v1376
      %1398 = vst.msk [vmem:[%s305 + $0x10] sm:$0xf] %vm1393, %v1377
      %1399 = vst.msk [vmem:[%s305 + $0x14] sm:$0xf] %vm1393, %v1378
      %1400 = vst.msk [vmem:[%s305 + $0x18] sm:$0xf] %vm1393, %v1379
      %1401 = vst.msk [vmem:[%s305 + $0x1c] sm:$0xf] %vm1393, %v1380
      %1402 = vst.msk [vmem:[%s305 + $0x20] sm:$0xf] %vm1393, %v1381
      %1403 = vst.msk [vmem:[%s305 + $0x24] sm:$0xf] %vm1393, %v1382
      %v1404 = vmax.bf16 %v314, %v324
      %v1405 = vmax.bf16 %v315, %v325
      %v1406 = vmax.bf16 %v316, %v326
      %v1407 = vmax.bf16 %v317, %v327
      %v1408 = vmax.bf16 %v318, %v328
      %v1409 = vmax.bf16 %v319, %v329
      %v1410 = vmax.bf16 %v320, %v330
      %v1411 = vmax.bf16 %v321, %v331
      %v1412 = vmax.bf16 %v322, %v332
      %v1413 = vmax.bf16 %v323, %v333
      %v1414 = vmax.bf16 %v1404, %v334
      %v1415 = vmax.bf16 %v1405, %v335
      %v1416 = vmax.bf16 %v1406, %v336
      %v1417 = vmax.bf16 %v1407, %v337
      %v1418 = vmax.bf16 %v1408, %v338
      %v1419 = vmax.bf16 %v1409, %v339
      %v1420 = vmax.bf16 %v1410, %v340
      %v1421 = vmax.bf16 %v1411, %v341
      %v1422 = vmax.bf16 %v1412, %v342
      %v1423 = vmax.bf16 %v1413, %v343
      %v1424 = vunpack.c.l.bf16 %v1414
      %v1425 = vunpack.c.l.bf16 %v1415
      %v1426 = vunpack.c.l.bf16 %v1416
      %v1427 = vunpack.c.l.bf16 %v1417
      %v1428 = vunpack.c.l.bf16 %v1418
      %v1429 = vunpack.c.l.bf16 %v1419
      %v1430 = vunpack.c.l.bf16 %v1420
      %v1431 = vunpack.c.l.bf16 %v1421
      %v1432 = vunpack.c.l.bf16 %v1422
      %v1433 = vunpack.c.l.bf16 %v1423
      %v1444 = vrot.slane %v1424, 1
      %v1445 = vrot.slane %v1425, 1
      %v1446 = vsel %vm981, %v1444, %v1445
      %v1447 = vrot.slane %v1426, 1
      %v1448 = vsel %vm981, %v1445, %v1447
      %v1449 = vrot.slane %v1427, 1
      %v1450 = vsel %vm981, %v1447, %v1449
      %v1451 = vrot.slane %v1428, 1
      %v1452 = vsel %vm981, %v1449, %v1451
      %v1453 = vrot.slane %v1429, 1
      %v1454 = vsel %vm981, %v1451, %v1453
      %v1455 = vrot.slane %v1430, 1
      %v1456 = vsel %vm981, %v1453, %v1455
      %v1457 = vrot.slane %v1431, 1
      %v1458 = vsel %vm981, %v1455, %v1457
      %v1459 = vrot.slane %v1432, 1
      %v1460 = vsel %vm981, %v1457, %v1459
      %v1461 = vrot.slane %v1433, 1
      %v1462 = vsel %vm981, %v1459, %v1461
      %v1473 = vsel %vm981, %v1461, 0.0
      %v1474 = vmax.f32 %v1424, %v1446
      %v1475 = vmax.f32 %v1425, %v1448
      %v1476 = vmax.f32 %v1426, %v1450
      %v1477 = vmax.f32 %v1427, %v1452
      %v1478 = vmax.f32 %v1428, %v1454
      %v1479 = vmax.f32 %v1429, %v1456
      %v1480 = vmax.f32 %v1430, %v1458
      %v1481 = vmax.f32 %v1431, %v1460
      %v1482 = vmax.f32 %v1432, %v1462
      %v1483 = vmax.f32 %v1433, %v1473
      %v1484 = vrot.slane %v1424, 2
      %v1485 = vrot.slane %v1425, 2
      %v1486 = vsel %vm1285, %v1484, %v1485
      %v1487 = vrot.slane %v1426, 2
      %v1488 = vsel %vm1285, %v1485, %v1487
      %v1489 = vrot.slane %v1427, 2
      %v1490 = vsel %vm1285, %v1487, %v1489
      %v1491 = vrot.slane %v1428, 2
      %v1492 = vsel %vm1285, %v1489, %v1491
      %v1493 = vrot.slane %v1429, 2
      %v1494 = vsel %vm1285, %v1491, %v1493
      %v1495 = vrot.slane %v1430, 2
      %v1496 = vsel %vm1285, %v1493, %v1495
      %v1497 = vrot.slane %v1431, 2
      %v1498 = vsel %vm1285, %v1495, %v1497
      %v1499 = vrot.slane %v1432, 2
      %v1500 = vsel %vm1285, %v1497, %v1499
      %v1501 = vrot.slane %v1433, 2
      %v1502 = vsel %vm1285, %v1499, %v1501
      %v1513 = vsel %vm1285, %v1501, 0.0
      %v1514 = vmax.f32 %v1474, %v1486
      %v1515 = vmax.f32 %v1475, %v1488
      %v1516 = vmax.f32 %v1476, %v1490
      %v1517 = vmax.f32 %v1477, %v1492
      %v1518 = vmax.f32 %v1478, %v1494
      %v1519 = vmax.f32 %v1479, %v1496
      %v1520 = vmax.f32 %v1480, %v1498
      %v1521 = vmax.f32 %v1481, %v1500
      %v1522 = vmax.f32 %v1482, %v1502
      %v1523 = vmax.f32 %v1483, %v1513
      %v1524 = vpack.c.bf16 %v1515, %v1514
      %v1525 = vpack.c.bf16 %v1517, %v1516
      %v1526 = vpack.c.bf16 %v1519, %v1518
      %v1527 = vpack.c.bf16 %v1521, %v1520
      %v1528 = vpack.c.bf16 %v1523, %v1522
      %v1534 = vunpack.c.l.b16 %v1524
      %v1535 = vunpack.c.h.b16 %v1524
      %v1536 = vunpack.c.l.b16 %v1525
      %v1537 = vunpack.c.h.b16 %v1525
      %v1538 = vunpack.c.l.b16 %v1526
      %v1539 = vunpack.c.h.b16 %v1526
      %v1540 = vunpack.c.l.b16 %v1527
      %v1541 = vunpack.c.h.b16 %v1527
      %v1542 = vunpack.c.l.b16 %v1528
      %v1543 = vunpack.c.h.b16 %v1528
      %v1544 = vpack.c.b16 %v1534, %v1534
      %v1545 = vpack.c.b16 %v1535, %v1535
      %v1546 = vpack.c.b16 %v1536, %v1536
      %v1547 = vpack.c.b16 %v1537, %v1537
      %v1548 = vpack.c.b16 %v1538, %v1538
      %v1549 = vpack.c.b16 %v1539, %v1539
      %v1550 = vpack.c.b16 %v1540, %v1540
      %v1551 = vpack.c.b16 %v1541, %v1541
      %v1552 = vpack.c.b16 %v1542, %v1542
      %v1553 = vpack.c.b16 %v1543, %v1543
      %vm1564 = vcmask 125952
      %1565 = vst.msk [vmem:[%s311] sm:$0xf] %vm1564, %v1544
      %1566 = vst.msk [vmem:[%s311 + $0x4] sm:$0xf] %vm1564, %v1545
      %1567 = vst.msk [vmem:[%s311 + $0x8] sm:$0xf] %vm1564, %v1546
      %1568 = vst.msk [vmem:[%s311 + $0xc] sm:$0xf] %vm1564, %v1547
      %1569 = vst.msk [vmem:[%s311 + $0x10] sm:$0xf] %vm1564, %v1548
      %1570 = vst.msk [vmem:[%s311 + $0x14] sm:$0xf] %vm1564, %v1549
      %1571 = vst.msk [vmem:[%s311 + $0x18] sm:$0xf] %vm1564, %v1550
      %1572 = vst.msk [vmem:[%s311 + $0x1c] sm:$0xf] %vm1564, %v1551
      %1573 = vst.msk [vmem:[%s311 + $0x20] sm:$0xf] %vm1564, %v1552
      %1574 = vst.msk [vmem:[%s311 + $0x24] sm:$0xf] %vm1564, %v1553
      %s1575 = smul.u32 10, %s18
      %p1576 = scmp.lt.s32.totalorder %s1575, 19
      %s1577 = scalar_select %p1576, %s1575, 19
      %s1578 = smul.addr %s1577, 4
      %s1579 = scalar_lea.vmem %s5, %s1578
      %s1580 = smul.u32 10, %s18
      %p1581 = scmp.lt.s32.totalorder %s1580, 19
      %s1582 = scalar_select %p1581, %s1580, 19
      %s1583 = smul.addr %s1582, 4
      %s1584 = scalar_lea.vmem %s6, %s1583
      // Predicated region
      $region41: #{_lambda_.5} parent=39 // pred_check
        %p1585 = pneg %p156
      $region42: #{_lambda_.5} parent=39 // pred_check_branch
        %1587 = sbr.rel (%p1585) target = $region44
      $region43: #{_lambda_.5} parent=39 // pred_region
        %s1588 = smul.u32 10, %s18
      $region44: #{_lambda_.5} parent=39 // pred_fallthru
        _
      // Predicated region
      $region45: #{_lambda_.5} parent=39 // pred_check
        %p1589 = pneg %p182
      $region46: #{_lambda_.5} parent=39 // pred_check_branch
        %1591 = sbr.rel (%p1589) target = $region48
      $region47: #{_lambda_.5} parent=39 // pred_region
        %s1592 = smul.u32 10, %s18
      $region48: #{_lambda_.5} parent=39 // pred_fallthru
        _
    $region40: #{_lambda_.5} parent=5 // pred_fallthru
      _
    %p1593 = scmp.le.s32.totalorder 2, %s13
    // Predicated region
    $region49: #{_lambda_.5} parent=5 // pred_check
      %p1594 = pneg %p1593
    $region50: #{_lambda_.5} parent=5 // pred_check_branch
      %1596 = sbr.rel (%p1594) target = $region52
    $region51: #{_lambda_.5} parent=5 // pred_region
      %s1597 = ssub.s32 %s13, 2
      // Predicated region
      $region53: #{_lambda_.5} parent=51 // pred_check
        %p1598 = pneg %p162
      $region54: #{_lambda_.5} parent=51 // pred_check_branch
        %1600 = sbr.rel (%p1598) target = $region56
      $region55: #{_lambda_.5} parent=51 // pred_region
        %s1601 = smul.u32 10, %s19
        %p1602 = scmp.lt.s32.totalorder %s1601, 19
        %s1603 = scalar_select %p1602, %s1601, 19
        %s1604 = smul.addr %s1603, 4
        %s1605 = scalar_lea.vmem %s5, %s1604
      $region56: #{_lambda_.5} parent=51 // pred_fallthru
        _
      // Predicated region
      $region57: #{_lambda_.5} parent=51 // pred_check
        %p1606 = pneg %p188
      $region58: #{_lambda_.5} parent=51 // pred_check_branch
        %1608 = sbr.rel (%p1606) target = $region60
      $region59: #{_lambda_.5} parent=51 // pred_region
        %s1609 = smul.u32 10, %s19
        %p1610 = scmp.lt.s32.totalorder %s1609, 19
        %s1611 = scalar_select %p1610, %s1609, 19
        %s1612 = smul.addr %s1611, 4
        %s1613 = scalar_lea.vmem %s6, %s1612
      $region60: #{_lambda_.5} parent=51 // pred_fallthru
        _
    $region52: #{_lambda_.5} parent=5 // pred_fallthru
      _
  $region6: #{_lambda_.5} parent=0 // loop_footer
    %s17 = sadd.s32 1, %s13
  $region7: #{_lambda_.5} parent=0 // loop_footer_branch
    %12 = sbr.rel target = $region3
  $region8: #{_lambda_.5} parent=0 // loop_exit
    _

// kernel: _lambda_.7
$region0: #{_lambda_.7}
  #allocation0 [shape = 'u32[]', space=smem, size = 0x4, offset = 0x4, fixed_abs, tag = 'smem constant byte address 0x4 - core index']
  #allocation1 [shape = 'u32[144,128]{1,0:T(1,128)}', space=vmem, size = 0x12000, scoped, tag = 'internal scratch']
  %s0 = inlined_call_operand.vmem [shape: bf16[32,64], index: 0, kind: input, shape index: {}]
  %s1 = inlined_call_operand.vmem [shape: bf16[32,64], index: 1, kind: input, shape index: {}]
  %s2 = inlined_call_operand.vmem [shape: bf16[64,32], index: 2, kind: input, shape index: {}]
  %s3 = inlined_call_operand.vmem [shape: bf16[64,32], index: 3, kind: input, shape index: {}]
  %s4 = inlined_call_operand.vmem [shape: f32[1,32], index: 4, kind: input, shape index: {}]
  %s5 = inlined_call_operand.hbm [shape: f32[32,32], index: 5, kind: output, shape index: {}]
  %s6 = sld [smem:[#allocation0]]
  $region53: #{_lambda_.7} parent=0
    _
  %s8 = ssub.s32 1, %s6
  %s9 = scalar_select 0, %s8, %s6
  $region1: #{_lambda_.7} parent=0
    #allocation2 [shape = 'u8[16384]{0}', space=vmem, size = 0x4000, scoped, tag = 'output window, operand 0']
    #allocation3 [shape = 's32[2]{0}', space=sflag, size = 0x8, scoped, tag = 'scoped memory for _lambda_.7']
    %10 = vsyncpa [#allocation3], 0
    %s11 = scalar_lea.sflag [#allocation3], 1
    %12 = vsyncpa %s11, 0
    loop: start=0, step=1, limit=4
    $region2: #{_lambda_.7} parent=1 // loop_pre_header
      _
    $region3: #{_lambda_.7} parent=1 // loop_header
      %s14 = sphi 0, %s18
      %p15 = scmp.ge.s32.totalorder %s14, 4
      %s24 = sphi 0, %s26
      %s27 = sphi 0, %s24
      %s28 = sphi 0, %s27
      %s44 = sphi 0, %s28
      %s50 = sphi 0, %s52
      %s53 = sphi 0, %s50
      %s54 = sphi 0, %s53
      %s70 = sphi 0, %s54
      %s74 = sphi 0, %s74
      %s76 = sphi 0, %s74
      %s77 = sphi 0, %s76
      %s91 = sphi 0, %s77
      %s95 = sphi 0, %s95
      %s97 = sphi 0, %s95
      %s98 = sphi 0, %s97
      %s112 = sphi 0, %s98
      %s116 = sphi 0, %s116
      %s118 = sphi 0, %s116
      %s119 = sphi 0, %s118
      %s133 = sphi 0, %s119
      %s139 = sphi 0, %s141
      %s142 = sphi 0, %s139
      %s143 = sphi 0, %s142
      %s159 = sphi 0, %s143
    $region4: #{_lambda_.7} parent=1 // loop_header_branch
      %17 = sbr.rel (%p15) target = $region8
    $region5: #{_lambda_.7} parent=1 // loop_body
      %s19 = ssub.s32 %s14, 1
      %s20 = ssub.s32 %s14, 2
      %s21 = sadd.s32 %s14, 1
      %s22 = ssub.s32 %s14, %s21
      %p23 = scmp.eq.s32.totalorder %s22, 0
      %s25 = sadd.s32 %s24, 1
      %s26 = scalar_select %p23, %s24, %s25
      %p29 = pneg %p23
      %p30 = scmp.eq.s32.totalorder %s14, 1
      %p31 = por %p29, %p30
      %p32 = scmp.ne.s32.totalorder %s24, %s27
      %p33 = scmp.eq.s32.totalorder %s14, 0
      %p34 = por %p32, %p33
      %p35 = scmp.ne.s32.totalorder %s24, %s27
      %p36 = scmp.eq.s32.totalorder %s19, 1
      %p37 = por %p35, %p36
      %p38 = scmp.ne.s32.totalorder %s27, %s28
      %p39 = scmp.eq.s32.totalorder %s19, 0
      %p40 = por %p38, %p39
      %p41 = scmp.ne.s32.totalorder %s27, %s28
      %p42 = scmp.eq.s32.totalorder %s20, 1
      %p43 = por %p41, %p42
      %p45 = scmp.ne.s32.totalorder %s28, %s44
      %p46 = scmp.eq.s32.totalorder %s20, 0
      %p47 = por %p45, %p46
      %s48 = ssub.s32 %s14, %s21
      %p49 = scmp.eq.s32.totalorder %s48, 0
      %s51 = sadd.s32 %s50, 1
      %s52 = scalar_select %p49, %s50, %s51
      %p55 = pneg %p49
      %p56 = scmp.eq.s32.totalorder %s14, 1
      %p57 = por %p55, %p56
      %p58 = scmp.ne.s32.totalorder %s50, %s53
      %p59 = scmp.eq.s32.totalorder %s14, 0
      %p60 = por %p58, %p59
      %p61 = scmp.ne.s32.totalorder %s50, %s53
      %p62 = scmp.eq.s32.totalorder %s19, 1
      %p63 = por %p61, %p62
      %p64 = scmp.ne.s32.totalorder %s53, %s54
      %p65 = scmp.eq.s32.totalorder %s19, 0
      %p66 = por %p64, %p65
      %p67 = scmp.ne.s32.totalorder %s53, %s54
      %p68 = scmp.eq.s32.totalorder %s20, 1
      %p69 = por %p67, %p68
      %p71 = scmp.ne.s32.totalorder %s54, %s70
      %p72 = scmp.eq.s32.totalorder %s20, 0
      %p73 = por %p71, %p72
      %s75 = sadd.s32 %s74, 1
      %p78 = scmp.eq.s32.totalorder %s14, 1
      %p79 = scmp.ne.s32.totalorder %s74, %s76
      %p80 = scmp.eq.s32.totalorder %s14, 0
      %p81 = por %p79, %p80
      %p82 = scmp.ne.s32.totalorder %s74, %s76
      %p83 = scmp.eq.s32.totalorder %s19, 1
      %p84 = por %p82, %p83
      %p85 = scmp.ne.s32.totalorder %s76, %s77
      %p86 = scmp.eq.s32.totalorder %s19, 0
      %p87 = por %p85, %p86
      %p88 = scmp.ne.s32.totalorder %s76, %s77
      %p89 = scmp.eq.s32.totalorder %s20, 1
      %p90 = por %p88, %p89
      %p92 = scmp.ne.s32.totalorder %s77, %s91
      %p93 = scmp.eq.s32.totalorder %s20, 0
      %p94 = por %p92, %p93
      %s96 = sadd.s32 %s95, 1
      %p99 = scmp.eq.s32.totalorder %s14, 1
      %p100 = scmp.ne.s32.totalorder %s95, %s97
      %p101 = scmp.eq.s32.totalorder %s14, 0
      %p102 = por %p100, %p101
      %p103 = scmp.ne.s32.totalorder %s95, %s97
      %p104 = scmp.eq.s32.totalorder %s19, 1
      %p105 = por %p103, %p104
      %p106 = scmp.ne.s32.totalorder %s97, %s98
      %p107 = scmp.eq.s32.totalorder %s19, 0
      %p108 = por %p106, %p107
      %p109 = scmp.ne.s32.totalorder %s97, %s98
      %p110 = scmp.eq.s32.totalorder %s20, 1
      %p111 = por %p109, %p110
      %p113 = scmp.ne.s32.totalorder %s98, %s112
      %p114 = scmp.eq.s32.totalorder %s20, 0
      %p115 = por %p113, %p114
      %s117 = sadd.s32 %s116, 1
      %p120 = scmp.eq.s32.totalorder %s14, 1
      %p121 = scmp.ne.s32.totalorder %s116, %s118
      %p122 = scmp.eq.s32.totalorder %s14, 0
      %p123 = por %p121, %p122
      %p124 = scmp.ne.s32.totalorder %s116, %s118
      %p125 = scmp.eq.s32.totalorder %s19, 1
      %p126 = por %p124, %p125
      %p127 = scmp.ne.s32.totalorder %s118, %s119
      %p128 = scmp.eq.s32.totalorder %s19, 0
      %p129 = por %p127, %p128
      %p130 = scmp.ne.s32.totalorder %s118, %s119
      %p131 = scmp.eq.s32.totalorder %s20, 1
      %p132 = por %p130, %p131
      %p134 = scmp.ne.s32.totalorder %s119, %s133
      %p135 = scmp.eq.s32.totalorder %s20, 0
      %p136 = por %p134, %p135
      %s137 = ssub.s32 %s14, %s21
      %p138 = scmp.eq.s32.totalorder %s137, 0
      %s140 = sadd.s32 %s139, 1
      %s141 = scalar_select %p138, %s139, %s140
      %p144 = pneg %p138
      %p145 = scmp.eq.s32.totalorder %s14, 1
      %p146 = por %p144, %p145
      %p147 = scmp.ne.s32.totalorder %s139, %s142
      %p148 = scmp.eq.s32.totalorder %s14, 0
      %p149 = por %p147, %p148
      %p150 = scmp.ne.s32.totalorder %s139, %s142
      %p151 = scmp.eq.s32.totalorder %s19, 1
      %p152 = por %p150, %p151
      %p153 = scmp.ne.s32.totalorder %s142, %s143
      %p154 = scmp.eq.s32.totalorder %s19, 0
      %p155 = por %p153, %p154
      %p156 = scmp.ne.s32.totalorder %s142, %s143
      %p157 = scmp.eq.s32.totalorder %s20, 1
      %p158 = por %p156, %p157
      %p160 = scmp.ne.s32.totalorder %s143, %s159
      %p161 = scmp.eq.s32.totalorder %s20, 0
      %p162 = por %p160, %p161
      %p163 = scmp.le.s32.totalorder 1, %s14
      %p164 = scmp.lt.s32.totalorder %s14, 3
      %p165 = pnand %p163, %p164
      %p166 = pneg %p165
      // Predicated region
      $region9: #{_lambda_.7} parent=5 // pred_check
        _
      $region10: #{_lambda_.7} parent=5 // pred_check_branch
        %168 = sbr.rel (%p165) target = $region12
      $region11: #{_lambda_.7} parent=5 // pred_region
        %s169 = ssub.s32 %s14, 1
        // Predicated region
        $region13: #{_lambda_.7} parent=11 // pred_check
          %p170 = pneg %p87
        $region14: #{_lambda_.7} parent=11 // pred_check_branch
          %172 = sbr.rel (%p170) target = $region16
        $region15: #{_lambda_.7} parent=11 // pred_region
          _
        $region16: #{_lambda_.7} parent=11 // pred_fallthru
          _
        // Predicated region
        $region17: #{_lambda_.7} parent=11 // pred_check
          %p173 = pneg %p108
        $region18: #{_lambda_.7} parent=11 // pred_check_branch
          %175 = sbr.rel (%p173) target = $region20
        $region19: #{_lambda_.7} parent=11 // pred_region
          _
        $region20: #{_lambda_.7} parent=11 // pred_fallthru
          _
        // Predicated region
        $region21: #{_lambda_.7} parent=11 // pred_check
          %p176 = pneg %p129
        $region22: #{_lambda_.7} parent=11 // pred_check_branch
          %178 = sbr.rel (%p176) target = $region24
        $region23: #{_lambda_.7} parent=11 // pred_region
          _
        $region24: #{_lambda_.7} parent=11 // pred_fallthru
          _
      $region12: #{_lambda_.7} parent=5 // pred_fallthru
        _
      %p179 = scmp.lt.s32.totalorder %s14, 2
      // Predicated region
      $region25: #{_lambda_.7} parent=5 // pred_check
        %p180 = pneg %p179
      $region26: #{_lambda_.7} parent=5 // pred_check_branch
        %182 = sbr.rel (%p180) target = $region28
      $region27: #{_lambda_.7} parent=5 // pred_region
        // Predicated region
        $region29: #{_lambda_.7} parent=27 // pred_check
          %p183 = pneg %p34
        $region30: #{_lambda_.7} parent=27 // pred_check_branch
          %185 = sbr.rel (%p183) target = $region32
        $region31: #{_lambda_.7} parent=27 // pred_region
          %s186 = smul.u32 2, %s14
          %p187 = scmp.lt.s32.totalorder %s186, 3
          %s188 = scalar_select %p187, %s186, 3
          %s189 = smul.addr %s188, 4
          %s190 = scalar_lea.vmem %s0, %s189
          %s191 = smul.u32 2, %s14
        $region32: #{_lambda_.7} parent=27 // pred_fallthru
          _
        // Predicated region
        $region33: #{_lambda_.7} parent=27 // pred_check
          %p192 = pneg %p60
        $region34: #{_lambda_.7} parent=27 // pred_check_branch
          %194 = sbr.rel (%p192) target = $region36
        $region35: #{_lambda_.7} parent=27 // pred_region
          %s195 = smul.u32 2, %s14
          %p196 = scmp.lt.s32.totalorder %s195, 3
          %s197 = scalar_select %p196, %s195, 3
          %s198 = smul.addr %s197, 4
          %s199 = scalar_lea.vmem %s1, %s198
          %s200 = smul.u32 2, %s14
        $region36: #{_lambda_.7} parent=27 // pred_fallthru
          _
      $region28: #{_lambda_.7} parent=5 // pred_fallthru
        _
      %p201 = scmp.le.s32.totalorder 1, %s14
      %p202 = scmp.lt.s32.totalorder %s14, 3
      %p203 = pnand %p201, %p202
      %p204 = pneg %p203
      // Predicated region
      $region37: #{_lambda_.7} parent=5 // pred_check
        _
      $region38: #{_lambda_.7} parent=5 // pred_check_branch
        %206 = sbr.rel (%p203) target = $region40
      $region39: #{_lambda_.7} parent=5 // pred_region
        %s207 = ssub.s32 %s14, 1
        %s208 = smul.u32 2, %s19
        %p209 = scmp.lt.s32.totalorder %s208, 3
        %s210 = scalar_select %p209, %s208, 3
        %s211 = smul.addr %s210, 4
        %s212 = scalar_lea.vmem %s0, %s211
        %p213 = pneg %p40
        %p214 = pneg %p37
        %s215 = smul.u32 2, %s19
        %p216 = scmp.lt.s32.totalorder %s215, 3
        %s217 = scalar_select %p216, %s215, 3
        %s218 = smul.addr %s217, 4
        %s219 = scalar_lea.vmem %s1, %s218
        %p220 = pneg %p66
        %p221 = pneg %p63
        %p222 = pneg %p87
        %p223 = pneg %p84
        %p224 = pneg %p108
        %p225 = pneg %p105
        %p226 = pneg %p129
        %p227 = pneg %p126
        %p228 = pneg %p155
        %p229 = pneg %p152
        %s230 = sand.u32 %s142, 1
        %s231 = scalar_lea.sflag [#allocation3], %s230
        %s232 = sand.u32 %s142, 1
        %s233 = smul.addr %s232, 16
        %s234 = scalar_lea.vmem [#allocation2], %s233
        %s235 = smul.u32 2, %s19
        %p236 = scmp.lt.s32.totalorder %s235, 3
        %s237 = scalar_select %p236, %s235, 3
        %s238 = smul.addr %s237, 4
        %s239 = scalar_lea.vmem %s0, %s238
        %s240 = smul.u32 2, %s19
        %s241 = smul.u32 2, %s19
        %p242 = scmp.lt.s32.totalorder %s241, 3
        %s243 = scalar_select %p242, %s241, 3
        %s244 = smul.addr %s243, 4
        %s245 = scalar_lea.vmem %s1, %s244
        %s246 = smul.u32 2, %s19
        %s247 = smul.u32 2, %s19
        %v249 = vld [vmem:[%s239] sm:$0xf]
        %v250 = vld [vmem:[%s239 + $0x4] sm:$0xf]
        %v251 = vld [vmem:[%s2] sm:$0xf]
        %v252 = vld [vmem:[%s2 + $0x4] sm:$0xf]
        %v253 = vld [vmem:[%s2 + $0x8] sm:$0xf]
        %v254 = vld [vmem:[%s2 + $0xc] sm:$0xf]
        %v255 = vld [vmem:[%s2 + $0x10] sm:$0xf]
        %v256 = vld [vmem:[%s2 + $0x14] sm:$0xf]
        %v257 = vld [vmem:[%s2 + $0x18] sm:$0xf]
        %v258 = vld [vmem:[%s2 + $0x1c] sm:$0xf]
        %v259 = vld [vmem:[%s245] sm:$0xf]
        %v260 = vld [vmem:[%s245 + $0x4] sm:$0xf]
        %v261 = vld [vmem:[%s3] sm:$0xf]
        %v262 = vld [vmem:[%s3 + $0x4] sm:$0xf]
        %v263 = vld [vmem:[%s3 + $0x8] sm:$0xf]
        %v264 = vld [vmem:[%s3 + $0xc] sm:$0xf]
        %v265 = vld [vmem:[%s3 + $0x10] sm:$0xf]
        %v266 = vld [vmem:[%s3 + $0x14] sm:$0xf]
        %v267 = vld [vmem:[%s3 + $0x18] sm:$0xf]
        %v268 = vld [vmem:[%s3 + $0x1c] sm:$0xf]
        %v271 = vunpack.c.l.b16 %v259
        %v272 = vunpack.c.l.b16 %v260
        %v273 = vpack.c.b16 %v272, %v271
        %v282 = vunpack.c.l.b16 %v261
        %v283 = vunpack.c.l.b16 %v262
        %v284 = vunpack.c.l.b16 %v263
        %v285 = vunpack.c.l.b16 %v264
        %v286 = vunpack.c.l.b16 %v265
        %v287 = vunpack.c.l.b16 %v266
        %v288 = vunpack.c.l.b16 %v267
        %v289 = vunpack.c.l.b16 %v268
        %v290 = vpack.c.b16 %v283, %v282
        %v291 = vpack.c.b16 %v285, %v284
        %v292 = vpack.c.b16 %v287, %v286
        %v293 = vpack.c.b16 %v289, %v288
        %vm298 = vcmask 523264
        %v300 = vsel %vm298, %v273, 0
        %302 = vmatprep.subr.bf16.mxu0 0
        %303 = vmatpush1.bf16.msra.mxu0 0
        %304 = vmatprep.subr.bf16.mxu0 0
        %305 = vmatpush1.bf16.msra.mxu0 0
        %306 = vmatprep.subr.bf16.mxu0 0
        %307 = vmatpush1.bf16.msra.mxu0 0
        %308 = vmatprep.subr.bf16.mxu0 0
        %309 = vmatpush1.bf16.msra.mxu0 0
        %310 = vmatprep.subr.bf16.mxu0 0
        %311 = vmatpush1.bf16.msra.mxu0 %v293
        %312 = vmatprep.subr.bf16.mxu0 0
        %313 = vmatpush1.bf16.msra.mxu0 %v292
        %314 = vmatprep.subr.bf16.mxu0 0
        %315 = vmatpush1.bf16.msra.mxu0 %v291
        %316 = vmatprep.subr.bf16.mxu0 0
        %317 = vmatpush1.bf16.msra.mxu0 %v290
        %318 = vmatprep.subr.bf16.mxu0 0
        %319 = vmatpush2.bf16.msra.mxu0 0
        %320 = vmatprep.subr.bf16.mxu0 0
        %321 = vmatpush2.bf16.msra.mxu0 0
        %322 = vmatprep.subr.bf16.mxu0 0
        %323 = vmatpush2.bf16.msra.mxu0 0
        %324 = vmatprep.subr.bf16.mxu0 0
        %325 = vmatpush2.bf16.msra.mxu0 0
        %326 = vmatprep.subr.bf16.mxu0 0
        %327 = vmatpush2.bf16.msra.mxu0 0
        %328 = vmatprep.subr.bf16.mxu0 0
        %329 = vmatpush2.bf16.msra.mxu0 0
        %330 = vmatprep.subr.bf16.mxu0 0
        %331 = vmatpush2.bf16.msra.mxu0 0
        %332 = vmatprep.subr.bf16.mxu0 0
        %333 = vmatpush2.bf16.msra.mxu0 0
        %334 = vmatprep.mubr.bf16.mxu0 0
        %335 = vmatmul.mubr.bf16.gmra.mxu0 %v300
        %v336 = vpop.f32.mrf.mxu0
        %v337 = vadd.f32 0.0, %v336
        %v338 = vpop.f32.mrf.mxu0
        %v339 = vpop.f32.mrf.mxu0
        %v340 = vadd.f32 0.0, %v339
        %v341 = vpop.f32.mrf.mxu0
        %342 = vdwg.mxu0
        %v345 = vunpack.c.l.b16 %v249
        %v346 = vunpack.c.l.b16 %v250
        %v347 = vpack.c.b16 %v346, %v345
        %v356 = vunpack.c.l.b16 %v251
        %v357 = vunpack.c.l.b16 %v252
        %v358 = vunpack.c.l.b16 %v253
        %v359 = vunpack.c.l.b16 %v254
        %v360 = vunpack.c.l.b16 %v255
        %v361 = vunpack.c.l.b16 %v256
        %v362 = vunpack.c.l.b16 %v257
        %v363 = vunpack.c.l.b16 %v258
        %v364 = vpack.c.b16 %v357, %v356
        %v365 = vpack.c.b16 %v359, %v358
        %v366 = vpack.c.b16 %v361, %v360
        %v367 = vpack.c.b16 %v363, %v362
        %v373 = vsel %vm298, %v347, 0
        %375 = vmatprep.subr.bf16.mxu0 0
        %376 = vmatpush1.bf16.msra.mxu0 0
        %377 = vmatprep.subr.bf16.mxu0 0
        %378 = vmatpush1.bf16.msra.mxu0 0
        %379 = vmatprep.subr.bf16.mxu0 0
        %380 = vmatpush1.bf16.msra.mxu0 0
        %381 = vmatprep.subr.bf16.mxu0 0
        %382 = vmatpush1.bf16.msra.mxu0 0
        %383 = vmatprep.subr.bf16.mxu0 0
        %384 = vmatpush1.bf16.msra.mxu0 %v367
        %385 = vmatprep.subr.bf16.mxu0 0
        %386 = vmatpush1.bf16.msra.mxu0 %v366
        %387 = vmatprep.subr.bf16.mxu0 0
        %388 = vmatpush1.bf16.msra.mxu0 %v365
        %389 = vmatprep.subr.bf16.mxu0 0
        %390 = vmatpush1.bf16.msra.mxu0 %v364
        %391 = vmatprep.subr.bf16.mxu0 0
        %392 = vmatpush2.bf16.msra.mxu0 0
        %393 = vmatprep.subr.bf16.mxu0 0
        %394 = vmatpush2.bf16.msra.mxu0 0
        %395 = vmatprep.subr.bf16.mxu0 0
        %396 = vmatpush2.bf16.msra.mxu0 0
        %397 = vmatprep.subr.bf16.mxu0 0
        %398 = vmatpush2.bf16.msra.mxu0 0
        %399 = vmatprep.subr.bf16.mxu0 0
        %400 = vmatpush2.bf16.msra.mxu0 0
        %401 = vmatprep.subr.bf16.mxu0 0
        %402 = vmatpush2.bf16.msra.mxu0 0
        %403 = vmatprep.subr.bf16.mxu0 0
        %404 = vmatpush2.bf16.msra.mxu0 0
        %405 = vmatprep.subr.bf16.mxu0 0
        %406 = vmatpush2.bf16.msra.mxu0 0
        %407 = vmatprep.mubr.bf16.mxu0 0
        %408 = vmatmul.mubr.bf16.gmra.mxu0 %v373
        %v409 = vpop.f32.mrf.mxu0
        %v410 = vadd.f32 %v337, %v409
        %v411 = vpop.f32.mrf.mxu0
        %v412 = vpop.f32.mrf.mxu0
        %v413 = vadd.f32 %v340, %v412
        %v414 = vpop.f32.mrf.mxu0
        %415 = vdwg.mxu0
        %v416 = vld [vmem:[%s4] sm:$0x1]
        %v418 = vlaneseq
        %v419 = vshrl.u32 %v418, 7
        %v420 = vsub.s32 0, %v419
        %v421 = vrot.slane %v416, %v420
        %v423 = vadd.f32 %v410, %v421
        %v424 = vadd.f32 %v413, %v421
        %v425 = vmax.f32 %v423, 0.0
        %v426 = vmax.f32 %v424, 0.0
        %vm427 = vcmask 261120
        %428 = vst.msk [vmem:[%s234] sm:$0xff] %vm427, %v425
        %429 = vst.msk [vmem:[%s234 + $0x8] sm:$0xff] %vm427, %v426
        %s430 = sand.u32 %s142, 1
        %s431 = scalar_lea.sflag [#allocation3], %s430
        %s432 = sand.u32 %s142, 1
        %s433 = smul.addr %s432, 16
        %s434 = scalar_lea.vmem [#allocation2], %s433
        // Predicated region
        $region41: #{_lambda_.7} parent=39 // pred_check
          %p435 = pneg %p152
        $region42: #{_lambda_.7} parent=39 // pred_check_branch
          %437 = sbr.rel (%p435) target = $region44
        $region43: #{_lambda_.7} parent=39 // pred_region
          %s438 = smul.u32 2, %s19
          %s440 = ssub.s32 256, 256
          %441 = vsyncadd %s431, %s440
          %s442 = smul.addr %s438, 128
          %s443 = scalar_lea.hbm %s5, %s442
          %s444 = sshll.u32 %s434, 4
          %s445 = int_to_ptr.vmem [resolvable:$true] %s444
          %450 = dma.vmem_to_hbm [thread:$0]  %s445, 256, %s443, %s431, 128, 128, 8
        $region44: #{_lambda_.7} parent=39 // pred_fallthru
          _
      $region40: #{_lambda_.7} parent=5 // pred_fallthru
        _
      %p451 = scmp.le.s32.totalorder 2, %s14
      // Predicated region
      $region45: #{_lambda_.7} parent=5 // pred_check
        %p452 = pneg %p451
      $region46: #{_lambda_.7} parent=5 // pred_check_branch
        %454 = sbr.rel (%p452) target = $region48
      $region47: #{_lambda_.7} parent=5 // pred_region
        %s455 = ssub.s32 %s14, 2
        // Predicated region
        $region49: #{_lambda_.7} parent=47 // pred_check
          %p456 = pneg %p158
        $region50: #{_lambda_.7} parent=47 // pred_check_branch
          %458 = sbr.rel (%p456) target = $region52
        $region51: #{_lambda_.7} parent=47 // pred_region
          %s459 = sand.u32 %s143, 1
          %s460 = scalar_lea.sflag [#allocation3], %s459
          %s461 = sand.u32 %s143, 1
          %s462 = smul.addr %s461, 16
          %s463 = scalar_lea.vmem [#allocation2], %s462
          %464 = dma.done %s460, 256
        $region52: #{_lambda_.7} parent=47 // pred_fallthru
          _
      $region48: #{_lambda_.7} parent=5 // pred_fallthru
        _
    $region6: #{_lambda_.7} parent=1 // loop_footer
      %s18 = sadd.s32 1, %s14
    $region7: #{_lambda_.7} parent=1 // loop_footer_branch
      %13 = sbr.rel target = $region3
    $region8: #{_lambda_.7} parent=1 // loop_exit
      _
    %465 = vsyncpa [#allocation3], 1
    %s466 = scalar_lea.sflag [#allocation3], 1
    %467 = vsyncpa %s466, 1

// kernel: _lambda_.6
$region0: #{_lambda_.6}
  #allocation0 [shape = 'u32[]', space=smem, size = 0x4, offset = 0x4, fixed_abs, tag = 'smem constant byte address 0x4 - core index']
  #allocation1 [shape = 'u32[144,128]{1,0:T(1,128)}', space=vmem, size = 0x12000, scoped, tag = 'internal scratch']
  %s0 = inlined_call_operand.vmem [shape: bf16[160,8], index: 0, kind: input, shape index: {}]
  %s1 = inlined_call_operand.vmem [shape: bf16[160,8], index: 1, kind: input, shape index: {}]
  %s2 = inlined_call_operand.vmem [shape: bf16[160,8], index: 2, kind: input, shape index: {}]
  %s3 = inlined_call_operand.vmem [shape: bf16[72,16], index: 3, kind: input, shape index: {}]
  %s4 = inlined_call_operand.vmem [shape: f32[1,16], index: 4, kind: input, shape index: {}]
  %s5 = inlined_call_operand.vmem [shape: bf16[160,16], index: 5, kind: output, shape index: {}]
  %s6 = sld [smem:[#allocation0]]
  $region53: #{_lambda_.6} parent=0
    _
  %s8 = ssub.s32 1, %s6
  %s9 = scalar_select 0, %s8, %s6
  loop: start=0, step=1, limit=4
  $region2: #{_lambda_.6} parent=0 // loop_pre_header
    _
  $region3: #{_lambda_.6} parent=0 // loop_header
    %s11 = sphi 0, %s15
    %p12 = scmp.ge.s32.totalorder %s11, 4
    %s21 = sphi 0, %s23
    %s24 = sphi 0, %s21
    %s25 = sphi 0, %s24
    %s41 = sphi 0, %s25
    %s47 = sphi 0, %s49
    %s50 = sphi 0, %s47
    %s51 = sphi 0, %s50
    %s67 = sphi 0, %s51
    %s73 = sphi 0, %s75
    %s76 = sphi 0, %s73
    %s77 = sphi 0, %s76
    %s93 = sphi 0, %s77
    %s97 = sphi 0, %s97
    %s99 = sphi 0, %s97
    %s100 = sphi 0, %s99
    %s114 = sphi 0, %s100
    %s118 = sphi 0, %s118
    %s120 = sphi 0, %s118
    %s121 = sphi 0, %s120
    %s135 = sphi 0, %s121
    %s141 = sphi 0, %s143
    %s144 = sphi 0, %s141
    %s145 = sphi 0, %s144
    %s161 = sphi 0, %s145
  $region4: #{_lambda_.6} parent=0 // loop_header_branch
    %14 = sbr.rel (%p12) target = $region8
  $region5: #{_lambda_.6} parent=0 // loop_body
    %s16 = ssub.s32 %s11, 1
    %s17 = ssub.s32 %s11, 2
    %s18 = sadd.s32 %s11, 1
    %s19 = ssub.s32 %s11, %s18
    %p20 = scmp.eq.s32.totalorder %s19, 0
    %s22 = sadd.s32 %s21, 1
    %s23 = scalar_select %p20, %s21, %s22
    %p26 = pneg %p20
    %p27 = scmp.eq.s32.totalorder %s11, 1
    %p28 = por %p26, %p27
    %p29 = scmp.ne.s32.totalorder %s21, %s24
    %p30 = scmp.eq.s32.totalorder %s11, 0
    %p31 = por %p29, %p30
    %p32 = scmp.ne.s32.totalorder %s21, %s24
    %p33 = scmp.eq.s32.totalorder %s16, 1
    %p34 = por %p32, %p33
    %p35 = scmp.ne.s32.totalorder %s24, %s25
    %p36 = scmp.eq.s32.totalorder %s16, 0
    %p37 = por %p35, %p36
    %p38 = scmp.ne.s32.totalorder %s24, %s25
    %p39 = scmp.eq.s32.totalorder %s17, 1
    %p40 = por %p38, %p39
    %p42 = scmp.ne.s32.totalorder %s25, %s41
    %p43 = scmp.eq.s32.totalorder %s17, 0
    %p44 = por %p42, %p43
    %s45 = ssub.s32 %s11, %s18
    %p46 = scmp.eq.s32.totalorder %s45, 0
    %s48 = sadd.s32 %s47, 1
    %s49 = scalar_select %p46, %s47, %s48
    %p52 = pneg %p46
    %p53 = scmp.eq.s32.totalorder %s11, 1
    %p54 = por %p52, %p53
    %p55 = scmp.ne.s32.totalorder %s47, %s50
    %p56 = scmp.eq.s32.totalorder %s11, 0
    %p57 = por %p55, %p56
    %p58 = scmp.ne.s32.totalorder %s47, %s50
    %p59 = scmp.eq.s32.totalorder %s16, 1
    %p60 = por %p58, %p59
    %p61 = scmp.ne.s32.totalorder %s50, %s51
    %p62 = scmp.eq.s32.totalorder %s16, 0
    %p63 = por %p61, %p62
    %p64 = scmp.ne.s32.totalorder %s50, %s51
    %p65 = scmp.eq.s32.totalorder %s17, 1
    %p66 = por %p64, %p65
    %p68 = scmp.ne.s32.totalorder %s51, %s67
    %p69 = scmp.eq.s32.totalorder %s17, 0
    %p70 = por %p68, %p69
    %s71 = ssub.s32 %s11, %s18
    %p72 = scmp.eq.s32.totalorder %s71, 0
    %s74 = sadd.s32 %s73, 1
    %s75 = scalar_select %p72, %s73, %s74
    %p78 = pneg %p72
    %p79 = scmp.eq.s32.totalorder %s11, 1
    %p80 = por %p78, %p79
    %p81 = scmp.ne.s32.totalorder %s73, %s76
    %p82 = scmp.eq.s32.totalorder %s11, 0
    %p83 = por %p81, %p82
    %p84 = scmp.ne.s32.totalorder %s73, %s76
    %p85 = scmp.eq.s32.totalorder %s16, 1
    %p86 = por %p84, %p85
    %p87 = scmp.ne.s32.totalorder %s76, %s77
    %p88 = scmp.eq.s32.totalorder %s16, 0
    %p89 = por %p87, %p88
    %p90 = scmp.ne.s32.totalorder %s76, %s77
    %p91 = scmp.eq.s32.totalorder %s17, 1
    %p92 = por %p90, %p91
    %p94 = scmp.ne.s32.totalorder %s77, %s93
    %p95 = scmp.eq.s32.totalorder %s17, 0
    %p96 = por %p94, %p95
    %s98 = sadd.s32 %s97, 1
    %p101 = scmp.eq.s32.totalorder %s11, 1
    %p102 = scmp.ne.s32.totalorder %s97, %s99
    %p103 = scmp.eq.s32.totalorder %s11, 0
    %p104 = por %p102, %p103
    %p105 = scmp.ne.s32.totalorder %s97, %s99
    %p106 = scmp.eq.s32.totalorder %s16, 1
    %p107 = por %p105, %p106
    %p108 = scmp.ne.s32.totalorder %s99, %s100
    %p109 = scmp.eq.s32.totalorder %s16, 0
    %p110 = por %p108, %p109
    %p111 = scmp.ne.s32.totalorder %s99, %s100
    %p112 = scmp.eq.s32.totalorder %s17, 1
    %p113 = por %p111, %p112
    %p115 = scmp.ne.s32.totalorder %s100, %s114
    %p116 = scmp.eq.s32.totalorder %s17, 0
    %p117 = por %p115, %p116
    %s119 = sadd.s32 %s118, 1
    %p122 = scmp.eq.s32.totalorder %s11, 1
    %p123 = scmp.ne.s32.totalorder %s118, %s120
    %p124 = scmp.eq.s32.totalorder %s11, 0
    %p125 = por %p123, %p124
    %p126 = scmp.ne.s32.totalorder %s118, %s120
    %p127 = scmp.eq.s32.totalorder %s16, 1
    %p128 = por %p126, %p127
    %p129 = scmp.ne.s32.totalorder %s120, %s121
    %p130 = scmp.eq.s32.totalorder %s16, 0
    %p131 = por %p129, %p130
    %p132 = scmp.ne.s32.totalorder %s120, %s121
    %p133 = scmp.eq.s32.totalorder %s17, 1
    %p134 = por %p132, %p133
    %p136 = scmp.ne.s32.totalorder %s121, %s135
    %p137 = scmp.eq.s32.totalorder %s17, 0
    %p138 = por %p136, %p137
    %s139 = ssub.s32 %s11, %s18
    %p140 = scmp.eq.s32.totalorder %s139, 0
    %s142 = sadd.s32 %s141, 1
    %s143 = scalar_select %p140, %s141, %s142
    %p146 = pneg %p140
    %p147 = scmp.eq.s32.totalorder %s11, 1
    %p148 = por %p146, %p147
    %p149 = scmp.ne.s32.totalorder %s141, %s144
    %p150 = scmp.eq.s32.totalorder %s11, 0
    %p151 = por %p149, %p150
    %p152 = scmp.ne.s32.totalorder %s141, %s144
    %p153 = scmp.eq.s32.totalorder %s16, 1
    %p154 = por %p152, %p153
    %p155 = scmp.ne.s32.totalorder %s144, %s145
    %p156 = scmp.eq.s32.totalorder %s16, 0
    %p157 = por %p155, %p156
    %p158 = scmp.ne.s32.totalorder %s144, %s145
    %p159 = scmp.eq.s32.totalorder %s17, 1
    %p160 = por %p158, %p159
    %p162 = scmp.ne.s32.totalorder %s145, %s161
    %p163 = scmp.eq.s32.totalorder %s17, 0
    %p164 = por %p162, %p163
    %p165 = scmp.le.s32.totalorder 1, %s11
    %p166 = scmp.lt.s32.totalorder %s11, 3
    %p167 = pnand %p165, %p166
    %p168 = pneg %p167
    // Predicated region
    $region9: #{_lambda_.6} parent=5 // pred_check
      _
    $region10: #{_lambda_.6} parent=5 // pred_check_branch
      %170 = sbr.rel (%p167) target = $region12
    $region11: #{_lambda_.6} parent=5 // pred_region
      %s171 = ssub.s32 %s11, 1
      // Predicated region
      $region13: #{_lambda_.6} parent=11 // pred_check
        %p172 = pneg %p110
      $region14: #{_lambda_.6} parent=11 // pred_check_branch
        %174 = sbr.rel (%p172) target = $region16
      $region15: #{_lambda_.6} parent=11 // pred_region
        _
      $region16: #{_lambda_.6} parent=11 // pred_fallthru
        _
      // Predicated region
      $region17: #{_lambda_.6} parent=11 // pred_check
        %p175 = pneg %p131
      $region18: #{_lambda_.6} parent=11 // pred_check_branch
        %177 = sbr.rel (%p175) target = $region20
      $region19: #{_lambda_.6} parent=11 // pred_region
        _
      $region20: #{_lambda_.6} parent=11 // pred_fallthru
        _
    $region12: #{_lambda_.6} parent=5 // pred_fallthru
      _
    %p178 = scmp.lt.s32.totalorder %s11, 2
    // Predicated region
    $region21: #{_lambda_.6} parent=5 // pred_check
      %p179 = pneg %p178
    $region22: #{_lambda_.6} parent=5 // pred_check_branch
      %181 = sbr.rel (%p179) target = $region24
    $region23: #{_lambda_.6} parent=5 // pred_region
      // Predicated region
      $region25: #{_lambda_.6} parent=23 // pred_check
        %p182 = pneg %p31
      $region26: #{_lambda_.6} parent=23 // pred_check_branch
        %184 = sbr.rel (%p182) target = $region28
      $region27: #{_lambda_.6} parent=23 // pred_region
        %s185 = smul.u32 10, %s11
        %p186 = scmp.lt.s32.totalorder %s185, 19
        %s187 = scalar_select %p186, %s185, 19
        %s188 = smul.addr %s187, 4
        %s189 = scalar_lea.vmem %s0, %s188
        %s190 = smul.u32 10, %s11
      $region28: #{_lambda_.6} parent=23 // pred_fallthru
        _
      // Predicated region
      $region29: #{_lambda_.6} parent=23 // pred_check
        %p191 = pneg %p57
      $region30: #{_lambda_.6} parent=23 // pred_check_branch
        %193 = sbr.rel (%p191) target = $region32
      $region31: #{_lambda_.6} parent=23 // pred_region
        %s194 = smul.u32 10, %s11
        %p195 = scmp.lt.s32.totalorder %s194, 19
        %s196 = scalar_select %p195, %s194, 19
        %s197 = smul.addr %s196, 4
        %s198 = scalar_lea.vmem %s1, %s197
        %s199 = smul.u32 10, %s11
      $region32: #{_lambda_.6} parent=23 // pred_fallthru
        _
      // Predicated region
      $region33: #{_lambda_.6} parent=23 // pred_check
        %p200 = pneg %p83
      $region34: #{_lambda_.6} parent=23 // pred_check_branch
        %202 = sbr.rel (%p200) target = $region36
      $region35: #{_lambda_.6} parent=23 // pred_region
        %s203 = smul.u32 10, %s11
        %p204 = scmp.lt.s32.totalorder %s203, 19
        %s205 = scalar_select %p204, %s203, 19
        %s206 = smul.addr %s205, 4
        %s207 = scalar_lea.vmem %s2, %s206
        %s208 = smul.u32 10, %s11
      $region36: #{_lambda_.6} parent=23 // pred_fallthru
        _
    $region24: #{_lambda_.6} parent=5 // pred_fallthru
      _
    %p209 = scmp.le.s32.totalorder 1, %s11
    %p210 = scmp.lt.s32.totalorder %s11, 3
    %p211 = pnand %p209, %p210
    %p212 = pneg %p211
    // Predicated region
    $region37: #{_lambda_.6} parent=5 // pred_check
      _
    $region38: #{_lambda_.6} parent=5 // pred_check_branch
      %214 = sbr.rel (%p211) target = $region40
    $region39: #{_lambda_.6} parent=5 // pred_region
      %s215 = ssub.s32 %s11, 1
      %s216 = smul.u32 10, %s16
      %p217 = scmp.lt.s32.totalorder %s216, 19
      %s218 = scalar_select %p217, %s216, 19
      %s219 = smul.addr %s218, 4
      %s220 = scalar_lea.vmem %s0, %s219
      %p221 = pneg %p37
      %p222 = pneg %p34
      %s223 = smul.u32 10, %s16
      %p224 = scmp.lt.s32.totalorder %s223, 19
      %s225 = scalar_select %p224, %s223, 19
      %s226 = smul.addr %s225, 4
      %s227 = scalar_lea.vmem %s1, %s226
      %p228 = pneg %p63
      %p229 = pneg %p60
      %s230 = smul.u32 10, %s16
      %p231 = scmp.lt.s32.totalorder %s230, 19
      %s232 = scalar_select %p231, %s230, 19
      %s233 = smul.addr %s232, 4
      %s234 = scalar_lea.vmem %s2, %s233
      %p235 = pneg %p89
      %p236 = pneg %p86
      %p237 = pneg %p110
      %p238 = pneg %p107
      %p239 = pneg %p131
      %p240 = pneg %p128
      %p241 = pneg %p157
      %p242 = pneg %p154
      %s243 = smul.u32 10, %s16
      %p244 = scmp.lt.s32.totalorder %s243, 19
      %s245 = scalar_select %p244, %s243, 19
      %s246 = smul.addr %s245, 4
      %s247 = scalar_lea.vmem %s5, %s246
      %s248 = smul.u32 10, %s16
      %p249 = scmp.lt.s32.totalorder %s248, 19
      %s250 = scalar_select %p249, %s248, 19
      %s251 = smul.addr %s250, 4
      %s252 = scalar_lea.vmem %s0, %s251
      %s253 = smul.u32 10, %s16
      %s254 = smul.u32 10, %s16
      %p255 = scmp.lt.s32.totalorder %s254, 19
      %s256 = scalar_select %p255, %s254, 19
      %s257 = smul.addr %s256, 4
      %s258 = scalar_lea.vmem %s1, %s257
      %s259 = smul.u32 10, %s16
      %s260 = smul.u32 10, %s16
      %p261 = scmp.lt.s32.totalorder %s260, 19
      %s262 = scalar_select %p261, %s260, 19
      %s263 = smul.addr %s262, 4
      %s264 = scalar_lea.vmem %s2, %s263
      %s265 = smul.u32 10, %s16
      %s266 = smul.u32 10, %s16
      %p267 = scmp.lt.s32.totalorder %s266, 19
      %s268 = scalar_select %p267, %s266, 19
      %s269 = smul.addr %s268, 4
      %s270 = scalar_lea.vmem %s5, %s269
      %s271 = smul.u32 10, %s16
      %v273 = vld [vmem:[%s252] sm:$0xf]
      %v274 = vld [vmem:[%s252 + $0x4] sm:$0xf]
      %v275 = vld [vmem:[%s252 + $0x8] sm:$0xf]
      %v276 = vld [vmem:[%s252 + $0xc] sm:$0xf]
      %v277 = vld [vmem:[%s252 + $0x10] sm:$0xf]
      %v278 = vld [vmem:[%s252 + $0x14] sm:$0xf]
      %v279 = vld [vmem:[%s252 + $0x18] sm:$0xf]
      %v280 = vld [vmem:[%s252 + $0x1c] sm:$0xf]
      %v281 = vld [vmem:[%s252 + $0x20] sm:$0xf]
      %v282 = vld [vmem:[%s252 + $0x24] sm:$0xf]
      %v283 = vld [vmem:[%s258] sm:$0xf]
      %v284 = vld [vmem:[%s258 + $0x4] sm:$0xf]
      %v285 = vld [vmem:[%s258 + $0x8] sm:$0xf]
      %v286 = vld [vmem:[%s258 + $0xc] sm:$0xf]
      %v287 = vld [vmem:[%s258 + $0x10] sm:$0xf]
      %v288 = vld [vmem:[%s258 + $0x14] sm:$0xf]
      %v289 = vld [vmem:[%s258 + $0x18] sm:$0xf]
      %v290 = vld [vmem:[%s258 + $0x1c] sm:$0xf]
      %v291 = vld [vmem:[%s258 + $0x20] sm:$0xf]
      %v292 = vld [vmem:[%s258 + $0x24] sm:$0xf]
      %v293 = vld [vmem:[%s264] sm:$0xf]
      %v294 = vld [vmem:[%s264 + $0x4] sm:$0xf]
      %v295 = vld [vmem:[%s264 + $0x8] sm:$0xf]
      %v296 = vld [vmem:[%s264 + $0xc] sm:$0xf]
      %v297 = vld [vmem:[%s264 + $0x10] sm:$0xf]
      %v298 = vld [vmem:[%s264 + $0x14] sm:$0xf]
      %v299 = vld [vmem:[%s264 + $0x18] sm:$0xf]
      %v300 = vld [vmem:[%s264 + $0x1c] sm:$0xf]
      %v301 = vld [vmem:[%s264 + $0x20] sm:$0xf]
      %v302 = vld [vmem:[%s264 + $0x24] sm:$0xf]
      %v303 = vld [vmem:[%s3] sm:$0xf]
      %v304 = vld [vmem:[%s3 + $0xc] sm:$0xf]
      %v315 = vunpack.c.l.b16 %v283
      %v316 = vunpack.c.l.b16 %v284
      %v317 = vunpack.c.l.b16 %v285
      %v318 = vunpack.c.l.b16 %v286
      %v319 = vunpack.c.l.b16 %v287
      %v320 = vunpack.c.l.b16 %v288
      %v321 = vunpack.c.l.b16 %v289
      %v322 = vunpack.c.l.b16 %v290
      %v323 = vunpack.c.l.b16 %v291
      %v324 = vunpack.c.l.b16 %v292
      %v325 = vpack.c.b16 %v316, %v315
      %v326 = vpack.c.b16 %v318, %v317
      %v327 = vpack.c.b16 %v320, %v319
      %v328 = vpack.c.b16 %v322, %v321
      %v329 = vpack.c.b16 %v324, %v323
      %vm330 = vcmask 64512
      %v332 = vsel %vm330, %v325, 0
      %v335 = vsel %vm330, %v326, 0
      %v338 = vsel %vm330, %v327, 0
      %v341 = vsel %vm330, %v328, 0
      %v344 = vsel %vm330, %v329, 0
      %vm346 = vcmask 1043456
      %v348 = vsel %vm346, %v304, 0
      %350 = vmatprep.subr.bf16.mxu0 0
      %351 = vmatpush1.bf16.msra.mxu0 0
      %352 = vmatprep.subr.bf16.mxu0 0
      %353 = vmatpush1.bf16.msra.mxu0 0
      %354 = vmatprep.subr.bf16.mxu0 0
      %355 = vmatpush1.bf16.msra.mxu0 0
      %356 = vmatprep.subr.bf16.mxu0 0
      %357 = vmatpush1.bf16.msra.mxu0 0
      %358 = vmatprep.subr.bf16.mxu0 0
      %359 = vmatpush1.bf16.msra.mxu0 0
      %360 = vmatprep.subr.bf16.mxu0 0
      %361 = vmatpush1.bf16.msra.mxu0 0
      %362 = vmatprep.subr.bf16.mxu0 0
      %363 = vmatpush1.bf16.msra.mxu0 0
      %364 = vmatprep.subr.bf16.mxu0 0
      %365 = vmatpush1.bf16.msra.mxu0 %v348
      %366 = vmatprep.subr.bf16.mxu0 0
      %367 = vmatpush2.bf16.msra.mxu0 0
      %368 = vmatprep.subr.bf16.mxu0 0
      %369 = vmatpush2.bf16.msra.mxu0 0
      %370 = vmatprep.subr.bf16.mxu0 0
      %371 = vmatpush2.bf16.msra.mxu0 0
      %372 = vmatprep.subr.bf16.mxu0 0
      %373 = vmatpush2.bf16.msra.mxu0 0
      %374 = vmatprep.subr.bf16.mxu0 0
      %375 = vmatpush2.bf16.msra.mxu0 0
      %376 = vmatprep.subr.bf16.mxu0 0
      %377 = vmatpush2.bf16.msra.mxu0 0
      %378 = vmatprep.subr.bf16.mxu0 0
      %379 = vmatpush2.bf16.msra.mxu0 0
      %380 = vmatprep.subr.bf16.mxu0 0
      %381 = vmatpush2.bf16.msra.mxu0 0
      %382 = vmatprep.mubr.bf16.mxu0 0
      %383 = vmatmul.mubr.bf16.gmra.mxu0 %v332
      %v384 = vpop.f32.mrf.mxu0
      %v385 = vadd.f32 0.0, %v384
      %v386 = vpop.f32.mrf.mxu0
      %v387 = vpop.f32.mrf.mxu0
      %v388 = vadd.f32 0.0, %v387
      %v389 = vpop.f32.mrf.mxu0
      %390 = vmatprep.mubr.bf16.mxu0 0
      %391 = vmatmul.mubr.bf16.gmra.mxu0 %v335
      %v392 = vpop.f32.mrf.mxu0
      %v393 = vadd.f32 0.0, %v392
      %v394 = vpop.f32.mrf.mxu0
      %v395 = vpop.f32.mrf.mxu0
      %v396 = vadd.f32 0.0, %v395
      %v397 = vpop.f32.mrf.mxu0
      %398 = vmatprep.mubr.bf16.mxu0 0
      %399 = vmatmul.mubr.bf16.gmra.mxu0 %v338
      %v400 = vpop.f32.mrf.mxu0
      %v401 = vadd.f32 0.0, %v400
      %v402 = vpop.f32.mrf.mxu0
      %v403 = vpop.f32.mrf.mxu0
      %v404 = vadd.f32 0.0, %v403
      %v405 = vpop.f32.mrf.mxu0
      %406 = vmatprep.mubr.bf16.mxu0 0
      %407 = vmatmul.mubr.bf16.gmra.mxu0 %v341
      %v408 = vpop.f32.mrf.mxu0
      %v409 = vadd.f32 0.0, %v408
      %v410 = vpop.f32.mrf.mxu0
      %v411 = vpop.f32.mrf.mxu0
      %v412 = vadd.f32 0.0, %v411
      %v413 = vpop.f32.mrf.mxu0
      %414 = vmatprep.mubr.bf16.mxu0 0
      %415 = vmatmul.mubr.bf16.gmra.mxu0 %v344
      %v416 = vpop.f32.mrf.mxu0
      %v417 = vadd.f32 0.0, %v416
      %v418 = vpop.f32.mrf.mxu0
      %v419 = vpop.f32.mrf.mxu0
      %v420 = vadd.f32 0.0, %v419
      %v421 = vpop.f32.mrf.mxu0
      %422 = vdwg.mxu0
      %v433 = vunpack.c.l.b16 %v273
      %v434 = vunpack.c.l.b16 %v274
      %v435 = vunpack.c.l.b16 %v275
      %v436 = vunpack.c.l.b16 %v276
      %v437 = vunpack.c.l.b16 %v277
      %v438 = vunpack.c.l.b16 %v278
      %v439 = vunpack.c.l.b16 %v279
      %v440 = vunpack.c.l.b16 %v280
      %v441 = vunpack.c.l.b16 %v281
      %v442 = vunpack.c.l.b16 %v282
      %v443 = vpack.c.b16 %v434, %v433
      %v444 = vpack.c.b16 %v436, %v435
      %v445 = vpack.c.b16 %v438, %v437
      %v446 = vpack.c.b16 %v440, %v439
      %v447 = vpack.c.b16 %v442, %v441
      %v449 = vsel %vm330, %v443, 0
      %v452 = vsel %vm330, %v444, 0
      %v455 = vsel %vm330, %v445, 0
      %v458 = vsel %vm330, %v446, 0
      %v461 = vsel %vm330, %v447, 0
      %v464 = vsel %vm346, %v303, 0
      %466 = vmatprep.subr.bf16.mxu0 0
      %467 = vmatpush1.bf16.msra.mxu0 0
      %468 = vmatprep.subr.bf16.mxu0 0
      %469 = vmatpush1.bf16.msra.mxu0 0
      %470 = vmatprep.subr.bf16.mxu0 0
      %471 = vmatpush1.bf16.msra.mxu0 0
      %472 = vmatprep.subr.bf16.mxu0 0
      %473 = vmatpush1.bf16.msra.mxu0 0
      %474 = vmatprep.subr.bf16.mxu0 0
      %475 = vmatpush1.bf16.msra.mxu0 0
      %476 = vmatprep.subr.bf16.mxu0 0
      %477 = vmatpush1.bf16.msra.mxu0 0
      %478 = vmatprep.subr.bf16.mxu0 0
      %479 = vmatpush1.bf16.msra.mxu0 0
      %480 = vmatprep.subr.bf16.mxu0 0
      %481 = vmatpush1.bf16.msra.mxu0 %v464
      %482 = vmatprep.subr.bf16.mxu0 0
      %483 = vmatpush2.bf16.msra.mxu0 0
      %484 = vmatprep.subr.bf16.mxu0 0
      %485 = vmatpush2.bf16.msra.mxu0 0
      %486 = vmatprep.subr.bf16.mxu0 0
      %487 = vmatpush2.bf16.msra.mxu0 0
      %488 = vmatprep.subr.bf16.mxu0 0
      %489 = vmatpush2.bf16.msra.mxu0 0
      %490 = vmatprep.subr.bf16.mxu0 0
      %491 = vmatpush2.bf16.msra.mxu0 0
      %492 = vmatprep.subr.bf16.mxu0 0
      %493 = vmatpush2.bf16.msra.mxu0 0
      %494 = vmatprep.subr.bf16.mxu0 0
      %495 = vmatpush2.bf16.msra.mxu0 0
      %496 = vmatprep.subr.bf16.mxu0 0
      %497 = vmatpush2.bf16.msra.mxu0 0
      %498 = vmatprep.mubr.bf16.mxu0 0
      %499 = vmatmul.mubr.bf16.gmra.mxu0 %v449
      %v500 = vpop.f32.mrf.mxu0
      %v501 = vadd.f32 %v385, %v500
      %v502 = vpop.f32.mrf.mxu0
      %v503 = vpop.f32.mrf.mxu0
      %v504 = vadd.f32 %v388, %v503
      %v505 = vpop.f32.mrf.mxu0
      %506 = vmatprep.mubr.bf16.mxu0 0
      %507 = vmatmul.mubr.bf16.gmra.mxu0 %v452
      %v508 = vpop.f32.mrf.mxu0
      %v509 = vadd.f32 %v393, %v508
      %v510 = vpop.f32.mrf.mxu0
      %v511 = vpop.f32.mrf.mxu0
      %v512 = vadd.f32 %v396, %v511
      %v513 = vpop.f32.mrf.mxu0
      %514 = vmatprep.mubr.bf16.mxu0 0
      %515 = vmatmul.mubr.bf16.gmra.mxu0 %v455
      %v516 = vpop.f32.mrf.mxu0
      %v517 = vadd.f32 %v401, %v516
      %v518 = vpop.f32.mrf.mxu0
      %v519 = vpop.f32.mrf.mxu0
      %v520 = vadd.f32 %v404, %v519
      %v521 = vpop.f32.mrf.mxu0
      %522 = vmatprep.mubr.bf16.mxu0 0
      %523 = vmatmul.mubr.bf16.gmra.mxu0 %v458
      %v524 = vpop.f32.mrf.mxu0
      %v525 = vadd.f32 %v409, %v524
      %v526 = vpop.f32.mrf.mxu0
      %v527 = vpop.f32.mrf.mxu0
      %v528 = vadd.f32 %v412, %v527
      %v529 = vpop.f32.mrf.mxu0
      %530 = vmatprep.mubr.bf16.mxu0 0
      %531 = vmatmul.mubr.bf16.gmra.mxu0 %v461
      %v532 = vpop.f32.mrf.mxu0
      %v533 = vadd.f32 %v417, %v532
      %v534 = vpop.f32.mrf.mxu0
      %v535 = vpop.f32.mrf.mxu0
      %v536 = vadd.f32 %v420, %v535
      %v537 = vpop.f32.mrf.mxu0
      %538 = vdwg.mxu0
      %v539 = vld [vmem:[%s3 + $0x18] sm:$0xf]
      %v550 = vunpack.c.l.b16 %v293
      %v551 = vunpack.c.l.b16 %v294
      %v552 = vunpack.c.l.b16 %v295
      %v553 = vunpack.c.l.b16 %v296
      %v554 = vunpack.c.l.b16 %v297
      %v555 = vunpack.c.l.b16 %v298
      %v556 = vunpack.c.l.b16 %v299
      %v557 = vunpack.c.l.b16 %v300
      %v558 = vunpack.c.l.b16 %v301
      %v559 = vunpack.c.l.b16 %v302
      %v560 = vpack.c.b16 %v551, %v550
      %v561 = vpack.c.b16 %v553, %v552
      %v562 = vpack.c.b16 %v555, %v554
      %v563 = vpack.c.b16 %v557, %v556
      %v564 = vpack.c.b16 %v559, %v558
      %v566 = vsel %vm330, %v560, 0
      %v569 = vsel %vm330, %v561, 0
      %v572 = vsel %vm330, %v562, 0
      %v575 = vsel %vm330, %v563, 0
      %v578 = vsel %vm330, %v564, 0
      %v581 = vsel %vm346, %v539, 0
      %583 = vmatprep.subr.bf16.mxu0 0
      %584 = vmatpush1.bf16.msra.mxu0 0
      %585 = vmatprep.subr.bf16.mxu0 0
      %586 = vmatpush1.bf16.msra.mxu0 0
      %587 = vmatprep.subr.bf16.mxu0 0
      %588 = vmatpush1.bf16.msra.mxu0 0
      %589 = vmatprep.subr.bf16.mxu0 0
      %590 = vmatpush1.bf16.msra.mxu0 0
      %591 = vmatprep.subr.bf16.mxu0 0
      %592 = vmatpush1.bf16.msra.mxu0 0
      %593 = vmatprep.subr.bf16.mxu0 0
      %594 = vmatpush1.bf16.msra.mxu0 0
      %595 = vmatprep.subr.bf16.mxu0 0
      %596 = vmatpush1.bf16.msra.mxu0 0
      %597 = vmatprep.subr.bf16.mxu0 0
      %598 = vmatpush1.bf16.msra.mxu0 %v581
      %599 = vmatprep.subr.bf16.mxu0 0
      %600 = vmatpush2.bf16.msra.mxu0 0
      %601 = vmatprep.subr.bf16.mxu0 0
      %602 = vmatpush2.bf16.msra.mxu0 0
      %603 = vmatprep.subr.bf16.mxu0 0
      %604 = vmatpush2.bf16.msra.mxu0 0
      %605 = vmatprep.subr.bf16.mxu0 0
      %606 = vmatpush2.bf16.msra.mxu0 0
      %607 = vmatprep.subr.bf16.mxu0 0
      %608 = vmatpush2.bf16.msra.mxu0 0
      %609 = vmatprep.subr.bf16.mxu0 0
      %610 = vmatpush2.bf16.msra.mxu0 0
      %611 = vmatprep.subr.bf16.mxu0 0
      %612 = vmatpush2.bf16.msra.mxu0 0
      %613 = vmatprep.subr.bf16.mxu0 0
      %614 = vmatpush2.bf16.msra.mxu0 0
      %615 = vmatprep.mubr.bf16.mxu0 0
      %616 = vmatmul.mubr.bf16.gmra.mxu0 %v566
      %v617 = vpop.f32.mrf.mxu0
      %v618 = vadd.f32 0.0, %v617
      %v619 = vpop.f32.mrf.mxu0
      %v620 = vpop.f32.mrf.mxu0
      %v621 = vadd.f32 0.0, %v620
      %v622 = vpop.f32.mrf.mxu0
      %623 = vmatprep.mubr.bf16.mxu0 0
      %624 = vmatmul.mubr.bf16.gmra.mxu0 %v569
      %v625 = vpop.f32.mrf.mxu0
      %v626 = vadd.f32 0.0, %v625
      %v627 = vpop.f32.mrf.mxu0
      %v628 = vpop.f32.mrf.mxu0
      %v629 = vadd.f32 0.0, %v628
      %v630 = vpop.f32.mrf.mxu0
      %631 = vmatprep.mubr.bf16.mxu0 0
      %632 = vmatmul.mubr.bf16.gmra.mxu0 %v572
      %v633 = vpop.f32.mrf.mxu0
      %v634 = vadd.f32 0.0, %v633
      %v635 = vpop.f32.mrf.mxu0
      %v636 = vpop.f32.mrf.mxu0
      %v637 = vadd.f32 0.0, %v636
      %v638 = vpop.f32.mrf.mxu0
      %639 = vmatprep.mubr.bf16.mxu0 0
      %640 = vmatmul.mubr.bf16.gmra.mxu0 %v575
      %v641 = vpop.f32.mrf.mxu0
      %v642 = vadd.f32 0.0, %v641
      %v643 = vpop.f32.mrf.mxu0
      %v644 = vpop.f32.mrf.mxu0
      %v645 = vadd.f32 0.0, %v644
      %v646 = vpop.f32.mrf.mxu0
      %647 = vmatprep.mubr.bf16.mxu0 0
      %648 = vmatmul.mubr.bf16.gmra.mxu0 %v578
      %v649 = vpop.f32.mrf.mxu0
      %v650 = vadd.f32 0.0, %v649
      %v651 = vpop.f32.mrf.mxu0
      %v652 = vpop.f32.mrf.mxu0
      %v653 = vadd.f32 0.0, %v652
      %v654 = vpop.f32.mrf.mxu0
      %655 = vdwg.mxu0
      %v656 = vadd.f32 %v501, %v618
      %v657 = vadd.f32 %v504, %v621
      %v658 = vadd.f32 %v509, %v626
      %v659 = vadd.f32 %v512, %v629
      %v660 = vadd.f32 %v517, %v634
      %v661 = vadd.f32 %v520, %v637
      %v662 = vadd.f32 %v525, %v642
      %v663 = vadd.f32 %v528, %v645
      %v664 = vadd.f32 %v533, %v650
      %v665 = vadd.f32 %v536, %v653
      %v666 = vld [vmem:[%s3 + $0x4] sm:$0xf]
      %v667 = vld [vmem:[%s3 + $0x10] sm:$0xf]
      %v669 = vsel %vm346, %v667, 0
      %671 = vmatprep.subr.bf16.mxu0 0
      %672 = vmatpush1.bf16.msra.mxu0 0
      %673 = vmatprep.subr.bf16.mxu0 0
      %674 = vmatpush1.bf16.msra.mxu0 0
      %675 = vmatprep.subr.bf16.mxu0 0
      %676 = vmatpush1.bf16.msra.mxu0 0
      %677 = vmatprep.subr.bf16.mxu0 0
      %678 = vmatpush1.bf16.msra.mxu0 0
      %679 = vmatprep.subr.bf16.mxu0 0
      %680 = vmatpush1.bf16.msra.mxu0 0
      %681 = vmatprep.subr.bf16.mxu0 0
      %682 = vmatpush1.bf16.msra.mxu0 0
      %683 = vmatprep.subr.bf16.mxu0 0
      %684 = vmatpush1.bf16.msra.mxu0 0
      %685 = vmatprep.subr.bf16.mxu0 0
      %686 = vmatpush1.bf16.msra.mxu0 %v669
      %687 = vmatprep.subr.bf16.mxu0 0
      %688 = vmatpush2.bf16.msra.mxu0 0
      %689 = vmatprep.subr.bf16.mxu0 0
      %690 = vmatpush2.bf16.msra.mxu0 0
      %691 = vmatprep.subr.bf16.mxu0 0
      %692 = vmatpush2.bf16.msra.mxu0 0
      %693 = vmatprep.subr.bf16.mxu0 0
      %694 = vmatpush2.bf16.msra.mxu0 0
      %695 = vmatprep.subr.bf16.mxu0 0
      %696 = vmatpush2.bf16.msra.mxu0 0
      %697 = vmatprep.subr.bf16.mxu0 0
      %698 = vmatpush2.bf16.msra.mxu0 0
      %699 = vmatprep.subr.bf16.mxu0 0
      %700 = vmatpush2.bf16.msra.mxu0 0
      %701 = vmatprep.subr.bf16.mxu0 0
      %702 = vmatpush2.bf16.msra.mxu0 0
      %703 = vmatprep.mubr.bf16.mxu0 0
      %704 = vmatmul.mubr.bf16.gmra.mxu0 %v332
      %v705 = vpop.f32.mrf.mxu0
      %v706 = vadd.f32 0.0, %v705
      %v707 = vpop.f32.mrf.mxu0
      %v708 = vpop.f32.mrf.mxu0
      %v709 = vadd.f32 0.0, %v708
      %v710 = vpop.f32.mrf.mxu0
      %711 = vmatprep.mubr.bf16.mxu0 0
      %712 = vmatmul.mubr.bf16.gmra.mxu0 %v335
      %v713 = vpop.f32.mrf.mxu0
      %v714 = vadd.f32 0.0, %v713
      %v715 = vpop.f32.mrf.mxu0
      %v716 = vpop.f32.mrf.mxu0
      %v717 = vadd.f32 0.0, %v716
      %v718 = vpop.f32.mrf.mxu0
      %719 = vmatprep.mubr.bf16.mxu0 0
      %720 = vmatmul.mubr.bf16.gmra.mxu0 %v338
      %v721 = vpop.f32.mrf.mxu0
      %v722 = vadd.f32 0.0, %v721
      %v723 = vpop.f32.mrf.mxu0
      %v724 = vpop.f32.mrf.mxu0
      %v725 = vadd.f32 0.0, %v724
      %v726 = vpop.f32.mrf.mxu0
      %727 = vmatprep.mubr.bf16.mxu0 0
      %728 = vmatmul.mubr.bf16.gmra.mxu0 %v341
      %v729 = vpop.f32.mrf.mxu0
      %v730 = vadd.f32 0.0, %v729
      %v731 = vpop.f32.mrf.mxu0
      %v732 = vpop.f32.mrf.mxu0
      %v733 = vadd.f32 0.0, %v732
      %v734 = vpop.f32.mrf.mxu0
      %735 = vmatprep.mubr.bf16.mxu0 0
      %736 = vmatmul.mubr.bf16.gmra.mxu0 %v344
      %v737 = vpop.f32.mrf.mxu0
      %v738 = vadd.f32 0.0, %v737
      %v739 = vpop.f32.mrf.mxu0
      %v740 = vpop.f32.mrf.mxu0
      %v741 = vadd.f32 0.0, %v740
      %v742 = vpop.f32.mrf.mxu0
      %743 = vdwg.mxu0
      %v745 = vsel %vm346, %v666, 0
      %747 = vmatprep.subr.bf16.mxu0 0
      %748 = vmatpush1.bf16.msra.mxu0 0
      %749 = vmatprep.subr.bf16.mxu0 0
      %750 = vmatpush1.bf16.msra.mxu0 0
      %751 = vmatprep.subr.bf16.mxu0 0
      %752 = vmatpush1.bf16.msra.mxu0 0
      %753 = vmatprep.subr.bf16.mxu0 0
      %754 = vmatpush1.bf16.msra.mxu0 0
      %755 = vmatprep.subr.bf16.mxu0 0
      %756 = vmatpush1.bf16.msra.mxu0 0
      %757 = vmatprep.subr.bf16.mxu0 0
      %758 = vmatpush1.bf16.msra.mxu0 0
      %759 = vmatprep.subr.bf16.mxu0 0
      %760 = vmatpush1.bf16.msra.mxu0 0
      %761 = vmatprep.subr.bf16.mxu0 0
      %762 = vmatpush1.bf16.msra.mxu0 %v745
      %763 = vmatprep.subr.bf16.mxu0 0
      %764 = vmatpush2.bf16.msra.mxu0 0
      %765 = vmatprep.subr.bf16.mxu0 0
      %766 = vmatpush2.bf16.msra.mxu0 0
      %767 = vmatprep.subr.bf16.mxu0 0
      %768 = vmatpush2.bf16.msra.mxu0 0
      %769 = vmatprep.subr.bf16.mxu0 0
      %770 = vmatpush2.bf16.msra.mxu0 0
      %771 = vmatprep.subr.bf16.mxu0 0
      %772 = vmatpush2.bf16.msra.mxu0 0
      %773 = vmatprep.subr.bf16.mxu0 0
      %774 = vmatpush2.bf16.msra.mxu0 0
      %775 = vmatprep.subr.bf16.mxu0 0
      %776 = vmatpush2.bf16.msra.mxu0 0
      %777 = vmatprep.subr.bf16.mxu0 0
      %778 = vmatpush2.bf16.msra.mxu0 0
      %779 = vmatprep.mubr.bf16.mxu0 0
      %780 = vmatmul.mubr.bf16.gmra.mxu0 %v449
      %v781 = vpop.f32.mrf.mxu0
      %v782 = vadd.f32 %v706, %v781
      %v783 = vpop.f32.mrf.mxu0
      %v784 = vpop.f32.mrf.mxu0
      %v785 = vadd.f32 %v709, %v784
      %v786 = vpop.f32.mrf.mxu0
      %787 = vmatprep.mubr.bf16.mxu0 0
      %788 = vmatmul.mubr.bf16.gmra.mxu0 %v452
      %v789 = vpop.f32.mrf.mxu0
      %v790 = vadd.f32 %v714, %v789
      %v791 = vpop.f32.mrf.mxu0
      %v792 = vpop.f32.mrf.mxu0
      %v793 = vadd.f32 %v717, %v792
      %v794 = vpop.f32.mrf.mxu0
      %795 = vmatprep.mubr.bf16.mxu0 0
      %796 = vmatmul.mubr.bf16.gmra.mxu0 %v455
      %v797 = vpop.f32.mrf.mxu0
      %v798 = vadd.f32 %v722, %v797
      %v799 = vpop.f32.mrf.mxu0
      %v800 = vpop.f32.mrf.mxu0
      %v801 = vadd.f32 %v725, %v800
      %v802 = vpop.f32.mrf.mxu0
      %803 = vmatprep.mubr.bf16.mxu0 0
      %804 = vmatmul.mubr.bf16.gmra.mxu0 %v458
      %v805 = vpop.f32.mrf.mxu0
      %v806 = vadd.f32 %v730, %v805
      %v807 = vpop.f32.mrf.mxu0
      %v808 = vpop.f32.mrf.mxu0
      %v809 = vadd.f32 %v733, %v808
      %v810 = vpop.f32.mrf.mxu0
      %811 = vmatprep.mubr.bf16.mxu0 0
      %812 = vmatmul.mubr.bf16.gmra.mxu0 %v461
      %v813 = vpop.f32.mrf.mxu0
      %v814 = vadd.f32 %v738, %v813
      %v815 = vpop.f32.mrf.mxu0
      %v816 = vpop.f32.mrf.mxu0
      %v817 = vadd.f32 %v741, %v816
      %v818 = vpop.f32.mrf.mxu0
      %819 = vdwg.mxu0
      %v820 = vld [vmem:[%s3 + $0x1c] sm:$0xf]
      %v822 = vsel %vm346, %v820, 0
      %824 = vmatprep.subr.bf16.mxu0 0
      %825 = vmatpush1.bf16.msra.mxu0 0
      %826 = vmatprep.subr.bf16.mxu0 0
      %827 = vmatpush1.bf16.msra.mxu0 0
      %828 = vmatprep.subr.bf16.mxu0 0
      %829 = vmatpush1.bf16.msra.mxu0 0
      %830 = vmatprep.subr.bf16.mxu0 0
      %831 = vmatpush1.bf16.msra.mxu0 0
      %832 = vmatprep.subr.bf16.mxu0 0
      %833 = vmatpush1.bf16.msra.mxu0 0
      %834 = vmatprep.subr.bf16.mxu0 0
      %835 = vmatpush1.bf16.msra.mxu0 0
      %836 = vmatprep.subr.bf16.mxu0 0
      %837 = vmatpush1.bf16.msra.mxu0 0
      %838 = vmatprep.subr.bf16.mxu0 0
      %839 = vmatpush1.bf16.msra.mxu0 %v822
      %840 = vmatprep.subr.bf16.mxu0 0
      %841 = vmatpush2.bf16.msra.mxu0 0
      %842 = vmatprep.subr.bf16.mxu0 0
      %843 = vmatpush2.bf16.msra.mxu0 0
      %844 = vmatprep.subr.bf16.mxu0 0
      %845 = vmatpush2.bf16.msra.mxu0 0
      %846 = vmatprep.subr.bf16.mxu0 0
      %847 = vmatpush2.bf16.msra.mxu0 0
      %848 = vmatprep.subr.bf16.mxu0 0
      %849 = vmatpush2.bf16.msra.mxu0 0
      %850 = vmatprep.subr.bf16.mxu0 0
      %851 = vmatpush2.bf16.msra.mxu0 0
      %852 = vmatprep.subr.bf16.mxu0 0
      %853 = vmatpush2.bf16.msra.mxu0 0
      %854 = vmatprep.subr.bf16.mxu0 0
      %855 = vmatpush2.bf16.msra.mxu0 0
      %856 = vmatprep.mubr.bf16.mxu0 0
      %857 = vmatmul.mubr.bf16.gmra.mxu0 %v566
      %v858 = vpop.f32.mrf.mxu0
      %v859 = vadd.f32 0.0, %v858
      %v860 = vpop.f32.mrf.mxu0
      %v861 = vpop.f32.mrf.mxu0
      %v862 = vadd.f32 0.0, %v861
      %v863 = vpop.f32.mrf.mxu0
      %864 = vmatprep.mubr.bf16.mxu0 0
      %865 = vmatmul.mubr.bf16.gmra.mxu0 %v569
      %v866 = vpop.f32.mrf.mxu0
      %v867 = vadd.f32 0.0, %v866
      %v868 = vpop.f32.mrf.mxu0
      %v869 = vpop.f32.mrf.mxu0
      %v870 = vadd.f32 0.0, %v869
      %v871 = vpop.f32.mrf.mxu0
      %872 = vmatprep.mubr.bf16.mxu0 0
      %873 = vmatmul.mubr.bf16.gmra.mxu0 %v572
      %v874 = vpop.f32.mrf.mxu0
      %v875 = vadd.f32 0.0, %v874
      %v876 = vpop.f32.mrf.mxu0
      %v877 = vpop.f32.mrf.mxu0
      %v878 = vadd.f32 0.0, %v877
      %v879 = vpop.f32.mrf.mxu0
      %880 = vmatprep.mubr.bf16.mxu0 0
      %881 = vmatmul.mubr.bf16.gmra.mxu0 %v575
      %v882 = vpop.f32.mrf.mxu0
      %v883 = vadd.f32 0.0, %v882
      %v884 = vpop.f32.mrf.mxu0
      %v885 = vpop.f32.mrf.mxu0
      %v886 = vadd.f32 0.0, %v885
      %v887 = vpop.f32.mrf.mxu0
      %888 = vmatprep.mubr.bf16.mxu0 0
      %889 = vmatmul.mubr.bf16.gmra.mxu0 %v578
      %v890 = vpop.f32.mrf.mxu0
      %v891 = vadd.f32 0.0, %v890
      %v892 = vpop.f32.mrf.mxu0
      %v893 = vpop.f32.mrf.mxu0
      %v894 = vadd.f32 0.0, %v893
      %v895 = vpop.f32.mrf.mxu0
      %896 = vdwg.mxu0
      %v897 = vadd.f32 %v782, %v859
      %v898 = vadd.f32 %v785, %v862
      %v899 = vadd.f32 %v790, %v867
      %v900 = vadd.f32 %v793, %v870
      %v901 = vadd.f32 %v798, %v875
      %v902 = vadd.f32 %v801, %v878
      %v903 = vadd.f32 %v806, %v883
      %v904 = vadd.f32 %v809, %v886
      %v905 = vadd.f32 %v814, %v891
      %v906 = vadd.f32 %v817, %v894
      %vm917 = vcmask 1046528
      %v918 = vrot.slane %v897, 1
      %v919 = vrot.slane %v898, 1
      %v920 = vsel %vm917, %v918, %v919
      %v921 = vrot.slane %v899, 1
      %v922 = vsel %vm917, %v919, %v921
      %v923 = vrot.slane %v900, 1
      %v924 = vsel %vm917, %v921, %v923
      %v925 = vrot.slane %v901, 1
      %v926 = vsel %vm917, %v923, %v925
      %v927 = vrot.slane %v902, 1
      %v928 = vsel %vm917, %v925, %v927
      %v929 = vrot.slane %v903, 1
      %v930 = vsel %vm917, %v927, %v929
      %v931 = vrot.slane %v904, 1
      %v932 = vsel %vm917, %v929, %v931
      %v933 = vrot.slane %v905, 1
      %v934 = vsel %vm917, %v931, %v933
      %v935 = vrot.slane %v906, 1
      %v936 = vsel %vm917, %v933, %v935
      %v947 = vsel %vm917, %v935, 0.0
      %v948 = vadd.f32 %v656, %v920
      %v949 = vadd.f32 %v657, %v922
      %v950 = vadd.f32 %v658, %v924
      %v951 = vadd.f32 %v659, %v926
      %v952 = vadd.f32 %v660, %v928
      %v953 = vadd.f32 %v661, %v930
      %v954 = vadd.f32 %v662, %v932
      %v955 = vadd.f32 %v663, %v934
      %v956 = vadd.f32 %v664, %v936
      %v957 = vadd.f32 %v665, %v947
      %v958 = vld [vmem:[%s3 + $0x8] sm:$0xf]
      %v959 = vld [vmem:[%s3 + $0x14] sm:$0xf]
      %v961 = vsel %vm346, %v959, 0
      %963 = vmatprep.subr.bf16.mxu0 0
      %964 = vmatpush1.bf16.msra.mxu0 0
      %965 = vmatprep.subr.bf16.mxu0 0
      %966 = vmatpush1.bf16.msra.mxu0 0
      %967 = vmatprep.subr.bf16.mxu0 0
      %968 = vmatpush1.bf16.msra.mxu0 0
      %969 = vmatprep.subr.bf16.mxu0 0
      %970 = vmatpush1.bf16.msra.mxu0 0
      %971 = vmatprep.subr.bf16.mxu0 0
      %972 = vmatpush1.bf16.msra.mxu0 0
      %973 = vmatprep.subr.bf16.mxu0 0
      %974 = vmatpush1.bf16.msra.mxu0 0
      %975 = vmatprep.subr.bf16.mxu0 0
      %976 = vmatpush1.bf16.msra.mxu0 0
      %977 = vmatprep.subr.bf16.mxu0 0
      %978 = vmatpush1.bf16.msra.mxu0 %v961
      %979 = vmatprep.subr.bf16.mxu0 0
      %980 = vmatpush2.bf16.msra.mxu0 0
      %981 = vmatprep.subr.bf16.mxu0 0
      %982 = vmatpush2.bf16.msra.mxu0 0
      %983 = vmatprep.subr.bf16.mxu0 0
      %984 = vmatpush2.bf16.msra.mxu0 0
      %985 = vmatprep.subr.bf16.mxu0 0
      %986 = vmatpush2.bf16.msra.mxu0 0
      %987 = vmatprep.subr.bf16.mxu0 0
      %988 = vmatpush2.bf16.msra.mxu0 0
      %989 = vmatprep.subr.bf16.mxu0 0
      %990 = vmatpush2.bf16.msra.mxu0 0
      %991 = vmatprep.subr.bf16.mxu0 0
      %992 = vmatpush2.bf16.msra.mxu0 0
      %993 = vmatprep.subr.bf16.mxu0 0
      %994 = vmatpush2.bf16.msra.mxu0 0
      %995 = vmatprep.mubr.bf16.mxu0 0
      %996 = vmatmul.mubr.bf16.gmra.mxu0 %v332
      %v997 = vpop.f32.mrf.mxu0
      %v998 = vadd.f32 0.0, %v997
      %v999 = vpop.f32.mrf.mxu0
      %v1000 = vpop.f32.mrf.mxu0
      %v1001 = vadd.f32 0.0, %v1000
      %v1002 = vpop.f32.mrf.mxu0
      %1003 = vmatprep.mubr.bf16.mxu0 0
      %1004 = vmatmul.mubr.bf16.gmra.mxu0 %v335
      %v1005 = vpop.f32.mrf.mxu0
      %v1006 = vadd.f32 0.0, %v1005
      %v1007 = vpop.f32.mrf.mxu0
      %v1008 = vpop.f32.mrf.mxu0
      %v1009 = vadd.f32 0.0, %v1008
      %v1010 = vpop.f32.mrf.mxu0
      %1011 = vmatprep.mubr.bf16.mxu0 0
      %1012 = vmatmul.mubr.bf16.gmra.mxu0 %v338
      %v1013 = vpop.f32.mrf.mxu0
      %v1014 = vadd.f32 0.0, %v1013
      %v1015 = vpop.f32.mrf.mxu0
      %v1016 = vpop.f32.mrf.mxu0
      %v1017 = vadd.f32 0.0, %v1016
      %v1018 = vpop.f32.mrf.mxu0
      %1019 = vmatprep.mubr.bf16.mxu0 0
      %1020 = vmatmul.mubr.bf16.gmra.mxu0 %v341
      %v1021 = vpop.f32.mrf.mxu0
      %v1022 = vadd.f32 0.0, %v1021
      %v1023 = vpop.f32.mrf.mxu0
      %v1024 = vpop.f32.mrf.mxu0
      %v1025 = vadd.f32 0.0, %v1024
      %v1026 = vpop.f32.mrf.mxu0
      %1027 = vmatprep.mubr.bf16.mxu0 0
      %1028 = vmatmul.mubr.bf16.gmra.mxu0 %v344
      %v1029 = vpop.f32.mrf.mxu0
      %v1030 = vadd.f32 0.0, %v1029
      %v1031 = vpop.f32.mrf.mxu0
      %v1032 = vpop.f32.mrf.mxu0
      %v1033 = vadd.f32 0.0, %v1032
      %v1034 = vpop.f32.mrf.mxu0
      %1035 = vdwg.mxu0
      %v1037 = vsel %vm346, %v958, 0
      %1039 = vmatprep.subr.bf16.mxu0 0
      %1040 = vmatpush1.bf16.msra.mxu0 0
      %1041 = vmatprep.subr.bf16.mxu0 0
      %1042 = vmatpush1.bf16.msra.mxu0 0
      %1043 = vmatprep.subr.bf16.mxu0 0
      %1044 = vmatpush1.bf16.msra.mxu0 0
      %1045 = vmatprep.subr.bf16.mxu0 0
      %1046 = vmatpush1.bf16.msra.mxu0 0
      %1047 = vmatprep.subr.bf16.mxu0 0
      %1048 = vmatpush1.bf16.msra.mxu0 0
      %1049 = vmatprep.subr.bf16.mxu0 0
      %1050 = vmatpush1.bf16.msra.mxu0 0
      %1051 = vmatprep.subr.bf16.mxu0 0
      %1052 = vmatpush1.bf16.msra.mxu0 0
      %1053 = vmatprep.subr.bf16.mxu0 0
      %1054 = vmatpush1.bf16.msra.mxu0 %v1037
      %1055 = vmatprep.subr.bf16.mxu0 0
      %1056 = vmatpush2.bf16.msra.mxu0 0
      %1057 = vmatprep.subr.bf16.mxu0 0
      %1058 = vmatpush2.bf16.msra.mxu0 0
      %1059 = vmatprep.subr.bf16.mxu0 0
      %1060 = vmatpush2.bf16.msra.mxu0 0
      %1061 = vmatprep.subr.bf16.mxu0 0
      %1062 = vmatpush2.bf16.msra.mxu0 0
      %1063 = vmatprep.subr.bf16.mxu0 0
      %1064 = vmatpush2.bf16.msra.mxu0 0
      %1065 = vmatprep.subr.bf16.mxu0 0
      %1066 = vmatpush2.bf16.msra.mxu0 0
      %1067 = vmatprep.subr.bf16.mxu0 0
      %1068 = vmatpush2.bf16.msra.mxu0 0
      %1069 = vmatprep.subr.bf16.mxu0 0
      %1070 = vmatpush2.bf16.msra.mxu0 0
      %1071 = vmatprep.mubr.bf16.mxu0 0
      %1072 = vmatmul.mubr.bf16.gmra.mxu0 %v449
      %v1073 = vpop.f32.mrf.mxu0
      %v1074 = vadd.f32 %v998, %v1073
      %v1075 = vpop.f32.mrf.mxu0
      %v1076 = vpop.f32.mrf.mxu0
      %v1077 = vadd.f32 %v1001, %v1076
      %v1078 = vpop.f32.mrf.mxu0
      %1079 = vmatprep.mubr.bf16.mxu0 0
      %1080 = vmatmul.mubr.bf16.gmra.mxu0 %v452
      %v1081 = vpop.f32.mrf.mxu0
      %v1082 = vadd.f32 %v1006, %v1081
      %v1083 = vpop.f32.mrf.mxu0
      %v1084 = vpop.f32.mrf.mxu0
      %v1085 = vadd.f32 %v1009, %v1084
      %v1086 = vpop.f32.mrf.mxu0
      %1087 = vmatprep.mubr.bf16.mxu0 0
      %1088 = vmatmul.mubr.bf16.gmra.mxu0 %v455
      %v1089 = vpop.f32.mrf.mxu0
      %v1090 = vadd.f32 %v1014, %v1089
      %v1091 = vpop.f32.mrf.mxu0
      %v1092 = vpop.f32.mrf.mxu0
      %v1093 = vadd.f32 %v1017, %v1092
      %v1094 = vpop.f32.mrf.mxu0
      %1095 = vmatprep.mubr.bf16.mxu0 0
      %1096 = vmatmul.mubr.bf16.gmra.mxu0 %v458
      %v1097 = vpop.f32.mrf.mxu0
      %v1098 = vadd.f32 %v1022, %v1097
      %v1099 = vpop.f32.mrf.mxu0
      %v1100 = vpop.f32.mrf.mxu0
      %v1101 = vadd.f32 %v1025, %v1100
      %v1102 = vpop.f32.mrf.mxu0
      %1103 = vmatprep.mubr.bf16.mxu0 0
      %1104 = vmatmul.mubr.bf16.gmra.mxu0 %v461
      %v1105 = vpop.f32.mrf.mxu0
      %v1106 = vadd.f32 %v1030, %v1105
      %v1107 = vpop.f32.mrf.mxu0
      %v1108 = vpop.f32.mrf.mxu0
      %v1109 = vadd.f32 %v1033, %v1108
      %v1110 = vpop.f32.mrf.mxu0
      %1111 = vdwg.mxu0
      %v1112 = vld [vmem:[%s3 + $0x20] sm:$0xf]
      %v1114 = vsel %vm346, %v1112, 0
      %1116 = vmatprep.subr.bf16.mxu0 0
      %1117 = vmatpush1.bf16.msra.mxu0 0
      %1118 = vmatprep.subr.bf16.mxu0 0
      %1119 = vmatpush1.bf16.msra.mxu0 0
      %1120 = vmatprep.subr.bf16.mxu0 0
      %1121 = vmatpush1.bf16.msra.mxu0 0
      %1122 = vmatprep.subr.bf16.mxu0 0
      %1123 = vmatpush1.bf16.msra.mxu0 0
      %1124 = vmatprep.subr.bf16.mxu0 0
      %1125 = vmatpush1.bf16.msra.mxu0 0
      %1126 = vmatprep.subr.bf16.mxu0 0
      %1127 = vmatpush1.bf16.msra.mxu0 0
      %1128 = vmatprep.subr.bf16.mxu0 0
      %1129 = vmatpush1.bf16.msra.mxu0 0
      %1130 = vmatprep.subr.bf16.mxu0 0
      %1131 = vmatpush1.bf16.msra.mxu0 %v1114
      %1132 = vmatprep.subr.bf16.mxu0 0
      %1133 = vmatpush2.bf16.msra.mxu0 0
      %1134 = vmatprep.subr.bf16.mxu0 0
      %1135 = vmatpush2.bf16.msra.mxu0 0
      %1136 = vmatprep.subr.bf16.mxu0 0
      %1137 = vmatpush2.bf16.msra.mxu0 0
      %1138 = vmatprep.subr.bf16.mxu0 0
      %1139 = vmatpush2.bf16.msra.mxu0 0
      %1140 = vmatprep.subr.bf16.mxu0 0
      %1141 = vmatpush2.bf16.msra.mxu0 0
      %1142 = vmatprep.subr.bf16.mxu0 0
      %1143 = vmatpush2.bf16.msra.mxu0 0
      %1144 = vmatprep.subr.bf16.mxu0 0
      %1145 = vmatpush2.bf16.msra.mxu0 0
      %1146 = vmatprep.subr.bf16.mxu0 0
      %1147 = vmatpush2.bf16.msra.mxu0 0
      %1148 = vmatprep.mubr.bf16.mxu0 0
      %1149 = vmatmul.mubr.bf16.gmra.mxu0 %v566
      %v1150 = vpop.f32.mrf.mxu0
      %v1151 = vadd.f32 0.0, %v1150
      %v1152 = vpop.f32.mrf.mxu0
      %v1153 = vpop.f32.mrf.mxu0
      %v1154 = vadd.f32 0.0, %v1153
      %v1155 = vpop.f32.mrf.mxu0
      %1156 = vmatprep.mubr.bf16.mxu0 0
      %1157 = vmatmul.mubr.bf16.gmra.mxu0 %v569
      %v1158 = vpop.f32.mrf.mxu0
      %v1159 = vadd.f32 0.0, %v1158
      %v1160 = vpop.f32.mrf.mxu0
      %v1161 = vpop.f32.mrf.mxu0
      %v1162 = vadd.f32 0.0, %v1161
      %v1163 = vpop.f32.mrf.mxu0
      %1164 = vmatprep.mubr.bf16.mxu0 0
      %1165 = vmatmul.mubr.bf16.gmra.mxu0 %v572
      %v1166 = vpop.f32.mrf.mxu0
      %v1167 = vadd.f32 0.0, %v1166
      %v1168 = vpop.f32.mrf.mxu0
      %v1169 = vpop.f32.mrf.mxu0
      %v1170 = vadd.f32 0.0, %v1169
      %v1171 = vpop.f32.mrf.mxu0
      %1172 = vmatprep.mubr.bf16.mxu0 0
      %1173 = vmatmul.mubr.bf16.gmra.mxu0 %v575
      %v1174 = vpop.f32.mrf.mxu0
      %v1175 = vadd.f32 0.0, %v1174
      %v1176 = vpop.f32.mrf.mxu0
      %v1177 = vpop.f32.mrf.mxu0
      %v1178 = vadd.f32 0.0, %v1177
      %v1179 = vpop.f32.mrf.mxu0
      %1180 = vmatprep.mubr.bf16.mxu0 0
      %1181 = vmatmul.mubr.bf16.gmra.mxu0 %v578
      %v1182 = vpop.f32.mrf.mxu0
      %v1183 = vadd.f32 0.0, %v1182
      %v1184 = vpop.f32.mrf.mxu0
      %v1185 = vpop.f32.mrf.mxu0
      %v1186 = vadd.f32 0.0, %v1185
      %v1187 = vpop.f32.mrf.mxu0
      %1188 = vdwg.mxu0
      %v1189 = vadd.f32 %v1074, %v1151
      %v1190 = vadd.f32 %v1077, %v1154
      %v1191 = vadd.f32 %v1082, %v1159
      %v1192 = vadd.f32 %v1085, %v1162
      %v1193 = vadd.f32 %v1090, %v1167
      %v1194 = vadd.f32 %v1093, %v1170
      %v1195 = vadd.f32 %v1098, %v1175
      %v1196 = vadd.f32 %v1101, %v1178
      %v1197 = vadd.f32 %v1106, %v1183
      %v1198 = vadd.f32 %v1109, %v1186
      %vm1209 = vcmask 1045504
      %v1210 = vrot.slane %v1189, 2
      %v1211 = vrot.slane %v1190, 2
      %v1212 = vsel %vm1209, %v1210, %v1211
      %v1213 = vrot.slane %v1191, 2
      %v1214 = vsel %vm1209, %v1211, %v1213
      %v1215 = vrot.slane %v1192, 2
      %v1216 = vsel %vm1209, %v1213, %v1215
      %v1217 = vrot.slane %v1193, 2
      %v1218 = vsel %vm1209, %v1215, %v1217
      %v1219 = vrot.slane %v1194, 2
      %v1220 = vsel %vm1209, %v1217, %v1219
      %v1221 = vrot.slane %v1195, 2
      %v1222 = vsel %vm1209, %v1219, %v1221
      %v1223 = vrot.slane %v1196, 2
      %v1224 = vsel %vm1209, %v1221, %v1223
      %v1225 = vrot.slane %v1197, 2
      %v1226 = vsel %vm1209, %v1223, %v1225
      %v1227 = vrot.slane %v1198, 2
      %v1228 = vsel %vm1209, %v1225, %v1227
      %v1239 = vsel %vm1209, %v1227, 0.0
      %v1240 = vadd.f32 %v948, %v1212
      %v1241 = vadd.f32 %v949, %v1214
      %v1242 = vadd.f32 %v950, %v1216
      %v1243 = vadd.f32 %v951, %v1218
      %v1244 = vadd.f32 %v952, %v1220
      %v1245 = vadd.f32 %v953, %v1222
      %v1246 = vadd.f32 %v954, %v1224
      %v1247 = vadd.f32 %v955, %v1226
      %v1248 = vadd.f32 %v956, %v1228
      %v1249 = vadd.f32 %v957, %v1239
      %v1250 = vld [vmem:[%s4] sm:$0x1]
      %v1252 = vlaneseq
      %v1253 = vshrl.u32 %v1252, 7
      %v1254 = vsub.s32 0, %v1253
      %v1255 = vrot.slane %v1250, %v1254
      %v1257 = vadd.f32 %v1240, %v1255
      %v1258 = vadd.f32 %v1241, %v1255
      %v1259 = vadd.f32 %v1242, %v1255
      %v1260 = vadd.f32 %v1243, %v1255
      %v1261 = vadd.f32 %v1244, %v1255
      %v1262 = vadd.f32 %v1245, %v1255
      %v1263 = vadd.f32 %v1246, %v1255
      %v1264 = vadd.f32 %v1247, %v1255
      %v1265 = vadd.f32 %v1248, %v1255
      %v1266 = vadd.f32 %v1249, %v1255
      %v1267 = vmax.f32 %v1257, 0.0
      %v1268 = vmax.f32 %v1258, 0.0
      %v1269 = vmax.f32 %v1259, 0.0
      %v1270 = vmax.f32 %v1260, 0.0
      %v1271 = vmax.f32 %v1261, 0.0
      %v1272 = vmax.f32 %v1262, 0.0
      %v1273 = vmax.f32 %v1263, 0.0
      %v1274 = vmax.f32 %v1264, 0.0
      %v1275 = vmax.f32 %v1265, 0.0
      %v1276 = vmax.f32 %v1266, 0.0
      %v1277 = vpack.c.bf16 %v1268, %v1267
      %v1278 = vpack.c.bf16 %v1270, %v1269
      %v1279 = vpack.c.bf16 %v1272, %v1271
      %v1280 = vpack.c.bf16 %v1274, %v1273
      %v1281 = vpack.c.bf16 %v1276, %v1275
      %v1287 = vunpack.c.l.b16 %v1277
      %v1288 = vunpack.c.h.b16 %v1277
      %v1289 = vunpack.c.l.b16 %v1278
      %v1290 = vunpack.c.h.b16 %v1278
      %v1291 = vunpack.c.l.b16 %v1279
      %v1292 = vunpack.c.h.b16 %v1279
      %v1293 = vunpack.c.l.b16 %v1280
      %v1294 = vunpack.c.h.b16 %v1280
      %v1295 = vunpack.c.l.b16 %v1281
      %v1296 = vunpack.c.h.b16 %v1281
      %v1297 = vpack.c.b16 %v1287, %v1287
      %v1298 = vpack.c.b16 %v1288, %v1288
      %v1299 = vpack.c.b16 %v1289, %v1289
      %v1300 = vpack.c.b16 %v1290, %v1290
      %v1301 = vpack.c.b16 %v1291, %v1291
      %v1302 = vpack.c.b16 %v1292, %v1292
      %v1303 = vpack.c.b16 %v1293, %v1293
      %v1304 = vpack.c.b16 %v1294, %v1294
      %v1305 = vpack.c.b16 %v1295, %v1295
      %v1306 = vpack.c.b16 %v1296, %v1296
      %vm1317 = vcmask 125952
      %1318 = vst.msk [vmem:[%s270] sm:$0xf] %vm1317, %v1297
      %1319 = vst.msk [vmem:[%s270 + $0x4] sm:$0xf] %vm1317, %v1298
      %1320 = vst.msk [vmem:[%s270 + $0x8] sm:$0xf] %vm1317, %v1299
      %1321 = vst.msk [vmem:[%s270 + $0xc] sm:$0xf] %vm1317, %v1300
      %1322 = vst.msk [vmem:[%s270 + $0x10] sm:$0xf] %vm1317, %v1301
      %1323 = vst.msk [vmem:[%s270 + $0x14] sm:$0xf] %vm1317, %v1302
      %1324 = vst.msk [vmem:[%s270 + $0x18] sm:$0xf] %vm1317, %v1303
      %1325 = vst.msk [vmem:[%s270 + $0x1c] sm:$0xf] %vm1317, %v1304
      %1326 = vst.msk [vmem:[%s270 + $0x20] sm:$0xf] %vm1317, %v1305
      %1327 = vst.msk [vmem:[%s270 + $0x24] sm:$0xf] %vm1317, %v1306
      %s1328 = smul.u32 10, %s16
      %p1329 = scmp.lt.s32.totalorder %s1328, 19
      %s1330 = scalar_select %p1329, %s1328, 19
      %s1331 = smul.addr %s1330, 4
      %s1332 = scalar_lea.vmem %s5, %s1331
      // Predicated region
      $region41: #{_lambda_.6} parent=39 // pred_check
        %p1333 = pneg %p154
      $region42: #{_lambda_.6} parent=39 // pred_check_branch
        %1335 = sbr.rel (%p1333) target = $region44
      $region43: #{_lambda_.6} parent=39 // pred_region
        %s1336 = smul.u32 10, %s16
      $region44: #{_lambda_.6} parent=39 // pred_fallthru
        _
    $region40: #{_lambda_.6} parent=5 // pred_fallthru
      _
    %p1337 = scmp.le.s32.totalorder 2, %s11
    // Predicated region
    $region45: #{_lambda_.6} parent=5 // pred_check
      %p1338 = pneg %p1337
    $region46: #{_lambda_.6} parent=5 // pred_check_branch
      %1340 = sbr.rel (%p1338) target = $region48
    $region47: #{_lambda_.6} parent=5 // pred_region
      %s1341 = ssub.s32 %s11, 2
      // Predicated region
      $region49: #{_lambda_.6} parent=47 // pred_check
        %p1342 = pneg %p160
      $region50: #{_lambda_.6} parent=47 // pred_check_branch
        %1344 = sbr.rel (%p1342) target = $region52
      $region51: #{_lambda_.6} parent=47 // pred_region
        %s1345 = smul.u32 10, %s17
        %p1346 = scmp.lt.s32.totalorder %s1345, 19
        %s1347 = scalar_select %p1346, %s1345, 19
        %s1348 = smul.addr %s1347, 4
        %s1349 = scalar_lea.vmem %s5, %s1348
      $region52: #{_lambda_.6} parent=47 // pred_fallthru
        _
    $region48: #{_lambda_.6} parent=5 // pred_fallthru
      _
  $region6: #{_lambda_.6} parent=0 // loop_footer
    %s15 = sadd.s32 1, %s11
  $region7: #{_lambda_.6} parent=0 // loop_footer_branch
    %10 = sbr.rel target = $region3
  $region8: #{_lambda_.6} parent=0 // loop_exit
    _

</llo_original>
